<compile_context>
chip_gen: v5e
topology: v5e:2x2
jax: 0.10.0
libtpu: 0.0.40
codegen_flags: <defaults>
</compile_context>

<pallas_src>
import functools

import jax
import jax.numpy as jnp
import numpy as np
from jax import lax
from jax.experimental import pallas as pl
from jax.experimental.pallas import tpu as pltpu


def _round_up(x, m):
    return ((x + m - 1) // m) * m


# ------------------------------- Pallas kernel -------------------------------
def bigru_last_kernel(xf_ref, xb_ref,
                      wih_f_ref, whh_f_ref, bih_f_ref, bhn_f_ref,
                      wih_b_ref, whh_b_ref, bih_b_ref, bhn_b_ref,
                      out_ref,
                      hf_ref, hb_ref, gif_ref, gib_ref,
                      *, t_real, t_pad, n_chunks, unroll):
    i = pl.program_id(0)                      # grid has n_chunks + 1 steps (pipeline skew)
    Bp, Hp = hf_ref.shape
    Tc = t_pad // n_chunks
    needs_mask = (t_pad != t_real)            # static Python bool

    slot = i % 2                              # gi slot written by this step's projection
    prev_slot = 1 - slot                      # gi slot consumed by this step's recurrence

    @pl.when(i == 0)
    def _init():
        hf_ref[...] = jnp.zeros_like(hf_ref)
        hb_ref[...] = jnp.zeros_like(hb_ref)

    # ---- Stage A: time-parallel input projection of chunk i (bf16 MXU, f32 accumulate).
    # b_ih + (b_hr, b_hz) are pre-folded into bih_*; only the r-gated b_hn stays out.
    @pl.when(i < n_chunks)
    def _project():
        gif_ref[slot] = (jnp.dot(xf_ref[0], wih_f_ref[...],
                                 preferred_element_type=jnp.float32) + bih_f_ref[...])
        gib_ref[slot] = (jnp.dot(xb_ref[0], wih_b_ref[...],
                                 preferred_element_type=jnp.float32) + bih_b_ref[...])

    # ---- Stage B: serial GRU recurrence over chunk i-1 (slot filled on the previous step).
    @pl.when(i > 0)
    def _recur():
        c = i - 1                                      # chunk index being consumed
        gif_prev = gif_ref.at[prev_slot]
        gib_prev = gib_ref.at[prev_slot]
        # Hoisted bias broadcasts (JAX does not CSE broadcast_in_dim inside the loop).
        bhn_f = jnp.broadcast_to(bhn_f_ref[...], (Bp, Hp))
        bhn_b = jnp.broadcast_to(bhn_b_ref[...], (Bp, Hp))

        def gru_step(h, gi_t, whh_ref, bhn, valid):
            # torch.nn.GRU cell; gate slabs [r|z|n] are 128-lane aligned at multiples of Hp.
            # W_hh is re-read from VMEM here (NOT hoisted) so vreg pressure stays bounded
            # across the unrolled recurrence (reload is cheaper than spill/fill).
            gh = jnp.dot(h.astype(whh_ref.dtype), whh_ref[...],
                         preferred_element_type=jnp.float32)          # (Bp, 3*Hp) f32
            r = jax.nn.sigmoid(gi_t[:, 0:Hp] + gh[:, 0:Hp])
            z = jax.nn.sigmoid(gi_t[:, Hp:2 * Hp] + gh[:, Hp:2 * Hp])
            n = jnp.tanh(gi_t[:, 2 * Hp:3 * Hp] + r * (gh[:, 2 * Hp:3 * Hp] + bhn))
            h_new = (1.0 - z) * n + z * h
            if valid is None:                  # no time padding -> no mask needed
                return h_new
            return jnp.where(valid, h_new, h)  # freeze h on padded timesteps

        def body(u, carry):
            hf, hb = carry
            uf = pl.multiple_of(u * Bp, Bp)                 # local fwd timestep rows
            ub = pl.multiple_of((Tc - 1 - u) * Bp, Bp)      # local bwd timestep rows
            gi_f_t = gif_prev[pl.ds(uf, Bp), :]
            gi_b_t = gib_prev[pl.ds(ub, Bp), :]
            if needs_mask:
                vf = (c * Tc + u) < t_real
                vb = ((n_chunks - 1 - c) * Tc + (Tc - 1 - u)) < t_real
            else:
                vf = vb = None
            hf = gru_step(hf, gi_f_t, whh_f_ref, bhn_f, vf)
            hb = gru_step(hb, gi_b_t, whh_b_ref, bhn_b, vb)
            return hf, hb

        # Partially-unrolled serial recurrence (bounded code size / vreg live ranges; the
        # fwd/bwd interleave lets LLO co-issue MXU pushes with the EUP sigmoid/tanh work).
        hf, hb = lax.fori_loop(0, Tc, body, (hf_ref[...], hb_ref[...]), unroll=unroll)
        hf_ref[...] = hf
        hb_ref[...] = hb

    @pl.when(i == n_chunks)                    # final drain step: all chunks consumed
    def _finalize():
        out_ref[0, :, :] = hf_ref[...]         # dense, lane-aligned (Bp, Hp) stores
        out_ref[1, :, :] = hb_ref[...]


# --------------------------------- Wrapper ------------------------------------
def _pad_gate_cols(w, H, Hp):
    """(D, 3H) -> (D, 3Hp): each torch gate slab [r|z|n] placed at a 128-aligned offset."""
    D = w.shape[0]
    out = jnp.zeros((D, 3 * Hp), w.dtype)
    for g in range(3):
        out = out.at[:, g * Hp:g * Hp + H].set(w[:, g * H:(g + 1) * H])
    return out


def text_recurrent_layer(tokens, emb_table, params, *, time_chunk=16):
    """tokens: (B, T) int32 -> (B, 2H) float32 (== TextRecurrentLayer.forward)."""
    B, T = tokens.shape
    E = emb_table.shape[1]
    H = params["whh_f"].shape[0]

    Hp = _round_up(H, 128)          # lane-aligned gate slab width
    Bp = _round_up(max(B, 8), 8)    # sublane-aligned batch

    # Time chunk: start at time_chunk, shrink until the chunk-dependent VMEM terms
    # (2-slot f32 gi scratch per direction + double-buffered bf16 x chunks per direction)
    # fit a conservative budget that also holds on v7x's 64 MiB per-TC VMEM.
    Tc = max(1, min(T, time_chunk))
    chunk_bytes = lambda tc: 2 * (2 * tc * Bp * 3 * Hp) * 4 + 2 * 2 * (tc * Bp * E) * 2
    while Tc > 1 and chunk_bytes(Tc) > 40 * (1 << 20):
        Tc = (Tc + 1) // 2
    Tp = _round_up(T, Tc)
    n_chunks = Tp // Tc

    # Embedding lookup (padding_idx=0 row is zero in emb_table) -- JAX glue, streamed as bf16.
    # TODO(synk): for very long sequences the token ids could be scalar-prefetched and the
    # embedding rows gathered in-kernel; kept as host-side glue here.
    x = jnp.take(emb_table, tokens, axis=0).astype(jnp.bfloat16)     # (B, T, E) bf16
    x = jnp.transpose(x, (1, 0, 2))                                   # (T, B, E)
    x = jnp.pad(x, ((0, Tp - T), (0, Bp - B), (0, 0)))                # (Tp, Bp, E)
    x = x.reshape(n_chunks, Tc * Bp, E)                               # pre-chunked, time-major

    def prep_direction(wih, whh, bih, bhh):
        # Fold b_ih and the r/z parts of b_hh into the hoisted input-projection bias;
        # b_hn must stay separate (it is gated by r inside the recurrence).
        bih_comb = bih + bhh.at[:, 2 * H:3 * H].set(0.0)             # (1, 3H) f32
        wih_p = _pad_gate_cols(wih, H, Hp).astype(jnp.bfloat16)      # (E, 3Hp)  bf16 MXU operand
        whh_p = jnp.pad(_pad_gate_cols(whh, H, Hp),
                        ((0, Hp - H), (0, 0))).astype(jnp.bfloat16)  # (Hp, 3Hp) bf16 MXU operand
        bih_p = _pad_gate_cols(bih_comb, H, Hp)                      # (1, 3Hp) f32
        bhn_p = jnp.pad(bhh[:, 2 * H:3 * H], ((0, 0), (0, Hp - H)))  # (1, Hp)  f32
        return wih_p, whh_p, bih_p, bhn_p

    fwd = prep_direction(params["wih_f"], params["whh_f"], params["bih_f"], params["bhh_f"])
    bwd = prep_direction(params["wih_b"], params["whh_b"], params["bih_b"], params["bhh_b"])

    def resident(shape):
        nd = len(shape)
        return pl.BlockSpec(shape, lambda i, _nd=nd: (0,) * _nd)

    in_specs = [
        # Pipeline-skewed chunk streams: step i fetches the chunk projected at step i
        # (consumed by the recurrence at step i+1); clamped on the final drain step.
        pl.BlockSpec((1, Tc * Bp, E), lambda i: (jnp.minimum(i, n_chunks - 1), 0, 0)),
        pl.BlockSpec((1, Tc * Bp, E), lambda i: (jnp.maximum(n_chunks - 1 - i, 0), 0, 0)),
    ] + [resident(a.shape) for a in (*fwd, *bwd)]

    # Explicit scoped-VMEM limit sized from the actual scratch + pipeline buffers.
    vmem_bytes = (
        2 * 2 * (Tc * Bp * E) * 2                       # xf/xb bf16 chunks, double-buffered
        + 2 * 2 * ((E + Hp) * 3 * Hp) * 2               # W_ih + W_hh per direction (x2 buffers)
        + 2 * 2 * (4 * Hp) * 4                          # biases per direction (x2 buffers)
        + 2 * (2 * Tc * Bp * 3 * Hp) * 4                # gi scratch, 2 skew slots per direction
        + 2 * (Bp * Hp) * 4                             # h carries
        + 2 * (2 * Bp * Hp) * 4                         # output block
    )
    vmem_limit = int(min(96 * (1 << 20), max(32 * (1 << 20), 2 * vmem_bytes)))

    kernel = functools.partial(bigru_last_kernel, t_real=T, t_pad=Tp,
                               n_chunks=n_chunks, unroll=min(Tc, 8))

    out = pl.pallas_call(
        kernel,
        out_shape=jax.ShapeDtypeStruct((2, Bp, Hp), jnp.float32),
        grid=(n_chunks + 1,),                            # +1 drain step for the pipeline skew
        in_specs=in_specs,
        out_specs=pl.BlockSpec((2, Bp, Hp), lambda i: (0, 0, 0)),
        scratch_shapes=[
            pltpu.VMEM((Bp, Hp), jnp.float32),              # hf carry (persists across grid)
            pltpu.VMEM((Bp, Hp), jnp.float32),              # hb carry
            pltpu.VMEM((2, Tc * Bp, 3 * Hp), jnp.float32),  # fwd input projection, 2 skew slots
            pltpu.VMEM((2, Tc * Bp, 3 * Hp), jnp.float32),  # bwd input projection, 2 skew slots
        ],
        compiler_params=pltpu.CompilerParams(
            dimension_semantics=("arbitrary",),             # recurrence is serial in time
            vmem_limit_bytes=vmem_limit),
    )(x, x, *fwd, *bwd)

    # LastTimeStep for a 1-layer bidirectional GRU == concat(fwd final h, bwd final h);
    # drop batch/hidden padding here (JAX glue), keeping kernel stores dense and aligned.
    return jnp.concatenate([out[0, :B, :H], out[1, :B, :H]], axis=-1)


# ---------------------------- Pure-JAX reference ------------------------------
def _gru_cell_ref(h, x_t, wih, whh, b_ih, b_hh, H):
    gi = jnp.dot(x_t, wih, preferred_element_type=jnp.float32) + b_ih
    gh = jnp.dot(h, whh, preferred_element_type=jnp.float32)
    i_r, i_z, i_n = gi[:, 0:H], gi[:, H:2 * H], gi[:, 2 * H:3 * H]
    h_r, h_z, h_n = gh[:, 0:H], gh[:, H:2 * H], gh[:, 2 * H:3 * H]
    b_r, b_z, b_n = b_hh[:, 0:H], b_hh[:, H:2 * H], b_hh[:, 2 * H:3 * H]
    r = jax.nn.sigmoid(i_r + h_r + b_r)
    z = jax.nn.sigmoid(i_z + h_z + b_z)
    n = jnp.tanh(i_n + r * (h_n + b_n))
    return (1.0 - z) * n + z * h


def _gru_dir_ref(x_tbe, wih, whh, bih, bhh, reverse):
    T, B, _ = x_tbe.shape
    H = whh.shape[0]
    h = jnp.zeros((B, H), jnp.float32)
    order = range(T - 1, -1, -1) if reverse else range(T)
    for t in order:
        h = _gru_cell_ref(h, x_tbe[t], wih, whh, bih, bhh, H)
    return h


def text_recurrent_layer_ref(tokens, emb_table, params):
    x = jnp.take(emb_table, tokens, axis=0).astype(jnp.float32)
    x = jnp.transpose(x, (1, 0, 2))
    hf = _gru_dir_ref(x, params["wih_f"], params["whh_f"],
                      params["bih_f"], params["bhh_f"], reverse=False)
    hb = _gru_dir_ref(x, params["wih_b"], params["whh_b"],
                      params["bih_b"], params["bhh_b"], reverse=True)
    return jnp.concatenate([hf, hb], axis=-1)


# ------------------------------------ Main -------------------------------------
if __name__ == "__main__":
    # Small shapes consistent with the module defaults.
    VOCAB = 32
    E = 20      # text_embedding_dimension
    H = 20      # text_recurrent_hidden_size
    B = 2       # batch
    T = 8       # sequence length

    key = jax.random.PRNGKey(0)
    k_emb, k_tok, *k_w = jax.random.split(key, 12)

    # Embedding table; padding_idx=0 -> zero row (as nn.Embedding enforces).
    emb_table = 0.1 * jax.random.normal(k_emb, (VOCAB, E), jnp.float32)
    emb_table = emb_table.at[0].set(0.0)

    # Token ids, include a padding (0) token.
    tokens = jax.random.randint(k_tok, (B, T), 0, VOCAB, dtype=jnp.int32)
    tokens = tokens.at[0, -1].set(0)

    # GRU parameters, torch layout (W_ih^T (E,3H), W_hh^T (H,3H), biases (1,3H); gates [r|z|n]).
    s = 1.0 / np.sqrt(H)

    def u(k, shape):
        return jax.random.uniform(k, shape, jnp.float32, -s, s)

    params = {
        "wih_f": u(k_w[0], (E, 3 * H)), "whh_f": u(k_w[1], (H, 3 * H)),
        "bih_f": u(k_w[2], (1, 3 * H)), "bhh_f": u(k_w[3], (1, 3 * H)),
        "wih_b": u(k_w[4], (E, 3 * H)), "whh_b": u(k_w[5], (H, 3 * H)),
        "bih_b": u(k_w[6], (1, 3 * H)), "bhh_b": u(k_w[7], (1, 3 * H)),
    }

    # TODO(synk): like the reference PyTorch module (no pack_padded_sequence), padding tokens
    # still drive the recurrence; per-sequence lengths would need an extra lengths input.

    out = jax.block_until_ready(text_recurrent_layer(tokens, emb_table, params))
    ref = jax.block_until_ready(text_recurrent_layer_ref(tokens, emb_table, params))

    assert out.shape == (B, 2 * H), out.shape
    # Tolerance accounts for bf16 MXU operands (x, W_ih, W_hh) with f32 accumulation,
    # compounded over the serial recurrence; reference is full f32.
    np.testing.assert_allclose(np.asarray(out), np.asarray(ref), rtol=3e-2, atol=3e-2)
    print("KERNEL_OK")
</pallas_src>

<mosaic_0001>
module attributes {stable_mosaic.version = 11 : i64} {
  func.func @bigru_last_kernel(%arg0: i32, %arg1: memref<1x64x20xbf16, #tpu.memory_space<vmem>>, %arg2: memref<1x64x20xbf16, #tpu.memory_space<vmem>>, %arg3: memref<20x384xbf16, #tpu.memory_space<vmem>>, %arg4: memref<128x384xbf16, #tpu.memory_space<vmem>>, %arg5: memref<1x384xf32, #tpu.memory_space<vmem>>, %arg6: memref<1x128xf32, #tpu.memory_space<vmem>>, %arg7: memref<20x384xbf16, #tpu.memory_space<vmem>>, %arg8: memref<128x384xbf16, #tpu.memory_space<vmem>>, %arg9: memref<1x384xf32, #tpu.memory_space<vmem>>, %arg10: memref<1x128xf32, #tpu.memory_space<vmem>>, %arg11: memref<2x8x128xf32, #tpu.memory_space<vmem>>, %arg12: memref<8x128xf32, #tpu.memory_space<vmem>>, %arg13: memref<8x128xf32, #tpu.memory_space<vmem>>, %arg14: memref<2x64x384xf32, #tpu.memory_space<vmem>>, %arg15: memref<2x64x384xf32, #tpu.memory_space<vmem>>) attributes {dimension_semantics = [#tpu.dimension_semantics<arbitrary>], iteration_bounds = array<i64: 2>, scalar_prefetch = 0 : i64, scratch_operands = 4 : i64, tpu.core_type = #tpu.core_type<tc>, window_params = [{transform_indices = @transform_0, window_bounds = array<i64: 1, 64, 20>}, {transform_indices = @transform_1, window_bounds = array<i64: 1, 64, 20>}, {pipeline_mode = #tpu.pipeline_mode<synchronous>, transform_indices = @transform_2, window_bounds = array<i64: 20, 384>}, {pipeline_mode = #tpu.pipeline_mode<synchronous>, transform_indices = @transform_3, window_bounds = array<i64: 128, 384>}, {pipeline_mode = #tpu.pipeline_mode<synchronous>, transform_indices = @transform_4, window_bounds = array<i64: 1, 384>}, {pipeline_mode = #tpu.pipeline_mode<synchronous>, transform_indices = @transform_5, window_bounds = array<i64: 1, 128>}, {pipeline_mode = #tpu.pipeline_mode<synchronous>, transform_indices = @transform_6, window_bounds = array<i64: 20, 384>}, {pipeline_mode = #tpu.pipeline_mode<synchronous>, transform_indices = @transform_7, window_bounds = array<i64: 128, 384>}, {pipeline_mode = #tpu.pipeline_mode<synchronous>, transform_indices = @transform_8, window_bounds = array<i64: 1, 384>}, {pipeline_mode = #tpu.pipeline_mode<synchronous>, transform_indices = @transform_9, window_bounds = array<i64: 1, 128>}, {pipeline_mode = #tpu.pipeline_mode<synchronous>, transform_indices = @transform_10, window_bounds = array<i64: 2, 8, 128>}]} {
    %c2_i32 = arith.constant 2 : i32
    %c0_i32 = arith.constant 0 : i32
    %0 = arith.cmpi eq, %c2_i32, %c0_i32 : i32
    %c1_i32 = arith.constant 1 : i32
    %1 = arith.select %0, %c1_i32, %c2_i32 : i32
    %2 = arith.remsi %arg0, %1 : i32
    %c0_i32_0 = arith.constant 0 : i32
    %3 = arith.cmpi ne, %2, %c0_i32_0 : i32
    %c0_i32_1 = arith.constant 0 : i32
    %4 = arith.cmpi slt, %2, %c0_i32_1 : i32
    %c0_i32_2 = arith.constant 0 : i32
    %5 = arith.cmpi slt, %1, %c0_i32_2 : i32
    %6 = arith.xori %4, %5 : i1
    %7 = arith.andi %6, %3 : i1
    %8 = arith.addi %2, %1 : i32
    %9 = arith.select %7, %8, %2 : i32
    %c1_i32_3 = arith.constant 1 : i32
    %10 = arith.subi %c1_i32_3, %9 : i32
    %c0_i32_4 = arith.constant 0 : i32
    %11 = arith.cmpi eq, %arg0, %c0_i32_4 : i32
    %12 = arith.extui %11 : i1 to i32
    %c0_i32_5 = arith.constant 0 : i32
    %13 = arith.cmpi ne, %12, %c0_i32_5 : i32
    scf.if %13 {
      %cst = arith.constant 0.000000e+00 : f32
      %23 = vector.broadcast %cst : f32 to vector<8x128xf32>
      %c0 = arith.constant 0 : index
      %c0_12 = arith.constant 0 : index
      %24 = vector.load %arg12[%c0, %c0_12] : memref<8x128xf32, #tpu.memory_space<vmem>>, vector<8x128xf32>
      tpu.vector_store %arg12[%c0, %c0_12], %23 {strides = array<i32>} : memref<8x128xf32, #tpu.memory_space<vmem>>, vector<8x128xf32>,
      %cst_13 = arith.constant 0.000000e+00 : f32
      %25 = vector.broadcast %cst_13 : f32 to vector<8x128xf32>
      %c0_14 = arith.constant 0 : index
      %c0_15 = arith.constant 0 : index
      %26 = vector.load %arg13[%c0_14, %c0_15] : memref<8x128xf32, #tpu.memory_space<vmem>>, vector<8x128xf32>
      tpu.vector_store %arg13[%c0_14, %c0_15], %25 {strides = array<i32>} : memref<8x128xf32, #tpu.memory_space<vmem>>, vector<8x128xf32>,
    } else {
    }
    %c1_i32_6 = arith.constant 1 : i32
    %14 = arith.cmpi slt, %arg0, %c1_i32_6 : i32
    %15 = arith.extui %14 : i1 to i32
    %c0_i32_7 = arith.constant 0 : i32
    %16 = arith.cmpi ne, %15, %c0_i32_7 : i32
    scf.if %16 {
      %c0 = arith.constant 0 : index
      %c0_12 = arith.constant 0 : index
      %c0_13 = arith.constant 0 : index
      %23 = vector.load %arg1[%c0, %c0_12, %c0_13] : memref<1x64x20xbf16, #tpu.memory_space<vmem>>, vector<1x64x20xbf16>
      %24 = vector.shape_cast %23 : vector<1x64x20xbf16> to vector<64x20xbf16>
      %c0_14 = arith.constant 0 : index
      %c0_15 = arith.constant 0 : index
      %25 = vector.load %arg3[%c0_14, %c0_15] : memref<20x384xbf16, #tpu.memory_space<vmem>>, vector<20x384xbf16>
      %cst = arith.constant dense<0.000000e+00> : vector<64x384xf32>
      %26 = tpu.matmul %24, %25, %cst {dimension_numbers = #tpu.dot_dimension_numbers<[1], [0], [0], [1], [0, 0, 1, 1], [], []>} : vector<64x20xbf16>, vector<20x384xbf16>, vector<64x384xf32> -> vector<64x384xf32>
      %c0_16 = arith.constant 0 : index
      %c0_17 = arith.constant 0 : index
      %27 = vector.load %arg5[%c0_16, %c0_17] : memref<1x384xf32, #tpu.memory_space<vmem>>, vector<1x384xf32>
      %28 = vector.broadcast %27 : vector<1x384xf32> to vector<64x384xf32>
      %29 = arith.addf %26, %28 : vector<64x384xf32>
      %30 = arith.index_cast %9 : i32 to index
      %c0_18 = arith.constant 0 : index
      %c0_19 = arith.constant 0 : index
      %31 = vector.load %arg14[%30, %c0_18, %c0_19] : memref<2x64x384xf32, #tpu.memory_space<vmem>>, vector<1x64x384xf32>
      %32 = vector.shape_cast %31 : vector<1x64x384xf32> to vector<64x384xf32>
      %33 = vector.shape_cast %29 : vector<64x384xf32> to vector<1x64x384xf32>
      tpu.vector_store %arg14[%30, %c0_18, %c0_19], %33 {strides = array<i32>} : memref<2x64x384xf32, #tpu.memory_space<vmem>>, vector<1x64x384xf32>,
      %c0_20 = arith.constant 0 : index
      %c0_21 = arith.constant 0 : index
      %c0_22 = arith.constant 0 : index
      %34 = vector.load %arg2[%c0_20, %c0_21, %c0_22] : memref<1x64x20xbf16, #tpu.memory_space<vmem>>, vector<1x64x20xbf16>
      %35 = vector.shape_cast %34 : vector<1x64x20xbf16> to vector<64x20xbf16>
      %c0_23 = arith.constant 0 : index
      %c0_24 = arith.constant 0 : index
      %36 = vector.load %arg7[%c0_23, %c0_24] : memref<20x384xbf16, #tpu.memory_space<vmem>>, vector<20x384xbf16>
      %cst_25 = arith.constant dense<0.000000e+00> : vector<64x384xf32>
      %37 = tpu.matmul %35, %36, %cst_25 {dimension_numbers = #tpu.dot_dimension_numbers<[1], [0], [0], [1], [0, 0, 1, 1], [], []>} : vector<64x20xbf16>, vector<20x384xbf16>, vector<64x384xf32> -> vector<64x384xf32>
      %c0_26 = arith.constant 0 : index
      %c0_27 = arith.constant 0 : index
      %38 = vector.load %arg9[%c0_26, %c0_27] : memref<1x384xf32, #tpu.memory_space<vmem>>, vector<1x384xf32>
      %39 = vector.broadcast %38 : vector<1x384xf32> to vector<64x384xf32>
      %40 = arith.addf %37, %39 : vector<64x384xf32>
      %41 = arith.index_cast %9 : i32 to index
      %c0_28 = arith.constant 0 : index
      %c0_29 = arith.constant 0 : index
      %42 = vector.load %arg15[%41, %c0_28, %c0_29] : memref<2x64x384xf32, #tpu.memory_space<vmem>>, vector<1x64x384xf32>
      %43 = vector.shape_cast %42 : vector<1x64x384xf32> to vector<64x384xf32>
      %44 = vector.shape_cast %40 : vector<64x384xf32> to vector<1x64x384xf32>
      tpu.vector_store %arg15[%41, %c0_28, %c0_29], %44 {strides = array<i32>} : memref<2x64x384xf32, #tpu.memory_space<vmem>>, vector<1x64x384xf32>,
    } else {
    }
    %c0_i32_8 = arith.constant 0 : i32
    %17 = arith.cmpi sgt, %arg0, %c0_i32_8 : i32
    %18 = arith.extui %17 : i1 to i32
    %c0_i32_9 = arith.constant 0 : i32
    %19 = arith.cmpi ne, %18, %c0_i32_9 : i32
    scf.if %19 {
      %c0 = arith.constant 0 : index
      %c0_12 = arith.constant 0 : index
      %23 = vector.load %arg6[%c0, %c0_12] : memref<1x128xf32, #tpu.memory_space<vmem>>, vector<1x128xf32>
      %24 = vector.shape_cast %23 : vector<1x128xf32> to vector<1x128xf32>
      %25 = vector.broadcast %24 : vector<1x128xf32> to vector<8x128xf32>
      %c0_13 = arith.constant 0 : index
      %c0_14 = arith.constant 0 : index
      %26 = vector.load %arg10[%c0_13, %c0_14] : memref<1x128xf32, #tpu.memory_space<vmem>>, vector<1x128xf32>
      %27 = vector.shape_cast %26 : vector<1x128xf32> to vector<1x128xf32>
      %28 = vector.broadcast %27 : vector<1x128xf32> to vector<8x128xf32>
      %c0_15 = arith.constant 0 : index
      %c0_16 = arith.constant 0 : index
      %29 = vector.load %arg12[%c0_15, %c0_16] : memref<8x128xf32, #tpu.memory_space<vmem>>, vector<8x128xf32>
      %c0_17 = arith.constant 0 : index
      %c0_18 = arith.constant 0 : index
      %30 = vector.load %arg13[%c0_17, %c0_18] : memref<8x128xf32, #tpu.memory_space<vmem>>, vector<8x128xf32>
      %c0_i32_19 = arith.constant 0 : i32
      %c8_i32 = arith.constant 8 : i32
      %31 = arith.muli %c0_i32_19, %c8_i32 : i32
      %32 = tpu.assume_multiple %31, 8 : i32
      %c7_i32 = arith.constant 7 : i32
      %33 = arith.subi %c7_i32, %c0_i32_19 : i32
      %c8_i32_20 = arith.constant 8 : i32
      %34 = arith.muli %33, %c8_i32_20 : i32
      %35 = tpu.assume_multiple %34, 8 : i32
      %c0_i32_21 = arith.constant 0 : i32
      %c0_i32_22 = arith.constant 0 : i32
      %36 = tpu.memref_slice %arg14[%10, %c0_i32_21, %c0_i32_22] : memref<2x64x384xf32, #tpu.memory_space<vmem>> -> memref<1x64x384xf32, #tpu.memory_space<vmem>>
      %37 = tpu.memref_squeeze %36 : memref<1x64x384xf32, #tpu.memory_space<vmem>> -> memref<64x384xf32, #tpu.memory_space<vmem>>
      %38 = arith.index_cast %32 : i32 to index
      %c0_23 = arith.constant 0 : index
      %39 = vector.load %37[%38, %c0_23] : memref<64x384xf32, #tpu.memory_space<vmem>>, vector<8x384xf32>
      %c0_i32_24 = arith.constant 0 : i32
      %c0_i32_25 = arith.constant 0 : i32
      %40 = tpu.memref_slice %arg15[%10, %c0_i32_24, %c0_i32_25] : memref<2x64x384xf32, #tpu.memory_space<vmem>> -> memref<1x64x384xf32, #tpu.memory_space<vmem>>
      %41 = tpu.memref_squeeze %40 : memref<1x64x384xf32, #tpu.memory_space<vmem>> -> memref<64x384xf32, #tpu.memory_space<vmem>>
      %42 = arith.index_cast %35 : i32 to index
      %c0_26 = arith.constant 0 : index
      %43 = vector.load %41[%42, %c0_26] : memref<64x384xf32, #tpu.memory_space<vmem>>, vector<8x384xf32>
      %44 = arith.truncf %29 : vector<8x128xf32> to vector<8x128xbf16>
      %c0_27 = arith.constant 0 : index
      %c0_28 = arith.constant 0 : index
      %45 = vector.load %arg4[%c0_27, %c0_28] : memref<128x384xbf16, #tpu.memory_space<vmem>>, vector<128x384xbf16>
      %cst = arith.constant dense<0.000000e+00> : vector<8x384xf32>
      %46 = tpu.matmul %44, %45, %cst {dimension_numbers = #tpu.dot_dimension_numbers<[1], [0], [0], [1], [0, 0, 1, 1], [], []>} : vector<8x128xbf16>, vector<128x384xbf16>, vector<8x384xf32> -> vector<8x384xf32>
      %47 = vector.extract_strided_slice %39 {offsets = [0, 0], sizes = [8, 128], strides = [1, 1]} : vector<8x384xf32> to vector<8x128xf32>
      %48 = vector.extract_strided_slice %46 {offsets = [0, 0], sizes = [8, 128], strides = [1, 1]} : vector<8x384xf32> to vector<8x128xf32>
      %49 = arith.addf %47, %48 : vector<8x128xf32>
      %50 = arith.negf %49 : vector<8x128xf32>
      %51 = math.exp %50 : vector<8x128xf32>
      %cst_29 = arith.constant 1.000000e+00 : f32
      %52 = vector.broadcast %cst_29 : f32 to vector<8x128xf32>
      %53 = arith.addf %52, %51 : vector<8x128xf32>
      %54 = arith.divf %52, %53 : vector<8x128xf32>
      %55 = vector.extract_strided_slice %39 {offsets = [0, 128], sizes = [8, 128], strides = [1, 1]} : vector<8x384xf32> to vector<8x128xf32>
      %56 = vector.extract_strided_slice %46 {offsets = [0, 128], sizes = [8, 128], strides = [1, 1]} : vector<8x384xf32> to vector<8x128xf32>
      %57 = arith.addf %55, %56 : vector<8x128xf32>
      %58 = arith.negf %57 : vector<8x128xf32>
      %59 = math.exp %58 : vector<8x128xf32>
      %cst_30 = arith.constant 1.000000e+00 : f32
      %60 = vector.broadcast %cst_30 : f32 to vector<8x128xf32>
      %61 = arith.addf %60, %59 : vector<8x128xf32>
      %62 = arith.divf %60, %61 : vector<8x128xf32>
      %63 = vector.extract_strided_slice %39 {offsets = [0, 256], sizes = [8, 128], strides = [1, 1]} : vector<8x384xf32> to vector<8x128xf32>
      %64 = vector.extract_strided_slice %46 {offsets = [0, 256], sizes = [8, 128], strides = [1, 1]} : vector<8x384xf32> to vector<8x128xf32>
      %65 = arith.addf %64, %25 : vector<8x128xf32>
      %66 = arith.mulf %54, %65 : vector<8x128xf32>
      %67 = arith.addf %63, %66 : vector<8x128xf32>
      %68 = math.tanh %67 : vector<8x128xf32>
      %cst_31 = arith.constant 1.000000e+00 : f32
      %69 = vector.broadcast %cst_31 : f32 to vector<8x128xf32>
      %70 = arith.subf %69, %62 : vector<8x128xf32>
      %71 = arith.mulf %70, %68 : vector<8x128xf32>
      %72 = arith.mulf %62, %29 : vector<8x128xf32>
      %73 = arith.addf %71, %72 : vector<8x128xf32>
      %74 = arith.truncf %30 : vector<8x128xf32> to vector<8x128xbf16>
      %c0_32 = arith.constant 0 : index
      %c0_33 = arith.constant 0 : index
      %75 = vector.load %arg8[%c0_32, %c0_33] : memref<128x384xbf16, #tpu.memory_space<vmem>>, vector<128x384xbf16>
      %cst_34 = arith.constant dense<0.000000e+00> : vector<8x384xf32>
      %76 = tpu.matmul %74, %75, %cst_34 {dimension_numbers = #tpu.dot_dimension_numbers<[1], [0], [0], [1], [0, 0, 1, 1], [], []>} : vector<8x128xbf16>, vector<128x384xbf16>, vector<8x384xf32> -> vector<8x384xf32>
      %77 = vector.extract_strided_slice %43 {offsets = [0, 0], sizes = [8, 128], strides = [1, 1]} : vector<8x384xf32> to vector<8x128xf32>
      %78 = vector.extract_strided_slice %76 {offsets = [0, 0], sizes = [8, 128], strides = [1, 1]} : vector<8x384xf32> to vector<8x128xf32>
      %79 = arith.addf %77, %78 : vector<8x128xf32>
      %80 = arith.negf %79 : vector<8x128xf32>
      %81 = math.exp %80 : vector<8x128xf32>
      %cst_35 = arith.constant 1.000000e+00 : f32
      %82 = vector.broadcast %cst_35 : f32 to vector<8x128xf32>
      %83 = arith.addf %82, %81 : vector<8x128xf32>
      %84 = arith.divf %82, %83 : vector<8x128xf32>
      %85 = vector.extract_strided_slice %43 {offsets = [0, 128], sizes = [8, 128], strides = [1, 1]} : vector<8x384xf32> to vector<8x128xf32>
      %86 = vector.extract_strided_slice %76 {offsets = [0, 128], sizes = [8, 128], strides = [1, 1]} : vector<8x384xf32> to vector<8x128xf32>
      %87 = arith.addf %85, %86 : vector<8x128xf32>
      %88 = arith.negf %87 : vector<8x128xf32>
      %89 = math.exp %88 : vector<8x128xf32>
      %cst_36 = arith.constant 1.000000e+00 : f32
      %90 = vector.broadcast %cst_36 : f32 to vector<8x128xf32>
      %91 = arith.addf %90, %89 : vector<8x128xf32>
      %92 = arith.divf %90, %91 : vector<8x128xf32>
      %93 = vector.extract_strided_slice %43 {offsets = [0, 256], sizes = [8, 128], strides = [1, 1]} : vector<8x384xf32> to vector<8x128xf32>
      %94 = vector.extract_strided_slice %76 {offsets = [0, 256], sizes = [8, 128], strides = [1, 1]} : vector<8x384xf32> to vector<8x128xf32>
      %95 = arith.addf %94, %28 : vector<8x128xf32>
      %96 = arith.mulf %84, %95 : vector<8x128xf32>
      %97 = arith.addf %93, %96 : vector<8x128xf32>
      %98 = math.tanh %97 : vector<8x128xf32>
      %cst_37 = arith.constant 1.000000e+00 : f32
      %99 = vector.broadcast %cst_37 : f32 to vector<8x128xf32>
      %100 = arith.subf %99, %92 : vector<8x128xf32>
      %101 = arith.mulf %100, %98 : vector<8x128xf32>
      %102 = arith.mulf %92, %30 : vector<8x128xf32>
      %103 = arith.addf %101, %102 : vector<8x128xf32>
      %c1_i32_38 = arith.constant 1 : i32
      %c8_i32_39 = arith.constant 8 : i32
      %104 = arith.muli %c1_i32_38, %c8_i32_39 : i32
      %105 = tpu.assume_multiple %104, 8 : i32
      %c7_i32_40 = arith.constant 7 : i32
      %106 = arith.subi %c7_i32_40, %c1_i32_38 : i32
      %c8_i32_41 = arith.constant 8 : i32
      %107 = arith.muli %106, %c8_i32_41 : i32
      %108 = tpu.assume_multiple %107, 8 : i32
      %c0_i32_42 = arith.constant 0 : i32
      %c0_i32_43 = arith.constant 0 : i32
      %109 = tpu.memref_slice %arg14[%10, %c0_i32_42, %c0_i32_43] : memref<2x64x384xf32, #tpu.memory_space<vmem>> -> memref<1x64x384xf32, #tpu.memory_space<vmem>>
      %110 = tpu.memref_squeeze %109 : memref<1x64x384xf32, #tpu.memory_space<vmem>> -> memref<64x384xf32, #tpu.memory_space<vmem>>
      %111 = arith.index_cast %105 : i32 to index
      %c0_44 = arith.constant 0 : index
      %112 = vector.load %110[%111, %c0_44] : memref<64x384xf32, #tpu.memory_space<vmem>>, vector<8x384xf32>
      %c0_i32_45 = arith.constant 0 : i32
      %c0_i32_46 = arith.constant 0 : i32
      %113 = tpu.memref_slice %arg15[%10, %c0_i32_45, %c0_i32_46] : memref<2x64x384xf32, #tpu.memory_space<vmem>> -> memref<1x64x384xf32, #tpu.memory_space<vmem>>
      %114 = tpu.memref_squeeze %113 : memref<1x64x384xf32, #tpu.memory_space<vmem>> -> memref<64x384xf32, #tpu.memory_space<vmem>>
      %115 = arith.index_cast %108 : i32 to index
      %c0_47 = arith.constant 0 : index
      %116 = vector.load %114[%115, %c0_47] : memref<64x384xf32, #tpu.memory_space<vmem>>, vector<8x384xf32>
      %117 = arith.truncf %73 : vector<8x128xf32> to vector<8x128xbf16>
      %c0_48 = arith.constant 0 : index
      %c0_49 = arith.constant 0 : index
      %118 = vector.load %arg4[%c0_48, %c0_49] : memref<128x384xbf16, #tpu.memory_space<vmem>>, vector<128x384xbf16>
      %cst_50 = arith.constant dense<0.000000e+00> : vector<8x384xf32>
      %119 = tpu.matmul %117, %118, %cst_50 {dimension_numbers = #tpu.dot_dimension_numbers<[1], [0], [0], [1], [0, 0, 1, 1], [], []>} : vector<8x128xbf16>, vector<128x384xbf16>, vector<8x384xf32> -> vector<8x384xf32>
      %120 = vector.extract_strided_slice %112 {offsets = [0, 0], sizes = [8, 128], strides = [1, 1]} : vector<8x384xf32> to vector<8x128xf32>
      %121 = vector.extract_strided_slice %119 {offsets = [0, 0], sizes = [8, 128], strides = [1, 1]} : vector<8x384xf32> to vector<8x128xf32>
      %122 = arith.addf %120, %121 : vector<8x128xf32>
      %123 = arith.negf %122 : vector<8x128xf32>
      %124 = math.exp %123 : vector<8x128xf32>
      %cst_51 = arith.constant 1.000000e+00 : f32
      %125 = vector.broadcast %cst_51 : f32 to vector<8x128xf32>
      %126 = arith.addf %125, %124 : vector<8x128xf32>
      %127 = arith.divf %125, %126 : vector<8x128xf32>
      %128 = vector.extract_strided_slice %112 {offsets = [0, 128], sizes = [8, 128], strides = [1, 1]} : vector<8x384xf32> to vector<8x128xf32>
      %129 = vector.extract_strided_slice %119 {offsets = [0, 128], sizes = [8, 128], strides = [1, 1]} : vector<8x384xf32> to vector<8x128xf32>
      %130 = arith.addf %128, %129 : vector<8x128xf32>
      %131 = arith.negf %130 : vector<8x128xf32>
      %132 = math.exp %131 : vector<8x128xf32>
      %cst_52 = arith.constant 1.000000e+00 : f32
      %133 = vector.broadcast %cst_52 : f32 to vector<8x128xf32>
      %134 = arith.addf %133, %132 : vector<8x128xf32>
      %135 = arith.divf %133, %134 : vector<8x128xf32>
      %136 = vector.extract_strided_slice %112 {offsets = [0, 256], sizes = [8, 128], strides = [1, 1]} : vector<8x384xf32> to vector<8x128xf32>
      %137 = vector.extract_strided_slice %119 {offsets = [0, 256], sizes = [8, 128], strides = [1, 1]} : vector<8x384xf32> to vector<8x128xf32>
      %138 = arith.addf %137, %25 : vector<8x128xf32>
      %139 = arith.mulf %127, %138 : vector<8x128xf32>
      %140 = arith.addf %136, %139 : vector<8x128xf32>
      %141 = math.tanh %140 : vector<8x128xf32>
      %cst_53 = arith.constant 1.000000e+00 : f32
      %142 = vector.broadcast %cst_53 : f32 to vector<8x128xf32>
      %143 = arith.subf %142, %135 : vector<8x128xf32>
      %144 = arith.mulf %143, %141 : vector<8x128xf32>
      %145 = arith.mulf %135, %73 : vector<8x128xf32>
      %146 = arith.addf %144, %145 : vector<8x128xf32>
      %147 = arith.truncf %103 : vector<8x128xf32> to vector<8x128xbf16>
      %c0_54 = arith.constant 0 : index
      %c0_55 = arith.constant 0 : index
      %148 = vector.load %arg8[%c0_54, %c0_55] : memref<128x384xbf16, #tpu.memory_space<vmem>>, vector<128x384xbf16>
      %cst_56 = arith.constant dense<0.000000e+00> : vector<8x384xf32>
      %149 = tpu.matmul %147, %148, %cst_56 {dimension_numbers = #tpu.dot_dimension_numbers<[1], [0], [0], [1], [0, 0, 1, 1], [], []>} : vector<8x128xbf16>, vector<128x384xbf16>, vector<8x384xf32> -> vector<8x384xf32>
      %150 = vector.extract_strided_slice %116 {offsets = [0, 0], sizes = [8, 128], strides = [1, 1]} : vector<8x384xf32> to vector<8x128xf32>
      %151 = vector.extract_strided_slice %149 {offsets = [0, 0], sizes = [8, 128], strides = [1, 1]} : vector<8x384xf32> to vector<8x128xf32>
      %152 = arith.addf %150, %151 : vector<8x128xf32>
      %153 = arith.negf %152 : vector<8x128xf32>
      %154 = math.exp %153 : vector<8x128xf32>
      %cst_57 = arith.constant 1.000000e+00 : f32
      %155 = vector.broadcast %cst_57 : f32 to vector<8x128xf32>
      %156 = arith.addf %155, %154 : vector<8x128xf32>
      %157 = arith.divf %155, %156 : vector<8x128xf32>
      %158 = vector.extract_strided_slice %116 {offsets = [0, 128], sizes = [8, 128], strides = [1, 1]} : vector<8x384xf32> to vector<8x128xf32>
      %159 = vector.extract_strided_slice %149 {offsets = [0, 128], sizes = [8, 128], strides = [1, 1]} : vector<8x384xf32> to vector<8x128xf32>
      %160 = arith.addf %158, %159 : vector<8x128xf32>
      %161 = arith.negf %160 : vector<8x128xf32>
      %162 = math.exp %161 : vector<8x128xf32>
      %cst_58 = arith.constant 1.000000e+00 : f32
      %163 = vector.broadcast %cst_58 : f32 to vector<8x128xf32>
      %164 = arith.addf %163, %162 : vector<8x128xf32>
      %165 = arith.divf %163, %164 : vector<8x128xf32>
      %166 = vector.extract_strided_slice %116 {offsets = [0, 256], sizes = [8, 128], strides = [1, 1]} : vector<8x384xf32> to vector<8x128xf32>
      %167 = vector.extract_strided_slice %149 {offsets = [0, 256], sizes = [8, 128], strides = [1, 1]} : vector<8x384xf32> to vector<8x128xf32>
      %168 = arith.addf %167, %28 : vector<8x128xf32>
      %169 = arith.mulf %157, %168 : vector<8x128xf32>
      %170 = arith.addf %166, %169 : vector<8x128xf32>
      %171 = math.tanh %170 : vector<8x128xf32>
      %cst_59 = arith.constant 1.000000e+00 : f32
      %172 = vector.broadcast %cst_59 : f32 to vector<8x128xf32>
      %173 = arith.subf %172, %165 : vector<8x128xf32>
      %174 = arith.mulf %173, %171 : vector<8x128xf32>
      %175 = arith.mulf %165, %103 : vector<8x128xf32>
      %176 = arith.addf %174, %175 : vector<8x128xf32>
      %c2_i32_60 = arith.constant 2 : i32
      %c8_i32_61 = arith.constant 8 : i32
      %177 = arith.muli %c2_i32_60, %c8_i32_61 : i32
      %178 = tpu.assume_multiple %177, 8 : i32
      %c7_i32_62 = arith.constant 7 : i32
      %179 = arith.subi %c7_i32_62, %c2_i32_60 : i32
      %c8_i32_63 = arith.constant 8 : i32
      %180 = arith.muli %179, %c8_i32_63 : i32
      %181 = tpu.assume_multiple %180, 8 : i32
      %c0_i32_64 = arith.constant 0 : i32
      %c0_i32_65 = arith.constant 0 : i32
      %182 = tpu.memref_slice %arg14[%10, %c0_i32_64, %c0_i32_65] : memref<2x64x384xf32, #tpu.memory_space<vmem>> -> memref<1x64x384xf32, #tpu.memory_space<vmem>>
      %183 = tpu.memref_squeeze %182 : memref<1x64x384xf32, #tpu.memory_space<vmem>> -> memref<64x384xf32, #tpu.memory_space<vmem>>
      %184 = arith.index_cast %178 : i32 to index
      %c0_66 = arith.constant 0 : index
      %185 = vector.load %183[%184, %c0_66] : memref<64x384xf32, #tpu.memory_space<vmem>>, vector<8x384xf32>
      %c0_i32_67 = arith.constant 0 : i32
      %c0_i32_68 = arith.constant 0 : i32
      %186 = tpu.memref_slice %arg15[%10, %c0_i32_67, %c0_i32_68] : memref<2x64x384xf32, #tpu.memory_space<vmem>> -> memref<1x64x384xf32, #tpu.memory_space<vmem>>
      %187 = tpu.memref_squeeze %186 : memref<1x64x384xf32, #tpu.memory_space<vmem>> -> memref<64x384xf32, #tpu.memory_space<vmem>>
      %188 = arith.index_cast %181 : i32 to index
      %c0_69 = arith.constant 0 : index
      %189 = vector.load %187[%188, %c0_69] : memref<64x384xf32, #tpu.memory_space<vmem>>, vector<8x384xf32>
      %190 = arith.truncf %146 : vector<8x128xf32> to vector<8x128xbf16>
      %c0_70 = arith.constant 0 : index
      %c0_71 = arith.constant 0 : index
      %191 = vector.load %arg4[%c0_70, %c0_71] : memref<128x384xbf16, #tpu.memory_space<vmem>>, vector<128x384xbf16>
      %cst_72 = arith.constant dense<0.000000e+00> : vector<8x384xf32>
      %192 = tpu.matmul %190, %191, %cst_72 {dimension_numbers = #tpu.dot_dimension_numbers<[1], [0], [0], [1], [0, 0, 1, 1], [], []>} : vector<8x128xbf16>, vector<128x384xbf16>, vector<8x384xf32> -> vector<8x384xf32>
      %193 = vector.extract_strided_slice %185 {offsets = [0, 0], sizes = [8, 128], strides = [1, 1]} : vector<8x384xf32> to vector<8x128xf32>
      %194 = vector.extract_strided_slice %192 {offsets = [0, 0], sizes = [8, 128], strides = [1, 1]} : vector<8x384xf32> to vector<8x128xf32>
      %195 = arith.addf %193, %194 : vector<8x128xf32>
      %196 = arith.negf %195 : vector<8x128xf32>
      %197 = math.exp %196 : vector<8x128xf32>
      %cst_73 = arith.constant 1.000000e+00 : f32
      %198 = vector.broadcast %cst_73 : f32 to vector<8x128xf32>
      %199 = arith.addf %198, %197 : vector<8x128xf32>
      %200 = arith.divf %198, %199 : vector<8x128xf32>
      %201 = vector.extract_strided_slice %185 {offsets = [0, 128], sizes = [8, 128], strides = [1, 1]} : vector<8x384xf32> to vector<8x128xf32>
      %202 = vector.extract_strided_slice %192 {offsets = [0, 128], sizes = [8, 128], strides = [1, 1]} : vector<8x384xf32> to vector<8x128xf32>
      %203 = arith.addf %201, %202 : vector<8x128xf32>
      %204 = arith.negf %203 : vector<8x128xf32>
      %205 = math.exp %204 : vector<8x128xf32>
      %cst_74 = arith.constant 1.000000e+00 : f32
      %206 = vector.broadcast %cst_74 : f32 to vector<8x128xf32>
      %207 = arith.addf %206, %205 : vector<8x128xf32>
      %208 = arith.divf %206, %207 : vector<8x128xf32>
      %209 = vector.extract_strided_slice %185 {offsets = [0, 256], sizes = [8, 128], strides = [1, 1]} : vector<8x384xf32> to vector<8x128xf32>
      %210 = vector.extract_strided_slice %192 {offsets = [0, 256], sizes = [8, 128], strides = [1, 1]} : vector<8x384xf32> to vector<8x128xf32>
      %211 = arith.addf %210, %25 : vector<8x128xf32>
      %212 = arith.mulf %200, %211 : vector<8x128xf32>
      %213 = arith.addf %209, %212 : vector<8x128xf32>
      %214 = math.tanh %213 : vector<8x128xf32>
      %cst_75 = arith.constant 1.000000e+00 : f32
      %215 = vector.broadcast %cst_75 : f32 to vector<8x128xf32>
      %216 = arith.subf %215, %208 : vector<8x128xf32>
      %217 = arith.mulf %216, %214 : vector<8x128xf32>
      %218 = arith.mulf %208, %146 : vector<8x128xf32>
      %219 = arith.addf %217, %218 : vector<8x128xf32>
      %220 = arith.truncf %176 : vector<8x128xf32> to vector<8x128xbf16>
      %c0_76 = arith.constant 0 : index
      %c0_77 = arith.constant 0 : index
      %221 = vector.load %arg8[%c0_76, %c0_77] : memref<128x384xbf16, #tpu.memory_space<vmem>>, vector<128x384xbf16>
      %cst_78 = arith.constant dense<0.000000e+00> : vector<8x384xf32>
      %222 = tpu.matmul %220, %221, %cst_78 {dimension_numbers = #tpu.dot_dimension_numbers<[1], [0], [0], [1], [0, 0, 1, 1], [], []>} : vector<8x128xbf16>, vector<128x384xbf16>, vector<8x384xf32> -> vector<8x384xf32>
      %223 = vector.extract_strided_slice %189 {offsets = [0, 0], sizes = [8, 128], strides = [1, 1]} : vector<8x384xf32> to vector<8x128xf32>
      %224 = vector.extract_strided_slice %222 {offsets = [0, 0], sizes = [8, 128], strides = [1, 1]} : vector<8x384xf32> to vector<8x128xf32>
      %225 = arith.addf %223, %224 : vector<8x128xf32>
      %226 = arith.negf %225 : vector<8x128xf32>
      %227 = math.exp %226 : vector<8x128xf32>
      %cst_79 = arith.constant 1.000000e+00 : f32
      %228 = vector.broadcast %cst_79 : f32 to vector<8x128xf32>
      %229 = arith.addf %228, %227 : vector<8x128xf32>
      %230 = arith.divf %228, %229 : vector<8x128xf32>
      %231 = vector.extract_strided_slice %189 {offsets = [0, 128], sizes = [8, 128], strides = [1, 1]} : vector<8x384xf32> to vector<8x128xf32>
      %232 = vector.extract_strided_slice %222 {offsets = [0, 128], sizes = [8, 128], strides = [1, 1]} : vector<8x384xf32> to vector<8x128xf32>
      %233 = arith.addf %231, %232 : vector<8x128xf32>
      %234 = arith.negf %233 : vector<8x128xf32>
      %235 = math.exp %234 : vector<8x128xf32>
      %cst_80 = arith.constant 1.000000e+00 : f32
      %236 = vector.broadcast %cst_80 : f32 to vector<8x128xf32>
      %237 = arith.addf %236, %235 : vector<8x128xf32>
      %238 = arith.divf %236, %237 : vector<8x128xf32>
      %239 = vector.extract_strided_slice %189 {offsets = [0, 256], sizes = [8, 128], strides = [1, 1]} : vector<8x384xf32> to vector<8x128xf32>
      %240 = vector.extract_strided_slice %222 {offsets = [0, 256], sizes = [8, 128], strides = [1, 1]} : vector<8x384xf32> to vector<8x128xf32>
      %241 = arith.addf %240, %28 : vector<8x128xf32>
      %242 = arith.mulf %230, %241 : vector<8x128xf32>
      %243 = arith.addf %239, %242 : vector<8x128xf32>
      %244 = math.tanh %243 : vector<8x128xf32>
      %cst_81 = arith.constant 1.000000e+00 : f32
      %245 = vector.broadcast %cst_81 : f32 to vector<8x128xf32>
      %246 = arith.subf %245, %238 : vector<8x128xf32>
      %247 = arith.mulf %246, %244 : vector<8x128xf32>
      %248 = arith.mulf %238, %176 : vector<8x128xf32>
      %249 = arith.addf %247, %248 : vector<8x128xf32>
      %c3_i32 = arith.constant 3 : i32
      %c8_i32_82 = arith.constant 8 : i32
      %250 = arith.muli %c3_i32, %c8_i32_82 : i32
      %251 = tpu.assume_multiple %250, 8 : i32
      %c7_i32_83 = arith.constant 7 : i32
      %252 = arith.subi %c7_i32_83, %c3_i32 : i32
      %c8_i32_84 = arith.constant 8 : i32
      %253 = arith.muli %252, %c8_i32_84 : i32
      %254 = tpu.assume_multiple %253, 8 : i32
      %c0_i32_85 = arith.constant 0 : i32
      %c0_i32_86 = arith.constant 0 : i32
      %255 = tpu.memref_slice %arg14[%10, %c0_i32_85, %c0_i32_86] : memref<2x64x384xf32, #tpu.memory_space<vmem>> -> memref<1x64x384xf32, #tpu.memory_space<vmem>>
      %256 = tpu.memref_squeeze %255 : memref<1x64x384xf32, #tpu.memory_space<vmem>> -> memref<64x384xf32, #tpu.memory_space<vmem>>
      %257 = arith.index_cast %251 : i32 to index
      %c0_87 = arith.constant 0 : index
      %258 = vector.load %256[%257, %c0_87] : memref<64x384xf32, #tpu.memory_space<vmem>>, vector<8x384xf32>
      %c0_i32_88 = arith.constant 0 : i32
      %c0_i32_89 = arith.constant 0 : i32
      %259 = tpu.memref_slice %arg15[%10, %c0_i32_88, %c0_i32_89] : memref<2x64x384xf32, #tpu.memory_space<vmem>> -> memref<1x64x384xf32, #tpu.memory_space<vmem>>
      %260 = tpu.memref_squeeze %259 : memref<1x64x384xf32, #tpu.memory_space<vmem>> -> memref<64x384xf32, #tpu.memory_space<vmem>>
      %261 = arith.index_cast %254 : i32 to index
      %c0_90 = arith.constant 0 : index
      %262 = vector.load %260[%261, %c0_90] : memref<64x384xf32, #tpu.memory_space<vmem>>, vector<8x384xf32>
      %263 = arith.truncf %219 : vector<8x128xf32> to vector<8x128xbf16>
      %c0_91 = arith.constant 0 : index
      %c0_92 = arith.constant 0 : index
      %264 = vector.load %arg4[%c0_91, %c0_92] : memref<128x384xbf16, #tpu.memory_space<vmem>>, vector<128x384xbf16>
      %cst_93 = arith.constant dense<0.000000e+00> : vector<8x384xf32>
      %265 = tpu.matmul %263, %264, %cst_93 {dimension_numbers = #tpu.dot_dimension_numbers<[1], [0], [0], [1], [0, 0, 1, 1], [], []>} : vector<8x128xbf16>, vector<128x384xbf16>, vector<8x384xf32> -> vector<8x384xf32>
      %266 = vector.extract_strided_slice %258 {offsets = [0, 0], sizes = [8, 128], strides = [1, 1]} : vector<8x384xf32> to vector<8x128xf32>
      %267 = vector.extract_strided_slice %265 {offsets = [0, 0], sizes = [8, 128], strides = [1, 1]} : vector<8x384xf32> to vector<8x128xf32>
      %268 = arith.addf %266, %267 : vector<8x128xf32>
      %269 = arith.negf %268 : vector<8x128xf32>
      %270 = math.exp %269 : vector<8x128xf32>
      %cst_94 = arith.constant 1.000000e+00 : f32
      %271 = vector.broadcast %cst_94 : f32 to vector<8x128xf32>
      %272 = arith.addf %271, %270 : vector<8x128xf32>
      %273 = arith.divf %271, %272 : vector<8x128xf32>
      %274 = vector.extract_strided_slice %258 {offsets = [0, 128], sizes = [8, 128], strides = [1, 1]} : vector<8x384xf32> to vector<8x128xf32>
      %275 = vector.extract_strided_slice %265 {offsets = [0, 128], sizes = [8, 128], strides = [1, 1]} : vector<8x384xf32> to vector<8x128xf32>
      %276 = arith.addf %274, %275 : vector<8x128xf32>
      %277 = arith.negf %276 : vector<8x128xf32>
      %278 = math.exp %277 : vector<8x128xf32>
      %cst_95 = arith.constant 1.000000e+00 : f32
      %279 = vector.broadcast %cst_95 : f32 to vector<8x128xf32>
      %280 = arith.addf %279, %278 : vector<8x128xf32>
      %281 = arith.divf %279, %280 : vector<8x128xf32>
      %282 = vector.extract_strided_slice %258 {offsets = [0, 256], sizes = [8, 128], strides = [1, 1]} : vector<8x384xf32> to vector<8x128xf32>
      %283 = vector.extract_strided_slice %265 {offsets = [0, 256], sizes = [8, 128], strides = [1, 1]} : vector<8x384xf32> to vector<8x128xf32>
      %284 = arith.addf %283, %25 : vector<8x128xf32>
      %285 = arith.mulf %273, %284 : vector<8x128xf32>
      %286 = arith.addf %282, %285 : vector<8x128xf32>
      %287 = math.tanh %286 : vector<8x128xf32>
      %cst_96 = arith.constant 1.000000e+00 : f32
      %288 = vector.broadcast %cst_96 : f32 to vector<8x128xf32>
      %289 = arith.subf %288, %281 : vector<8x128xf32>
      %290 = arith.mulf %289, %287 : vector<8x128xf32>
      %291 = arith.mulf %281, %219 : vector<8x128xf32>
      %292 = arith.addf %290, %291 : vector<8x128xf32>
      %293 = arith.truncf %249 : vector<8x128xf32> to vector<8x128xbf16>
      %c0_97 = arith.constant 0 : index
      %c0_98 = arith.constant 0 : index
      %294 = vector.load %arg8[%c0_97, %c0_98] : memref<128x384xbf16, #tpu.memory_space<vmem>>, vector<128x384xbf16>
      %cst_99 = arith.constant dense<0.000000e+00> : vector<8x384xf32>
      %295 = tpu.matmul %293, %294, %cst_99 {dimension_numbers = #tpu.dot_dimension_numbers<[1], [0], [0], [1], [0, 0, 1, 1], [], []>} : vector<8x128xbf16>, vector<128x384xbf16>, vector<8x384xf32> -> vector<8x384xf32>
      %296 = vector.extract_strided_slice %262 {offsets = [0, 0], sizes = [8, 128], strides = [1, 1]} : vector<8x384xf32> to vector<8x128xf32>
      %297 = vector.extract_strided_slice %295 {offsets = [0, 0], sizes = [8, 128], strides = [1, 1]} : vector<8x384xf32> to vector<8x128xf32>
      %298 = arith.addf %296, %297 : vector<8x128xf32>
      %299 = arith.negf %298 : vector<8x128xf32>
      %300 = math.exp %299 : vector<8x128xf32>
      %cst_100 = arith.constant 1.000000e+00 : f32
      %301 = vector.broadcast %cst_100 : f32 to vector<8x128xf32>
      %302 = arith.addf %301, %300 : vector<8x128xf32>
      %303 = arith.divf %301, %302 : vector<8x128xf32>
      %304 = vector.extract_strided_slice %262 {offsets = [0, 128], sizes = [8, 128], strides = [1, 1]} : vector<8x384xf32> to vector<8x128xf32>
      %305 = vector.extract_strided_slice %295 {offsets = [0, 128], sizes = [8, 128], strides = [1, 1]} : vector<8x384xf32> to vector<8x128xf32>
      %306 = arith.addf %304, %305 : vector<8x128xf32>
      %307 = arith.negf %306 : vector<8x128xf32>
      %308 = math.exp %307 : vector<8x128xf32>
      %cst_101 = arith.constant 1.000000e+00 : f32
      %309 = vector.broadcast %cst_101 : f32 to vector<8x128xf32>
      %310 = arith.addf %309, %308 : vector<8x128xf32>
      %311 = arith.divf %309, %310 : vector<8x128xf32>
      %312 = vector.extract_strided_slice %262 {offsets = [0, 256], sizes = [8, 128], strides = [1, 1]} : vector<8x384xf32> to vector<8x128xf32>
      %313 = vector.extract_strided_slice %295 {offsets = [0, 256], sizes = [8, 128], strides = [1, 1]} : vector<8x384xf32> to vector<8x128xf32>
      %314 = arith.addf %313, %28 : vector<8x128xf32>
      %315 = arith.mulf %303, %314 : vector<8x128xf32>
      %316 = arith.addf %312, %315 : vector<8x128xf32>
      %317 = math.tanh %316 : vector<8x128xf32>
      %cst_102 = arith.constant 1.000000e+00 : f32
      %318 = vector.broadcast %cst_102 : f32 to vector<8x128xf32>
      %319 = arith.subf %318, %311 : vector<8x128xf32>
      %320 = arith.mulf %319, %317 : vector<8x128xf32>
      %321 = arith.mulf %311, %249 : vector<8x128xf32>
      %322 = arith.addf %320, %321 : vector<8x128xf32>
      %c4_i32 = arith.constant 4 : i32
      %c8_i32_103 = arith.constant 8 : i32
      %323 = arith.muli %c4_i32, %c8_i32_103 : i32
      %324 = tpu.assume_multiple %323, 8 : i32
      %c7_i32_104 = arith.constant 7 : i32
      %325 = arith.subi %c7_i32_104, %c4_i32 : i32
      %c8_i32_105 = arith.constant 8 : i32
      %326 = arith.muli %325, %c8_i32_105 : i32
      %327 = tpu.assume_multiple %326, 8 : i32
      %c0_i32_106 = arith.constant 0 : i32
      %c0_i32_107 = arith.constant 0 : i32
      %328 = tpu.memref_slice %arg14[%10, %c0_i32_106, %c0_i32_107] : memref<2x64x384xf32, #tpu.memory_space<vmem>> -> memref<1x64x384xf32, #tpu.memory_space<vmem>>
      %329 = tpu.memref_squeeze %328 : memref<1x64x384xf32, #tpu.memory_space<vmem>> -> memref<64x384xf32, #tpu.memory_space<vmem>>
      %330 = arith.index_cast %324 : i32 to index
      %c0_108 = arith.constant 0 : index
      %331 = vector.load %329[%330, %c0_108] : memref<64x384xf32, #tpu.memory_space<vmem>>, vector<8x384xf32>
      %c0_i32_109 = arith.constant 0 : i32
      %c0_i32_110 = arith.constant 0 : i32
      %332 = tpu.memref_slice %arg15[%10, %c0_i32_109, %c0_i32_110] : memref<2x64x384xf32, #tpu.memory_space<vmem>> -> memref<1x64x384xf32, #tpu.memory_space<vmem>>
      %333 = tpu.memref_squeeze %332 : memref<1x64x384xf32, #tpu.memory_space<vmem>> -> memref<64x384xf32, #tpu.memory_space<vmem>>
      %334 = arith.index_cast %327 : i32 to index
      %c0_111 = arith.constant 0 : index
      %335 = vector.load %333[%334, %c0_111] : memref<64x384xf32, #tpu.memory_space<vmem>>, vector<8x384xf32>
      %336 = arith.truncf %292 : vector<8x128xf32> to vector<8x128xbf16>
      %c0_112 = arith.constant 0 : index
      %c0_113 = arith.constant 0 : index
      %337 = vector.load %arg4[%c0_112, %c0_113] : memref<128x384xbf16, #tpu.memory_space<vmem>>, vector<128x384xbf16>
      %cst_114 = arith.constant dense<0.000000e+00> : vector<8x384xf32>
      %338 = tpu.matmul %336, %337, %cst_114 {dimension_numbers = #tpu.dot_dimension_numbers<[1], [0], [0], [1], [0, 0, 1, 1], [], []>} : vector<8x128xbf16>, vector<128x384xbf16>, vector<8x384xf32> -> vector<8x384xf32>
      %339 = vector.extract_strided_slice %331 {offsets = [0, 0], sizes = [8, 128], strides = [1, 1]} : vector<8x384xf32> to vector<8x128xf32>
      %340 = vector.extract_strided_slice %338 {offsets = [0, 0], sizes = [8, 128], strides = [1, 1]} : vector<8x384xf32> to vector<8x128xf32>
      %341 = arith.addf %339, %340 : vector<8x128xf32>
      %342 = arith.negf %341 : vector<8x128xf32>
      %343 = math.exp %342 : vector<8x128xf32>
      %cst_115 = arith.constant 1.000000e+00 : f32
      %344 = vector.broadcast %cst_115 : f32 to vector<8x128xf32>
      %345 = arith.addf %344, %343 : vector<8x128xf32>
      %346 = arith.divf %344, %345 : vector<8x128xf32>
      %347 = vector.extract_strided_slice %331 {offsets = [0, 128], sizes = [8, 128], strides = [1, 1]} : vector<8x384xf32> to vector<8x128xf32>
      %348 = vector.extract_strided_slice %338 {offsets = [0, 128], sizes = [8, 128], strides = [1, 1]} : vector<8x384xf32> to vector<8x128xf32>
      %349 = arith.addf %347, %348 : vector<8x128xf32>
      %350 = arith.negf %349 : vector<8x128xf32>
      %351 = math.exp %350 : vector<8x128xf32>
      %cst_116 = arith.constant 1.000000e+00 : f32
      %352 = vector.broadcast %cst_116 : f32 to vector<8x128xf32>
      %353 = arith.addf %352, %351 : vector<8x128xf32>
      %354 = arith.divf %352, %353 : vector<8x128xf32>
      %355 = vector.extract_strided_slice %331 {offsets = [0, 256], sizes = [8, 128], strides = [1, 1]} : vector<8x384xf32> to vector<8x128xf32>
      %356 = vector.extract_strided_slice %338 {offsets = [0, 256], sizes = [8, 128], strides = [1, 1]} : vector<8x384xf32> to vector<8x128xf32>
      %357 = arith.addf %356, %25 : vector<8x128xf32>
      %358 = arith.mulf %346, %357 : vector<8x128xf32>
      %359 = arith.addf %355, %358 : vector<8x128xf32>
      %360 = math.tanh %359 : vector<8x128xf32>
      %cst_117 = arith.constant 1.000000e+00 : f32
      %361 = vector.broadcast %cst_117 : f32 to vector<8x128xf32>
      %362 = arith.subf %361, %354 : vector<8x128xf32>
      %363 = arith.mulf %362, %360 : vector<8x128xf32>
      %364 = arith.mulf %354, %292 : vector<8x128xf32>
      %365 = arith.addf %363, %364 : vector<8x128xf32>
      %366 = arith.truncf %322 : vector<8x128xf32> to vector<8x128xbf16>
      %c0_118 = arith.constant 0 : index
      %c0_119 = arith.constant 0 : index
      %367 = vector.load %arg8[%c0_118, %c0_119] : memref<128x384xbf16, #tpu.memory_space<vmem>>, vector<128x384xbf16>
      %cst_120 = arith.constant dense<0.000000e+00> : vector<8x384xf32>
      %368 = tpu.matmul %366, %367, %cst_120 {dimension_numbers = #tpu.dot_dimension_numbers<[1], [0], [0], [1], [0, 0, 1, 1], [], []>} : vector<8x128xbf16>, vector<128x384xbf16>, vector<8x384xf32> -> vector<8x384xf32>
      %369 = vector.extract_strided_slice %335 {offsets = [0, 0], sizes = [8, 128], strides = [1, 1]} : vector<8x384xf32> to vector<8x128xf32>
      %370 = vector.extract_strided_slice %368 {offsets = [0, 0], sizes = [8, 128], strides = [1, 1]} : vector<8x384xf32> to vector<8x128xf32>
      %371 = arith.addf %369, %370 : vector<8x128xf32>
      %372 = arith.negf %371 : vector<8x128xf32>
      %373 = math.exp %372 : vector<8x128xf32>
      %cst_121 = arith.constant 1.000000e+00 : f32
      %374 = vector.broadcast %cst_121 : f32 to vector<8x128xf32>
      %375 = arith.addf %374, %373 : vector<8x128xf32>
      %376 = arith.divf %374, %375 : vector<8x128xf32>
      %377 = vector.extract_strided_slice %335 {offsets = [0, 128], sizes = [8, 128], strides = [1, 1]} : vector<8x384xf32> to vector<8x128xf32>
      %378 = vector.extract_strided_slice %368 {offsets = [0, 128], sizes = [8, 128], strides = [1, 1]} : vector<8x384xf32> to vector<8x128xf32>
      %379 = arith.addf %377, %378 : vector<8x128xf32>
      %380 = arith.negf %379 : vector<8x128xf32>
      %381 = math.exp %380 : vector<8x128xf32>
      %cst_122 = arith.constant 1.000000e+00 : f32
      %382 = vector.broadcast %cst_122 : f32 to vector<8x128xf32>
      %383 = arith.addf %382, %381 : vector<8x128xf32>
      %384 = arith.divf %382, %383 : vector<8x128xf32>
      %385 = vector.extract_strided_slice %335 {offsets = [0, 256], sizes = [8, 128], strides = [1, 1]} : vector<8x384xf32> to vector<8x128xf32>
      %386 = vector.extract_strided_slice %368 {offsets = [0, 256], sizes = [8, 128], strides = [1, 1]} : vector<8x384xf32> to vector<8x128xf32>
      %387 = arith.addf %386, %28 : vector<8x128xf32>
      %388 = arith.mulf %376, %387 : vector<8x128xf32>
      %389 = arith.addf %385, %388 : vector<8x128xf32>
      %390 = math.tanh %389 : vector<8x128xf32>
      %cst_123 = arith.constant 1.000000e+00 : f32
      %391 = vector.broadcast %cst_123 : f32 to vector<8x128xf32>
      %392 = arith.subf %391, %384 : vector<8x128xf32>
      %393 = arith.mulf %392, %390 : vector<8x128xf32>
      %394 = arith.mulf %384, %322 : vector<8x128xf32>
      %395 = arith.addf %393, %394 : vector<8x128xf32>
      %c5_i32 = arith.constant 5 : i32
      %c8_i32_124 = arith.constant 8 : i32
      %396 = arith.muli %c5_i32, %c8_i32_124 : i32
      %397 = tpu.assume_multiple %396, 8 : i32
      %c7_i32_125 = arith.constant 7 : i32
      %398 = arith.subi %c7_i32_125, %c5_i32 : i32
      %c8_i32_126 = arith.constant 8 : i32
      %399 = arith.muli %398, %c8_i32_126 : i32
      %400 = tpu.assume_multiple %399, 8 : i32
      %c0_i32_127 = arith.constant 0 : i32
      %c0_i32_128 = arith.constant 0 : i32
      %401 = tpu.memref_slice %arg14[%10, %c0_i32_127, %c0_i32_128] : memref<2x64x384xf32, #tpu.memory_space<vmem>> -> memref<1x64x384xf32, #tpu.memory_space<vmem>>
      %402 = tpu.memref_squeeze %401 : memref<1x64x384xf32, #tpu.memory_space<vmem>> -> memref<64x384xf32, #tpu.memory_space<vmem>>
      %403 = arith.index_cast %397 : i32 to index
      %c0_129 = arith.constant 0 : index
      %404 = vector.load %402[%403, %c0_129] : memref<64x384xf32, #tpu.memory_space<vmem>>, vector<8x384xf32>
      %c0_i32_130 = arith.constant 0 : i32
      %c0_i32_131 = arith.constant 0 : i32
      %405 = tpu.memref_slice %arg15[%10, %c0_i32_130, %c0_i32_131] : memref<2x64x384xf32, #tpu.memory_space<vmem>> -> memref<1x64x384xf32, #tpu.memory_space<vmem>>
      %406 = tpu.memref_squeeze %405 : memref<1x64x384xf32, #tpu.memory_space<vmem>> -> memref<64x384xf32, #tpu.memory_space<vmem>>
      %407 = arith.index_cast %400 : i32 to index
      %c0_132 = arith.constant 0 : index
      %408 = vector.load %406[%407, %c0_132] : memref<64x384xf32, #tpu.memory_space<vmem>>, vector<8x384xf32>
      %409 = arith.truncf %365 : vector<8x128xf32> to vector<8x128xbf16>
      %c0_133 = arith.constant 0 : index
      %c0_134 = arith.constant 0 : index
      %410 = vector.load %arg4[%c0_133, %c0_134] : memref<128x384xbf16, #tpu.memory_space<vmem>>, vector<128x384xbf16>
      %cst_135 = arith.constant dense<0.000000e+00> : vector<8x384xf32>
      %411 = tpu.matmul %409, %410, %cst_135 {dimension_numbers = #tpu.dot_dimension_numbers<[1], [0], [0], [1], [0, 0, 1, 1], [], []>} : vector<8x128xbf16>, vector<128x384xbf16>, vector<8x384xf32> -> vector<8x384xf32>
      %412 = vector.extract_strided_slice %404 {offsets = [0, 0], sizes = [8, 128], strides = [1, 1]} : vector<8x384xf32> to vector<8x128xf32>
      %413 = vector.extract_strided_slice %411 {offsets = [0, 0], sizes = [8, 128], strides = [1, 1]} : vector<8x384xf32> to vector<8x128xf32>
      %414 = arith.addf %412, %413 : vector<8x128xf32>
      %415 = arith.negf %414 : vector<8x128xf32>
      %416 = math.exp %415 : vector<8x128xf32>
      %cst_136 = arith.constant 1.000000e+00 : f32
      %417 = vector.broadcast %cst_136 : f32 to vector<8x128xf32>
      %418 = arith.addf %417, %416 : vector<8x128xf32>
      %419 = arith.divf %417, %418 : vector<8x128xf32>
      %420 = vector.extract_strided_slice %404 {offsets = [0, 128], sizes = [8, 128], strides = [1, 1]} : vector<8x384xf32> to vector<8x128xf32>
      %421 = vector.extract_strided_slice %411 {offsets = [0, 128], sizes = [8, 128], strides = [1, 1]} : vector<8x384xf32> to vector<8x128xf32>
      %422 = arith.addf %420, %421 : vector<8x128xf32>
      %423 = arith.negf %422 : vector<8x128xf32>
      %424 = math.exp %423 : vector<8x128xf32>
      %cst_137 = arith.constant 1.000000e+00 : f32
      %425 = vector.broadcast %cst_137 : f32 to vector<8x128xf32>
      %426 = arith.addf %425, %424 : vector<8x128xf32>
      %427 = arith.divf %425, %426 : vector<8x128xf32>
      %428 = vector.extract_strided_slice %404 {offsets = [0, 256], sizes = [8, 128], strides = [1, 1]} : vector<8x384xf32> to vector<8x128xf32>
      %429 = vector.extract_strided_slice %411 {offsets = [0, 256], sizes = [8, 128], strides = [1, 1]} : vector<8x384xf32> to vector<8x128xf32>
      %430 = arith.addf %429, %25 : vector<8x128xf32>
      %431 = arith.mulf %419, %430 : vector<8x128xf32>
      %432 = arith.addf %428, %431 : vector<8x128xf32>
      %433 = math.tanh %432 : vector<8x128xf32>
      %cst_138 = arith.constant 1.000000e+00 : f32
      %434 = vector.broadcast %cst_138 : f32 to vector<8x128xf32>
      %435 = arith.subf %434, %427 : vector<8x128xf32>
      %436 = arith.mulf %435, %433 : vector<8x128xf32>
      %437 = arith.mulf %427, %365 : vector<8x128xf32>
      %438 = arith.addf %436, %437 : vector<8x128xf32>
      %439 = arith.truncf %395 : vector<8x128xf32> to vector<8x128xbf16>
      %c0_139 = arith.constant 0 : index
      %c0_140 = arith.constant 0 : index
      %440 = vector.load %arg8[%c0_139, %c0_140] : memref<128x384xbf16, #tpu.memory_space<vmem>>, vector<128x384xbf16>
      %cst_141 = arith.constant dense<0.000000e+00> : vector<8x384xf32>
      %441 = tpu.matmul %439, %440, %cst_141 {dimension_numbers = #tpu.dot_dimension_numbers<[1], [0], [0], [1], [0, 0, 1, 1], [], []>} : vector<8x128xbf16>, vector<128x384xbf16>, vector<8x384xf32> -> vector<8x384xf32>
      %442 = vector.extract_strided_slice %408 {offsets = [0, 0], sizes = [8, 128], strides = [1, 1]} : vector<8x384xf32> to vector<8x128xf32>
      %443 = vector.extract_strided_slice %441 {offsets = [0, 0], sizes = [8, 128], strides = [1, 1]} : vector<8x384xf32> to vector<8x128xf32>
      %444 = arith.addf %442, %443 : vector<8x128xf32>
      %445 = arith.negf %444 : vector<8x128xf32>
      %446 = math.exp %445 : vector<8x128xf32>
      %cst_142 = arith.constant 1.000000e+00 : f32
      %447 = vector.broadcast %cst_142 : f32 to vector<8x128xf32>
      %448 = arith.addf %447, %446 : vector<8x128xf32>
      %449 = arith.divf %447, %448 : vector<8x128xf32>
      %450 = vector.extract_strided_slice %408 {offsets = [0, 128], sizes = [8, 128], strides = [1, 1]} : vector<8x384xf32> to vector<8x128xf32>
      %451 = vector.extract_strided_slice %441 {offsets = [0, 128], sizes = [8, 128], strides = [1, 1]} : vector<8x384xf32> to vector<8x128xf32>
      %452 = arith.addf %450, %451 : vector<8x128xf32>
      %453 = arith.negf %452 : vector<8x128xf32>
      %454 = math.exp %453 : vector<8x128xf32>
      %cst_143 = arith.constant 1.000000e+00 : f32
      %455 = vector.broadcast %cst_143 : f32 to vector<8x128xf32>
      %456 = arith.addf %455, %454 : vector<8x128xf32>
      %457 = arith.divf %455, %456 : vector<8x128xf32>
      %458 = vector.extract_strided_slice %408 {offsets = [0, 256], sizes = [8, 128], strides = [1, 1]} : vector<8x384xf32> to vector<8x128xf32>
      %459 = vector.extract_strided_slice %441 {offsets = [0, 256], sizes = [8, 128], strides = [1, 1]} : vector<8x384xf32> to vector<8x128xf32>
      %460 = arith.addf %459, %28 : vector<8x128xf32>
      %461 = arith.mulf %449, %460 : vector<8x128xf32>
      %462 = arith.addf %458, %461 : vector<8x128xf32>
      %463 = math.tanh %462 : vector<8x128xf32>
      %cst_144 = arith.constant 1.000000e+00 : f32
      %464 = vector.broadcast %cst_144 : f32 to vector<8x128xf32>
      %465 = arith.subf %464, %457 : vector<8x128xf32>
      %466 = arith.mulf %465, %463 : vector<8x128xf32>
      %467 = arith.mulf %457, %395 : vector<8x128xf32>
      %468 = arith.addf %466, %467 : vector<8x128xf32>
      %c6_i32 = arith.constant 6 : i32
      %c8_i32_145 = arith.constant 8 : i32
      %469 = arith.muli %c6_i32, %c8_i32_145 : i32
      %470 = tpu.assume_multiple %469, 8 : i32
      %c7_i32_146 = arith.constant 7 : i32
      %471 = arith.subi %c7_i32_146, %c6_i32 : i32
      %c8_i32_147 = arith.constant 8 : i32
      %472 = arith.muli %471, %c8_i32_147 : i32
      %473 = tpu.assume_multiple %472, 8 : i32
      %c0_i32_148 = arith.constant 0 : i32
      %c0_i32_149 = arith.constant 0 : i32
      %474 = tpu.memref_slice %arg14[%10, %c0_i32_148, %c0_i32_149] : memref<2x64x384xf32, #tpu.memory_space<vmem>> -> memref<1x64x384xf32, #tpu.memory_space<vmem>>
      %475 = tpu.memref_squeeze %474 : memref<1x64x384xf32, #tpu.memory_space<vmem>> -> memref<64x384xf32, #tpu.memory_space<vmem>>
      %476 = arith.index_cast %470 : i32 to index
      %c0_150 = arith.constant 0 : index
      %477 = vector.load %475[%476, %c0_150] : memref<64x384xf32, #tpu.memory_space<vmem>>, vector<8x384xf32>
      %c0_i32_151 = arith.constant 0 : i32
      %c0_i32_152 = arith.constant 0 : i32
      %478 = tpu.memref_slice %arg15[%10, %c0_i32_151, %c0_i32_152] : memref<2x64x384xf32, #tpu.memory_space<vmem>> -> memref<1x64x384xf32, #tpu.memory_space<vmem>>
      %479 = tpu.memref_squeeze %478 : memref<1x64x384xf32, #tpu.memory_space<vmem>> -> memref<64x384xf32, #tpu.memory_space<vmem>>
      %480 = arith.index_cast %473 : i32 to index
      %c0_153 = arith.constant 0 : index
      %481 = vector.load %479[%480, %c0_153] : memref<64x384xf32, #tpu.memory_space<vmem>>, vector<8x384xf32>
      %482 = arith.truncf %438 : vector<8x128xf32> to vector<8x128xbf16>
      %c0_154 = arith.constant 0 : index
      %c0_155 = arith.constant 0 : index
      %483 = vector.load %arg4[%c0_154, %c0_155] : memref<128x384xbf16, #tpu.memory_space<vmem>>, vector<128x384xbf16>
      %cst_156 = arith.constant dense<0.000000e+00> : vector<8x384xf32>
      %484 = tpu.matmul %482, %483, %cst_156 {dimension_numbers = #tpu.dot_dimension_numbers<[1], [0], [0], [1], [0, 0, 1, 1], [], []>} : vector<8x128xbf16>, vector<128x384xbf16>, vector<8x384xf32> -> vector<8x384xf32>
      %485 = vector.extract_strided_slice %477 {offsets = [0, 0], sizes = [8, 128], strides = [1, 1]} : vector<8x384xf32> to vector<8x128xf32>
      %486 = vector.extract_strided_slice %484 {offsets = [0, 0], sizes = [8, 128], strides = [1, 1]} : vector<8x384xf32> to vector<8x128xf32>
      %487 = arith.addf %485, %486 : vector<8x128xf32>
      %488 = arith.negf %487 : vector<8x128xf32>
      %489 = math.exp %488 : vector<8x128xf32>
      %cst_157 = arith.constant 1.000000e+00 : f32
      %490 = vector.broadcast %cst_157 : f32 to vector<8x128xf32>
      %491 = arith.addf %490, %489 : vector<8x128xf32>
      %492 = arith.divf %490, %491 : vector<8x128xf32>
      %493 = vector.extract_strided_slice %477 {offsets = [0, 128], sizes = [8, 128], strides = [1, 1]} : vector<8x384xf32> to vector<8x128xf32>
      %494 = vector.extract_strided_slice %484 {offsets = [0, 128], sizes = [8, 128], strides = [1, 1]} : vector<8x384xf32> to vector<8x128xf32>
      %495 = arith.addf %493, %494 : vector<8x128xf32>
      %496 = arith.negf %495 : vector<8x128xf32>
      %497 = math.exp %496 : vector<8x128xf32>
      %cst_158 = arith.constant 1.000000e+00 : f32
      %498 = vector.broadcast %cst_158 : f32 to vector<8x128xf32>
      %499 = arith.addf %498, %497 : vector<8x128xf32>
      %500 = arith.divf %498, %499 : vector<8x128xf32>
      %501 = vector.extract_strided_slice %477 {offsets = [0, 256], sizes = [8, 128], strides = [1, 1]} : vector<8x384xf32> to vector<8x128xf32>
      %502 = vector.extract_strided_slice %484 {offsets = [0, 256], sizes = [8, 128], strides = [1, 1]} : vector<8x384xf32> to vector<8x128xf32>
      %503 = arith.addf %502, %25 : vector<8x128xf32>
      %504 = arith.mulf %492, %503 : vector<8x128xf32>
      %505 = arith.addf %501, %504 : vector<8x128xf32>
      %506 = math.tanh %505 : vector<8x128xf32>
      %cst_159 = arith.constant 1.000000e+00 : f32
      %507 = vector.broadcast %cst_159 : f32 to vector<8x128xf32>
      %508 = arith.subf %507, %500 : vector<8x128xf32>
      %509 = arith.mulf %508, %506 : vector<8x128xf32>
      %510 = arith.mulf %500, %438 : vector<8x128xf32>
      %511 = arith.addf %509, %510 : vector<8x128xf32>
      %512 = arith.truncf %468 : vector<8x128xf32> to vector<8x128xbf16>
      %c0_160 = arith.constant 0 : index
      %c0_161 = arith.constant 0 : index
      %513 = vector.load %arg8[%c0_160, %c0_161] : memref<128x384xbf16, #tpu.memory_space<vmem>>, vector<128x384xbf16>
      %cst_162 = arith.constant dense<0.000000e+00> : vector<8x384xf32>
      %514 = tpu.matmul %512, %513, %cst_162 {dimension_numbers = #tpu.dot_dimension_numbers<[1], [0], [0], [1], [0, 0, 1, 1], [], []>} : vector<8x128xbf16>, vector<128x384xbf16>, vector<8x384xf32> -> vector<8x384xf32>
      %515 = vector.extract_strided_slice %481 {offsets = [0, 0], sizes = [8, 128], strides = [1, 1]} : vector<8x384xf32> to vector<8x128xf32>
      %516 = vector.extract_strided_slice %514 {offsets = [0, 0], sizes = [8, 128], strides = [1, 1]} : vector<8x384xf32> to vector<8x128xf32>
      %517 = arith.addf %515, %516 : vector<8x128xf32>
      %518 = arith.negf %517 : vector<8x128xf32>
      %519 = math.exp %518 : vector<8x128xf32>
      %cst_163 = arith.constant 1.000000e+00 : f32
      %520 = vector.broadcast %cst_163 : f32 to vector<8x128xf32>
      %521 = arith.addf %520, %519 : vector<8x128xf32>
      %522 = arith.divf %520, %521 : vector<8x128xf32>
      %523 = vector.extract_strided_slice %481 {offsets = [0, 128], sizes = [8, 128], strides = [1, 1]} : vector<8x384xf32> to vector<8x128xf32>
      %524 = vector.extract_strided_slice %514 {offsets = [0, 128], sizes = [8, 128], strides = [1, 1]} : vector<8x384xf32> to vector<8x128xf32>
      %525 = arith.addf %523, %524 : vector<8x128xf32>
      %526 = arith.negf %525 : vector<8x128xf32>
      %527 = math.exp %526 : vector<8x128xf32>
      %cst_164 = arith.constant 1.000000e+00 : f32
      %528 = vector.broadcast %cst_164 : f32 to vector<8x128xf32>
      %529 = arith.addf %528, %527 : vector<8x128xf32>
      %530 = arith.divf %528, %529 : vector<8x128xf32>
      %531 = vector.extract_strided_slice %481 {offsets = [0, 256], sizes = [8, 128], strides = [1, 1]} : vector<8x384xf32> to vector<8x128xf32>
      %532 = vector.extract_strided_slice %514 {offsets = [0, 256], sizes = [8, 128], strides = [1, 1]} : vector<8x384xf32> to vector<8x128xf32>
      %533 = arith.addf %532, %28 : vector<8x128xf32>
      %534 = arith.mulf %522, %533 : vector<8x128xf32>
      %535 = arith.addf %531, %534 : vector<8x128xf32>
      %536 = math.tanh %535 : vector<8x128xf32>
      %cst_165 = arith.constant 1.000000e+00 : f32
      %537 = vector.broadcast %cst_165 : f32 to vector<8x128xf32>
      %538 = arith.subf %537, %530 : vector<8x128xf32>
      %539 = arith.mulf %538, %536 : vector<8x128xf32>
      %540 = arith.mulf %530, %468 : vector<8x128xf32>
      %541 = arith.addf %539, %540 : vector<8x128xf32>
      %c7_i32_166 = arith.constant 7 : i32
      %c8_i32_167 = arith.constant 8 : i32
      %542 = arith.muli %c7_i32_166, %c8_i32_167 : i32
      %543 = tpu.assume_multiple %542, 8 : i32
      %c7_i32_168 = arith.constant 7 : i32
      %544 = arith.subi %c7_i32_168, %c7_i32_166 : i32
      %c8_i32_169 = arith.constant 8 : i32
      %545 = arith.muli %544, %c8_i32_169 : i32
      %546 = tpu.assume_multiple %545, 8 : i32
      %c0_i32_170 = arith.constant 0 : i32
      %c0_i32_171 = arith.constant 0 : i32
      %547 = tpu.memref_slice %arg14[%10, %c0_i32_170, %c0_i32_171] : memref<2x64x384xf32, #tpu.memory_space<vmem>> -> memref<1x64x384xf32, #tpu.memory_space<vmem>>
      %548 = tpu.memref_squeeze %547 : memref<1x64x384xf32, #tpu.memory_space<vmem>> -> memref<64x384xf32, #tpu.memory_space<vmem>>
      %549 = arith.index_cast %543 : i32 to index
      %c0_172 = arith.constant 0 : index
      %550 = vector.load %548[%549, %c0_172] : memref<64x384xf32, #tpu.memory_space<vmem>>, vector<8x384xf32>
      %c0_i32_173 = arith.constant 0 : i32
      %c0_i32_174 = arith.constant 0 : i32
      %551 = tpu.memref_slice %arg15[%10, %c0_i32_173, %c0_i32_174] : memref<2x64x384xf32, #tpu.memory_space<vmem>> -> memref<1x64x384xf32, #tpu.memory_space<vmem>>
      %552 = tpu.memref_squeeze %551 : memref<1x64x384xf32, #tpu.memory_space<vmem>> -> memref<64x384xf32, #tpu.memory_space<vmem>>
      %553 = arith.index_cast %546 : i32 to index
      %c0_175 = arith.constant 0 : index
      %554 = vector.load %552[%553, %c0_175] : memref<64x384xf32, #tpu.memory_space<vmem>>, vector<8x384xf32>
      %555 = arith.truncf %511 : vector<8x128xf32> to vector<8x128xbf16>
      %c0_176 = arith.constant 0 : index
      %c0_177 = arith.constant 0 : index
      %556 = vector.load %arg4[%c0_176, %c0_177] : memref<128x384xbf16, #tpu.memory_space<vmem>>, vector<128x384xbf16>
      %cst_178 = arith.constant dense<0.000000e+00> : vector<8x384xf32>
      %557 = tpu.matmul %555, %556, %cst_178 {dimension_numbers = #tpu.dot_dimension_numbers<[1], [0], [0], [1], [0, 0, 1, 1], [], []>} : vector<8x128xbf16>, vector<128x384xbf16>, vector<8x384xf32> -> vector<8x384xf32>
      %558 = vector.extract_strided_slice %550 {offsets = [0, 0], sizes = [8, 128], strides = [1, 1]} : vector<8x384xf32> to vector<8x128xf32>
      %559 = vector.extract_strided_slice %557 {offsets = [0, 0], sizes = [8, 128], strides = [1, 1]} : vector<8x384xf32> to vector<8x128xf32>
      %560 = arith.addf %558, %559 : vector<8x128xf32>
      %561 = arith.negf %560 : vector<8x128xf32>
      %562 = math.exp %561 : vector<8x128xf32>
      %cst_179 = arith.constant 1.000000e+00 : f32
      %563 = vector.broadcast %cst_179 : f32 to vector<8x128xf32>
      %564 = arith.addf %563, %562 : vector<8x128xf32>
      %565 = arith.divf %563, %564 : vector<8x128xf32>
      %566 = vector.extract_strided_slice %550 {offsets = [0, 128], sizes = [8, 128], strides = [1, 1]} : vector<8x384xf32> to vector<8x128xf32>
      %567 = vector.extract_strided_slice %557 {offsets = [0, 128], sizes = [8, 128], strides = [1, 1]} : vector<8x384xf32> to vector<8x128xf32>
      %568 = arith.addf %566, %567 : vector<8x128xf32>
      %569 = arith.negf %568 : vector<8x128xf32>
      %570 = math.exp %569 : vector<8x128xf32>
      %cst_180 = arith.constant 1.000000e+00 : f32
      %571 = vector.broadcast %cst_180 : f32 to vector<8x128xf32>
      %572 = arith.addf %571, %570 : vector<8x128xf32>
      %573 = arith.divf %571, %572 : vector<8x128xf32>
      %574 = vector.extract_strided_slice %550 {offsets = [0, 256], sizes = [8, 128], strides = [1, 1]} : vector<8x384xf32> to vector<8x128xf32>
      %575 = vector.extract_strided_slice %557 {offsets = [0, 256], sizes = [8, 128], strides = [1, 1]} : vector<8x384xf32> to vector<8x128xf32>
      %576 = arith.addf %575, %25 : vector<8x128xf32>
      %577 = arith.mulf %565, %576 : vector<8x128xf32>
      %578 = arith.addf %574, %577 : vector<8x128xf32>
      %579 = math.tanh %578 : vector<8x128xf32>
      %cst_181 = arith.constant 1.000000e+00 : f32
      %580 = vector.broadcast %cst_181 : f32 to vector<8x128xf32>
      %581 = arith.subf %580, %573 : vector<8x128xf32>
      %582 = arith.mulf %581, %579 : vector<8x128xf32>
      %583 = arith.mulf %573, %511 : vector<8x128xf32>
      %584 = arith.addf %582, %583 : vector<8x128xf32>
      %585 = arith.truncf %541 : vector<8x128xf32> to vector<8x128xbf16>
      %c0_182 = arith.constant 0 : index
      %c0_183 = arith.constant 0 : index
      %586 = vector.load %arg8[%c0_182, %c0_183] : memref<128x384xbf16, #tpu.memory_space<vmem>>, vector<128x384xbf16>
      %cst_184 = arith.constant dense<0.000000e+00> : vector<8x384xf32>
      %587 = tpu.matmul %585, %586, %cst_184 {dimension_numbers = #tpu.dot_dimension_numbers<[1], [0], [0], [1], [0, 0, 1, 1], [], []>} : vector<8x128xbf16>, vector<128x384xbf16>, vector<8x384xf32> -> vector<8x384xf32>
      %588 = vector.extract_strided_slice %554 {offsets = [0, 0], sizes = [8, 128], strides = [1, 1]} : vector<8x384xf32> to vector<8x128xf32>
      %589 = vector.extract_strided_slice %587 {offsets = [0, 0], sizes = [8, 128], strides = [1, 1]} : vector<8x384xf32> to vector<8x128xf32>
      %590 = arith.addf %588, %589 : vector<8x128xf32>
      %591 = arith.negf %590 : vector<8x128xf32>
      %592 = math.exp %591 : vector<8x128xf32>
      %cst_185 = arith.constant 1.000000e+00 : f32
      %593 = vector.broadcast %cst_185 : f32 to vector<8x128xf32>
      %594 = arith.addf %593, %592 : vector<8x128xf32>
      %595 = arith.divf %593, %594 : vector<8x128xf32>
      %596 = vector.extract_strided_slice %554 {offsets = [0, 128], sizes = [8, 128], strides = [1, 1]} : vector<8x384xf32> to vector<8x128xf32>
      %597 = vector.extract_strided_slice %587 {offsets = [0, 128], sizes = [8, 128], strides = [1, 1]} : vector<8x384xf32> to vector<8x128xf32>
      %598 = arith.addf %596, %597 : vector<8x128xf32>
      %599 = arith.negf %598 : vector<8x128xf32>
      %600 = math.exp %599 : vector<8x128xf32>
      %cst_186 = arith.constant 1.000000e+00 : f32
      %601 = vector.broadcast %cst_186 : f32 to vector<8x128xf32>
      %602 = arith.addf %601, %600 : vector<8x128xf32>
      %603 = arith.divf %601, %602 : vector<8x128xf32>
      %604 = vector.extract_strided_slice %554 {offsets = [0, 256], sizes = [8, 128], strides = [1, 1]} : vector<8x384xf32> to vector<8x128xf32>
      %605 = vector.extract_strided_slice %587 {offsets = [0, 256], sizes = [8, 128], strides = [1, 1]} : vector<8x384xf32> to vector<8x128xf32>
      %606 = arith.addf %605, %28 : vector<8x128xf32>
      %607 = arith.mulf %595, %606 : vector<8x128xf32>
      %608 = arith.addf %604, %607 : vector<8x128xf32>
      %609 = math.tanh %608 : vector<8x128xf32>
      %cst_187 = arith.constant 1.000000e+00 : f32
      %610 = vector.broadcast %cst_187 : f32 to vector<8x128xf32>
      %611 = arith.subf %610, %603 : vector<8x128xf32>
      %612 = arith.mulf %611, %609 : vector<8x128xf32>
      %613 = arith.mulf %603, %541 : vector<8x128xf32>
      %614 = arith.addf %612, %613 : vector<8x128xf32>
      %c8_i32_188 = arith.constant 8 : i32
      %c0_189 = arith.constant 0 : index
      %c0_190 = arith.constant 0 : index
      %615 = vector.load %arg12[%c0_189, %c0_190] : memref<8x128xf32, #tpu.memory_space<vmem>>, vector<8x128xf32>
      tpu.vector_store %arg12[%c0_189, %c0_190], %584 {strides = array<i32>} : memref<8x128xf32, #tpu.memory_space<vmem>>, vector<8x128xf32>,
      %c0_191 = arith.constant 0 : index
      %c0_192 = arith.constant 0 : index
      %616 = vector.load %arg13[%c0_191, %c0_192] : memref<8x128xf32, #tpu.memory_space<vmem>>, vector<8x128xf32>
      tpu.vector_store %arg13[%c0_191, %c0_192], %614 {strides = array<i32>} : memref<8x128xf32, #tpu.memory_space<vmem>>, vector<8x128xf32>,
    } else {
    }
    %c1_i32_10 = arith.constant 1 : i32
    %20 = arith.cmpi eq, %arg0, %c1_i32_10 : i32
    %21 = arith.extui %20 : i1 to i32
    %c0_i32_11 = arith.constant 0 : i32
    %22 = arith.cmpi ne, %21, %c0_i32_11 : i32
    scf.if %22 {
      %c0 = arith.constant 0 : index
      %c0_12 = arith.constant 0 : index
      %23 = vector.load %arg12[%c0, %c0_12] : memref<8x128xf32, #tpu.memory_space<vmem>>, vector<8x128xf32>
      %c0_13 = arith.constant 0 : index
      %c0_14 = arith.constant 0 : index
      %c0_15 = arith.constant 0 : index
      %24 = vector.load %arg11[%c0_13, %c0_14, %c0_15] : memref<2x8x128xf32, #tpu.memory_space<vmem>>, vector<1x8x128xf32>
      %25 = vector.shape_cast %24 : vector<1x8x128xf32> to vector<8x128xf32>
      %26 = vector.shape_cast %23 : vector<8x128xf32> to vector<1x8x128xf32>
      tpu.vector_store %arg11[%c0_13, %c0_14, %c0_15], %26 {strides = array<i32>} : memref<2x8x128xf32, #tpu.memory_space<vmem>>, vector<1x8x128xf32>,
      %c0_16 = arith.constant 0 : index
      %c0_17 = arith.constant 0 : index
      %27 = vector.load %arg13[%c0_16, %c0_17] : memref<8x128xf32, #tpu.memory_space<vmem>>, vector<8x128xf32>
      %c1 = arith.constant 1 : index
      %c0_18 = arith.constant 0 : index
      %c0_19 = arith.constant 0 : index
      %28 = vector.load %arg11[%c1, %c0_18, %c0_19] : memref<2x8x128xf32, #tpu.memory_space<vmem>>, vector<1x8x128xf32>
      %29 = vector.shape_cast %28 : vector<1x8x128xf32> to vector<8x128xf32>
      %30 = vector.shape_cast %27 : vector<8x128xf32> to vector<1x8x128xf32>
      tpu.vector_store %arg11[%c1, %c0_18, %c0_19], %30 {strides = array<i32>} : memref<2x8x128xf32, #tpu.memory_space<vmem>>, vector<1x8x128xf32>,
    } else {
    }
    return
  }
  func.func @transform_0(%arg0: i32) -> (i32, i32, i32) {
    %c0_i32 = arith.constant 0 : i32
    %0 = arith.minsi %arg0, %c0_i32 : i32
    %c0_i32_0 = arith.constant 0 : i32
    %c0_i32_1 = arith.constant 0 : i32
    %c0_i32_2 = arith.constant 0 : i32
    return %0, %c0_i32_0, %c0_i32_1 : i32, i32, i32
  }
  func.func @transform_1(%arg0: i32) -> (i32, i32, i32) {
    %c0_i32 = arith.constant 0 : i32
    %0 = arith.subi %c0_i32, %arg0 : i32
    %c0_i32_0 = arith.constant 0 : i32
    %1 = arith.maxsi %0, %c0_i32_0 : i32
    %c0_i32_1 = arith.constant 0 : i32
    %c0_i32_2 = arith.constant 0 : i32
    %c0_i32_3 = arith.constant 0 : i32
    return %1, %c0_i32_1, %c0_i32_2 : i32, i32, i32
  }
  func.func @transform_2(%arg0: i32) -> (i32, i32) {
    %c0_i32 = arith.constant 0 : i32
    %c0_i32_0 = arith.constant 0 : i32
    %c0_i32_1 = arith.constant 0 : i32
    return %c0_i32, %c0_i32_0 : i32, i32
  }
  func.func @transform_3(%arg0: i32) -> (i32, i32) {
    %c0_i32 = arith.constant 0 : i32
    %c0_i32_0 = arith.constant 0 : i32
    %c0_i32_1 = arith.constant 0 : i32
    return %c0_i32, %c0_i32_0 : i32, i32
  }
  func.func @transform_4(%arg0: i32) -> (i32, i32) {
    %c0_i32 = arith.constant 0 : i32
    %c0_i32_0 = arith.constant 0 : i32
    %c0_i32_1 = arith.constant 0 : i32
    return %c0_i32, %c0_i32_0 : i32, i32
  }
  func.func @transform_5(%arg0: i32) -> (i32, i32) {
    %c0_i32 = arith.constant 0 : i32
    %c0_i32_0 = arith.constant 0 : i32
    %c0_i32_1 = arith.constant 0 : i32
    return %c0_i32, %c0_i32_0 : i32, i32
  }
  func.func @transform_6(%arg0: i32) -> (i32, i32) {
    %c0_i32 = arith.constant 0 : i32
    %c0_i32_0 = arith.constant 0 : i32
    %c0_i32_1 = arith.constant 0 : i32
    return %c0_i32, %c0_i32_0 : i32, i32
  }
  func.func @transform_7(%arg0: i32) -> (i32, i32) {
    %c0_i32 = arith.constant 0 : i32
    %c0_i32_0 = arith.constant 0 : i32
    %c0_i32_1 = arith.constant 0 : i32
    return %c0_i32, %c0_i32_0 : i32, i32
  }
  func.func @transform_8(%arg0: i32) -> (i32, i32) {
    %c0_i32 = arith.constant 0 : i32
    %c0_i32_0 = arith.constant 0 : i32
    %c0_i32_1 = arith.constant 0 : i32
    return %c0_i32, %c0_i32_0 : i32, i32
  }
  func.func @transform_9(%arg0: i32) -> (i32, i32) {
    %c0_i32 = arith.constant 0 : i32
    %c0_i32_0 = arith.constant 0 : i32
    %c0_i32_1 = arith.constant 0 : i32
    return %c0_i32, %c0_i32_0 : i32, i32
  }
  func.func @transform_10(%arg0: i32) -> (i32, i32, i32) {
    %c0_i32 = arith.constant 0 : i32
    %c0_i32_0 = arith.constant 0 : i32
    %c0_i32_1 = arith.constant 0 : i32
    %c0_i32_2 = arith.constant 0 : i32
    return %c0_i32, %c0_i32_0, %c0_i32_1 : i32, i32, i32
  }
}

</mosaic_0001>

<llo_original>
// kernel: tpu_custom_call.1
$region0: #{tpu_custom_call.1}
  #allocation0 [shape = 'u32[]', space=smem, size = 0x4, offset = 0x4, fixed_abs, tag = 'smem constant byte address 0x4 - core index']
  #allocation1 [shape = 'u32[72,128]{1,0:T(1,128)}', space=vmem, size = 0x9000, scoped, tag = 'internal scratch']
  #allocation2 [shape = 'f32[8,128]{1,0:T(8,128)}', space=vmem, size = 0x1000, scoped, tag = 'scratch operand']
  #allocation3 [shape = 'f32[8,128]{1,0:T(8,128)}', space=vmem, size = 0x1000, scoped, tag = 'scratch operand']
  #allocation4 [shape = 'f32[2,64,384]{2,1,0:T(8,128)}', space=vmem, size = 0x30000, scoped, tag = 'scratch operand']
  #allocation5 [shape = 'f32[2,64,384]{2,1,0:T(8,128)}', space=vmem, size = 0x30000, scoped, tag = 'scratch operand']
  %s0 = inlined_call_operand.vmem [shape: bf16[1,64,20], index: 0, kind: input, shape index: {}]
  %s1 = inlined_call_operand.vmem [shape: bf16[1,64,20], index: 1, kind: input, shape index: {}]
  %s2 = inlined_call_operand.vmem [shape: bf16[20,384], index: 2, kind: input, shape index: {}]
  %s3 = inlined_call_operand.hbm [shape: bf16[128,384], index: 3, kind: input, shape index: {}]
  %s4 = inlined_call_operand.vmem [shape: f32[1,384], index: 4, kind: input, shape index: {}]
  %s5 = inlined_call_operand.vmem [shape: f32[1,128], index: 5, kind: input, shape index: {}]
  %s6 = inlined_call_operand.vmem [shape: bf16[20,384], index: 6, kind: input, shape index: {}]
  %s7 = inlined_call_operand.hbm [shape: bf16[128,384], index: 7, kind: input, shape index: {}]
  %s8 = inlined_call_operand.vmem [shape: f32[1,384], index: 8, kind: input, shape index: {}]
  %s9 = inlined_call_operand.vmem [shape: f32[1,128], index: 9, kind: input, shape index: {}]
  %s10 = inlined_call_operand.hbm [shape: f32[2,8,128], index: 10, kind: output, shape index: {}]
  %s11 = sld [smem:[#allocation0]]
  $region97: #{tpu_custom_call.1} parent=0
    _
  %s13 = ssub.s32 1, %s11
  %s14 = scalar_select 0, %s13, %s11
  $region1: #{tpu_custom_call.1} parent=0
    #allocation6 [shape = 'u8[98304]{0}', space=vmem, size = 0x18000, scoped, tag = 'input window, operand 3, single buffered']
    #allocation7 [shape = 's32[2]{0}', space=sflag, size = 0x8, scoped, tag = 'scoped memory for tpu_custom_call.1']
    #allocation8 [shape = 's32[2]{0}', space=sflag, size = 0x8, scoped, tag = 'scoped memory for tpu_custom_call.1']
    #allocation9 [shape = 'u8[98304]{0}', space=vmem, size = 0x18000, scoped, tag = 'input window, operand 7, single buffered']
    #allocation10 [shape = 's32[1]{0}', space=sflag, size = 0x4, scoped, tag = 'scoped memory for tpu_custom_call.1']
    #allocation11 [shape = 'u8[8192]{0}', space=vmem, size = 0x2000, scoped, tag = 'output window, operand 0, single buffered']
    %15 = vsyncpa [#allocation7], 0
    %16 = vsyncpa [#allocation10], 0
    %17 = vsyncpa [#allocation8], 0
    loop: start=0, step=1, limit=4
    $region2: #{tpu_custom_call.1} parent=1 // loop_pre_header
      _
    $region3: #{tpu_custom_call.1} parent=1 // loop_header
      %s19 = sphi 0, %s23
      %p20 = scmp.ge.s32.totalorder %s19, 4
      %s33 = sphi 0, %s35
      %s36 = sphi 0, %s33
      %s37 = sphi 0, %s36
      %s53 = sphi 0, %s37
      %s65 = sphi 0, %s67
      %s68 = sphi 0, %s65
      %s69 = sphi 0, %s68
      %s85 = sphi 0, %s69
      %s89 = sphi 0, %s89
      %s91 = sphi 0, %s89
      %s92 = sphi 0, %s91
      %s106 = sphi 0, %s92
      %s110 = sphi 0, %s110
      %s112 = sphi 0, %s110
      %s113 = sphi 0, %s112
      %s127 = sphi 0, %s113
      %s131 = sphi 0, %s131
      %s133 = sphi 0, %s131
      %s134 = sphi 0, %s133
      %s148 = sphi 0, %s134
      %s152 = sphi 0, %s152
      %s154 = sphi 0, %s152
      %s155 = sphi 0, %s154
      %s169 = sphi 0, %s155
      %s173 = sphi 0, %s173
      %s175 = sphi 0, %s173
      %s176 = sphi 0, %s175
      %s190 = sphi 0, %s176
      %s194 = sphi 0, %s194
      %s196 = sphi 0, %s194
      %s197 = sphi 0, %s196
      %s211 = sphi 0, %s197
      %s215 = sphi 0, %s215
      %s217 = sphi 0, %s215
      %s218 = sphi 0, %s217
      %s232 = sphi 0, %s218
      %s236 = sphi 0, %s236
      %s238 = sphi 0, %s236
      %s239 = sphi 0, %s238
      %s253 = sphi 0, %s239
      %s257 = sphi 0, %s257
      %s259 = sphi 0, %s257
      %s260 = sphi 0, %s259
      %s274 = sphi 0, %s260
    $region4: #{tpu_custom_call.1} parent=1 // loop_header_branch
      %22 = sbr.rel (%p20) target = $region8
    $region5: #{tpu_custom_call.1} parent=1 // loop_body
      %s24 = ssub.s32 %s19, 1
      %s25 = ssub.s32 %s19, 2
      %s26 = sadd.s32 %s19, 1
      %p27 = scmp.lt.s32.totalorder %s19, 0
      %s28 = scalar_select %p27, %s19, 0
      %p29 = scmp.lt.s32.totalorder %s26, 0
      %s30 = scalar_select %p29, %s26, 0
      %s31 = ssub.s32 %s28, %s30
      %p32 = scmp.eq.s32.totalorder %s31, 0
      %s34 = sadd.s32 %s33, 1
      %s35 = scalar_select %p32, %s33, %s34
      %p38 = pneg %p32
      %p39 = scmp.eq.s32.totalorder %s19, 1
      %p40 = por %p38, %p39
      %p41 = scmp.ne.s32.totalorder %s33, %s36
      %p42 = scmp.eq.s32.totalorder %s19, 0
      %p43 = por %p41, %p42
      %p44 = scmp.ne.s32.totalorder %s33, %s36
      %p45 = scmp.eq.s32.totalorder %s24, 1
      %p46 = por %p44, %p45
      %p47 = scmp.ne.s32.totalorder %s36, %s37
      %p48 = scmp.eq.s32.totalorder %s24, 0
      %p49 = por %p47, %p48
      %p50 = scmp.ne.s32.totalorder %s36, %s37
      %p51 = scmp.eq.s32.totalorder %s25, 1
      %p52 = por %p50, %p51
      %p54 = scmp.ne.s32.totalorder %s37, %s53
      %p55 = scmp.eq.s32.totalorder %s25, 0
      %p56 = por %p54, %p55
      %s57 = ssub.s32 0, %s19
      %p58 = scmp.gt.s32.totalorder %s57, 0
      %s59 = scalar_select %p58, %s57, 0
      %s60 = ssub.s32 0, %s26
      %p61 = scmp.gt.s32.totalorder %s60, 0
      %s62 = scalar_select %p61, %s60, 0
      %s63 = ssub.s32 %s59, %s62
      %p64 = scmp.eq.s32.totalorder %s63, 0
      %s66 = sadd.s32 %s65, 1
      %s67 = scalar_select %p64, %s65, %s66
      %p70 = pneg %p64
      %p71 = scmp.eq.s32.totalorder %s19, 1
      %p72 = por %p70, %p71
      %p73 = scmp.ne.s32.totalorder %s65, %s68
      %p74 = scmp.eq.s32.totalorder %s19, 0
      %p75 = por %p73, %p74
      %p76 = scmp.ne.s32.totalorder %s65, %s68
      %p77 = scmp.eq.s32.totalorder %s24, 1
      %p78 = por %p76, %p77
      %p79 = scmp.ne.s32.totalorder %s68, %s69
      %p80 = scmp.eq.s32.totalorder %s24, 0
      %p81 = por %p79, %p80
      %p82 = scmp.ne.s32.totalorder %s68, %s69
      %p83 = scmp.eq.s32.totalorder %s25, 1
      %p84 = por %p82, %p83
      %p86 = scmp.ne.s32.totalorder %s69, %s85
      %p87 = scmp.eq.s32.totalorder %s25, 0
      %p88 = por %p86, %p87
      %s90 = sadd.s32 %s89, 1
      %p93 = scmp.eq.s32.totalorder %s19, 1
      %p94 = scmp.ne.s32.totalorder %s89, %s91
      %p95 = scmp.eq.s32.totalorder %s19, 0
      %p96 = por %p94, %p95
      %p97 = scmp.ne.s32.totalorder %s89, %s91
      %p98 = scmp.eq.s32.totalorder %s24, 1
      %p99 = por %p97, %p98
      %p100 = scmp.ne.s32.totalorder %s91, %s92
      %p101 = scmp.eq.s32.totalorder %s24, 0
      %p102 = por %p100, %p101
      %p103 = scmp.ne.s32.totalorder %s91, %s92
      %p104 = scmp.eq.s32.totalorder %s25, 1
      %p105 = por %p103, %p104
      %p107 = scmp.ne.s32.totalorder %s92, %s106
      %p108 = scmp.eq.s32.totalorder %s25, 0
      %p109 = por %p107, %p108
      %s111 = sadd.s32 %s110, 1
      %p114 = scmp.eq.s32.totalorder %s19, 1
      %p115 = scmp.ne.s32.totalorder %s110, %s112
      %p116 = scmp.eq.s32.totalorder %s19, 0
      %p117 = por %p115, %p116
      %p118 = scmp.ne.s32.totalorder %s110, %s112
      %p119 = scmp.eq.s32.totalorder %s24, 1
      %p120 = por %p118, %p119
      %p121 = scmp.ne.s32.totalorder %s112, %s113
      %p122 = scmp.eq.s32.totalorder %s24, 0
      %p123 = por %p121, %p122
      %p124 = scmp.ne.s32.totalorder %s112, %s113
      %p125 = scmp.eq.s32.totalorder %s25, 1
      %p126 = por %p124, %p125
      %p128 = scmp.ne.s32.totalorder %s113, %s127
      %p129 = scmp.eq.s32.totalorder %s25, 0
      %p130 = por %p128, %p129
      %s132 = sadd.s32 %s131, 1
      %p135 = scmp.eq.s32.totalorder %s19, 1
      %p136 = scmp.ne.s32.totalorder %s131, %s133
      %p137 = scmp.eq.s32.totalorder %s19, 0
      %p138 = por %p136, %p137
      %p139 = scmp.ne.s32.totalorder %s131, %s133
      %p140 = scmp.eq.s32.totalorder %s24, 1
      %p141 = por %p139, %p140
      %p142 = scmp.ne.s32.totalorder %s133, %s134
      %p143 = scmp.eq.s32.totalorder %s24, 0
      %p144 = por %p142, %p143
      %p145 = scmp.ne.s32.totalorder %s133, %s134
      %p146 = scmp.eq.s32.totalorder %s25, 1
      %p147 = por %p145, %p146
      %p149 = scmp.ne.s32.totalorder %s134, %s148
      %p150 = scmp.eq.s32.totalorder %s25, 0
      %p151 = por %p149, %p150
      %s153 = sadd.s32 %s152, 1
      %p156 = scmp.eq.s32.totalorder %s19, 1
      %p157 = scmp.ne.s32.totalorder %s152, %s154
      %p158 = scmp.eq.s32.totalorder %s19, 0
      %p159 = por %p157, %p158
      %p160 = scmp.ne.s32.totalorder %s152, %s154
      %p161 = scmp.eq.s32.totalorder %s24, 1
      %p162 = por %p160, %p161
      %p163 = scmp.ne.s32.totalorder %s154, %s155
      %p164 = scmp.eq.s32.totalorder %s24, 0
      %p165 = por %p163, %p164
      %p166 = scmp.ne.s32.totalorder %s154, %s155
      %p167 = scmp.eq.s32.totalorder %s25, 1
      %p168 = por %p166, %p167
      %p170 = scmp.ne.s32.totalorder %s155, %s169
      %p171 = scmp.eq.s32.totalorder %s25, 0
      %p172 = por %p170, %p171
      %s174 = sadd.s32 %s173, 1
      %p177 = scmp.eq.s32.totalorder %s19, 1
      %p178 = scmp.ne.s32.totalorder %s173, %s175
      %p179 = scmp.eq.s32.totalorder %s19, 0
      %p180 = por %p178, %p179
      %p181 = scmp.ne.s32.totalorder %s173, %s175
      %p182 = scmp.eq.s32.totalorder %s24, 1
      %p183 = por %p181, %p182
      %p184 = scmp.ne.s32.totalorder %s175, %s176
      %p185 = scmp.eq.s32.totalorder %s24, 0
      %p186 = por %p184, %p185
      %p187 = scmp.ne.s32.totalorder %s175, %s176
      %p188 = scmp.eq.s32.totalorder %s25, 1
      %p189 = por %p187, %p188
      %p191 = scmp.ne.s32.totalorder %s176, %s190
      %p192 = scmp.eq.s32.totalorder %s25, 0
      %p193 = por %p191, %p192
      %s195 = sadd.s32 %s194, 1
      %p198 = scmp.eq.s32.totalorder %s19, 1
      %p199 = scmp.ne.s32.totalorder %s194, %s196
      %p200 = scmp.eq.s32.totalorder %s19, 0
      %p201 = por %p199, %p200
      %p202 = scmp.ne.s32.totalorder %s194, %s196
      %p203 = scmp.eq.s32.totalorder %s24, 1
      %p204 = por %p202, %p203
      %p205 = scmp.ne.s32.totalorder %s196, %s197
      %p206 = scmp.eq.s32.totalorder %s24, 0
      %p207 = por %p205, %p206
      %p208 = scmp.ne.s32.totalorder %s196, %s197
      %p209 = scmp.eq.s32.totalorder %s25, 1
      %p210 = por %p208, %p209
      %p212 = scmp.ne.s32.totalorder %s197, %s211
      %p213 = scmp.eq.s32.totalorder %s25, 0
      %p214 = por %p212, %p213
      %s216 = sadd.s32 %s215, 1
      %p219 = scmp.eq.s32.totalorder %s19, 1
      %p220 = scmp.ne.s32.totalorder %s215, %s217
      %p221 = scmp.eq.s32.totalorder %s19, 0
      %p222 = por %p220, %p221
      %p223 = scmp.ne.s32.totalorder %s215, %s217
      %p224 = scmp.eq.s32.totalorder %s24, 1
      %p225 = por %p223, %p224
      %p226 = scmp.ne.s32.totalorder %s217, %s218
      %p227 = scmp.eq.s32.totalorder %s24, 0
      %p228 = por %p226, %p227
      %p229 = scmp.ne.s32.totalorder %s217, %s218
      %p230 = scmp.eq.s32.totalorder %s25, 1
      %p231 = por %p229, %p230
      %p233 = scmp.ne.s32.totalorder %s218, %s232
      %p234 = scmp.eq.s32.totalorder %s25, 0
      %p235 = por %p233, %p234
      %s237 = sadd.s32 %s236, 1
      %p240 = scmp.eq.s32.totalorder %s19, 1
      %p241 = scmp.ne.s32.totalorder %s236, %s238
      %p242 = scmp.eq.s32.totalorder %s19, 0
      %p243 = por %p241, %p242
      %p244 = scmp.ne.s32.totalorder %s236, %s238
      %p245 = scmp.eq.s32.totalorder %s24, 1
      %p246 = por %p244, %p245
      %p247 = scmp.ne.s32.totalorder %s238, %s239
      %p248 = scmp.eq.s32.totalorder %s24, 0
      %p249 = por %p247, %p248
      %p250 = scmp.ne.s32.totalorder %s238, %s239
      %p251 = scmp.eq.s32.totalorder %s25, 1
      %p252 = por %p250, %p251
      %p254 = scmp.ne.s32.totalorder %s239, %s253
      %p255 = scmp.eq.s32.totalorder %s25, 0
      %p256 = por %p254, %p255
      %s258 = sadd.s32 %s257, 1
      %p261 = scmp.eq.s32.totalorder %s19, 1
      %p262 = scmp.ne.s32.totalorder %s257, %s259
      %p263 = scmp.eq.s32.totalorder %s19, 0
      %p264 = por %p262, %p263
      %p265 = scmp.ne.s32.totalorder %s257, %s259
      %p266 = scmp.eq.s32.totalorder %s24, 1
      %p267 = por %p265, %p266
      %p268 = scmp.ne.s32.totalorder %s259, %s260
      %p269 = scmp.eq.s32.totalorder %s24, 0
      %p270 = por %p268, %p269
      %p271 = scmp.ne.s32.totalorder %s259, %s260
      %p272 = scmp.eq.s32.totalorder %s25, 1
      %p273 = por %p271, %p272
      %p275 = scmp.ne.s32.totalorder %s260, %s274
      %p276 = scmp.eq.s32.totalorder %s25, 0
      %p277 = por %p275, %p276
      %p278 = scmp.le.s32.totalorder 1, %s19
      %p279 = scmp.lt.s32.totalorder %s19, 3
      %p280 = pnand %p278, %p279
      %p281 = pneg %p280
      // Predicated region
      $region9: #{tpu_custom_call.1} parent=5 // pred_check
        _
      $region10: #{tpu_custom_call.1} parent=5 // pred_check_branch
        %283 = sbr.rel (%p280) target = $region12
      $region11: #{tpu_custom_call.1} parent=5 // pred_region
        %s284 = ssub.s32 %s19, 1
        // Predicated region
        $region13: #{tpu_custom_call.1} parent=11 // pred_check
          %p285 = pneg %p102
        $region14: #{tpu_custom_call.1} parent=11 // pred_check_branch
          %287 = sbr.rel (%p285) target = $region16
        $region15: #{tpu_custom_call.1} parent=11 // pred_region
          _
        $region16: #{tpu_custom_call.1} parent=11 // pred_fallthru
          _
        // Predicated region
        $region17: #{tpu_custom_call.1} parent=11 // pred_check
          %p288 = pneg %p123
        $region18: #{tpu_custom_call.1} parent=11 // pred_check_branch
          %290 = sbr.rel (%p288) target = $region20
        $region19: #{tpu_custom_call.1} parent=11 // pred_region
          %292 = vsyncadd [#allocation7], 0
          %s293 = sshll.u32 %s3, 4
          %s294 = int_to_ptr.hbm [resolvable:$true] %s293
          %s295 = sshll.u32 [#allocation6], 4
          %s296 = int_to_ptr.vmem [resolvable:$true] %s295
          %301 = dma.hbm_to_vmem [thread:$0]  %s294, 3072, %s296, [#allocation7], 192, 192, 12
        $region20: #{tpu_custom_call.1} parent=11 // pred_fallthru
          _
        // Predicated region
        $region21: #{tpu_custom_call.1} parent=11 // pred_check
          %p302 = pneg %p144
        $region22: #{tpu_custom_call.1} parent=11 // pred_check_branch
          %304 = sbr.rel (%p302) target = $region24
        $region23: #{tpu_custom_call.1} parent=11 // pred_region
          _
        $region24: #{tpu_custom_call.1} parent=11 // pred_fallthru
          _
        // Predicated region
        $region25: #{tpu_custom_call.1} parent=11 // pred_check
          %p305 = pneg %p165
        $region26: #{tpu_custom_call.1} parent=11 // pred_check_branch
          %307 = sbr.rel (%p305) target = $region28
        $region27: #{tpu_custom_call.1} parent=11 // pred_region
          _
        $region28: #{tpu_custom_call.1} parent=11 // pred_fallthru
          _
        // Predicated region
        $region29: #{tpu_custom_call.1} parent=11 // pred_check
          %p308 = pneg %p186
        $region30: #{tpu_custom_call.1} parent=11 // pred_check_branch
          %310 = sbr.rel (%p308) target = $region32
        $region31: #{tpu_custom_call.1} parent=11 // pred_region
          _
        $region32: #{tpu_custom_call.1} parent=11 // pred_fallthru
          _
        // Predicated region
        $region33: #{tpu_custom_call.1} parent=11 // pred_check
          %p311 = pneg %p207
        $region34: #{tpu_custom_call.1} parent=11 // pred_check_branch
          %313 = sbr.rel (%p311) target = $region36
        $region35: #{tpu_custom_call.1} parent=11 // pred_region
          %315 = vsyncadd [#allocation10], 0
          %s316 = sshll.u32 %s7, 4
          %s317 = int_to_ptr.hbm [resolvable:$true] %s316
          %s318 = sshll.u32 [#allocation9], 4
          %s319 = int_to_ptr.vmem [resolvable:$true] %s318
          %324 = dma.hbm_to_vmem [thread:$0]  %s317, 3072, %s319, [#allocation10], 192, 192, 12
        $region36: #{tpu_custom_call.1} parent=11 // pred_fallthru
          _
        // Predicated region
        $region37: #{tpu_custom_call.1} parent=11 // pred_check
          %p325 = pneg %p228
        $region38: #{tpu_custom_call.1} parent=11 // pred_check_branch
          %327 = sbr.rel (%p325) target = $region40
        $region39: #{tpu_custom_call.1} parent=11 // pred_region
          _
        $region40: #{tpu_custom_call.1} parent=11 // pred_fallthru
          _
        // Predicated region
        $region41: #{tpu_custom_call.1} parent=11 // pred_check
          %p328 = pneg %p249
        $region42: #{tpu_custom_call.1} parent=11 // pred_check_branch
          %330 = sbr.rel (%p328) target = $region44
        $region43: #{tpu_custom_call.1} parent=11 // pred_region
          _
        $region44: #{tpu_custom_call.1} parent=11 // pred_fallthru
          _
      $region12: #{tpu_custom_call.1} parent=5 // pred_fallthru
        _
      %p331 = scmp.lt.s32.totalorder %s19, 2
      // Predicated region
      $region45: #{tpu_custom_call.1} parent=5 // pred_check
        %p332 = pneg %p331
      $region46: #{tpu_custom_call.1} parent=5 // pred_check_branch
        %334 = sbr.rel (%p332) target = $region48
      $region47: #{tpu_custom_call.1} parent=5 // pred_region
        // Predicated region
        $region49: #{tpu_custom_call.1} parent=47 // pred_check
          %p335 = pneg %p43
        $region50: #{tpu_custom_call.1} parent=47 // pred_check_branch
          %337 = sbr.rel (%p335) target = $region52
        $region51: #{tpu_custom_call.1} parent=47 // pred_region
          %p338 = scmp.lt.s32.totalorder %s19, 0
          %s339 = scalar_select %p338, %s19, 0
          %p340 = scmp.lt.s32.totalorder %s339, 0
          %s341 = scalar_select %p340, %s339, 0
          %s342 = smul.addr %s341, 8
          %s343 = smul.addr %s342, 4
          %s344 = scalar_lea.vmem %s0, %s343
          %p345 = scmp.lt.s32.totalorder %s19, 0
          %s346 = scalar_select %p345, %s19, 0
        $region52: #{tpu_custom_call.1} parent=47 // pred_fallthru
          _
        // Predicated region
        $region53: #{tpu_custom_call.1} parent=47 // pred_check
          %p347 = pneg %p75
        $region54: #{tpu_custom_call.1} parent=47 // pred_check_branch
          %349 = sbr.rel (%p347) target = $region56
        $region55: #{tpu_custom_call.1} parent=47 // pred_region
          %s350 = ssub.s32 0, %s19
          %p351 = scmp.gt.s32.totalorder %s350, 0
          %s352 = scalar_select %p351, %s350, 0
          %p353 = scmp.lt.s32.totalorder %s352, 0
          %s354 = scalar_select %p353, %s352, 0
          %s355 = smul.addr %s354, 8
          %s356 = smul.addr %s355, 4
          %s357 = scalar_lea.vmem %s1, %s356
          %s358 = ssub.s32 0, %s19
          %p359 = scmp.gt.s32.totalorder %s358, 0
          %s360 = scalar_select %p359, %s358, 0
        $region56: #{tpu_custom_call.1} parent=47 // pred_fallthru
          _
      $region48: #{tpu_custom_call.1} parent=5 // pred_fallthru
        _
      %p361 = scmp.le.s32.totalorder 1, %s19
      %p362 = scmp.lt.s32.totalorder %s19, 3
      %p363 = pnand %p361, %p362
      %p364 = pneg %p363
      // Predicated region
      $region57: #{tpu_custom_call.1} parent=5 // pred_check
        _
      $region58: #{tpu_custom_call.1} parent=5 // pred_check_branch
        %366 = sbr.rel (%p363) target = $region60
      $region59: #{tpu_custom_call.1} parent=5 // pred_region
        %s367 = ssub.s32 %s19, 1
        // Predicated region
        $region61: #{tpu_custom_call.1} parent=59 // pred_check
          %p368 = pneg %p123
        $region62: #{tpu_custom_call.1} parent=59 // pred_check_branch
          %370 = sbr.rel (%p368) target = $region64
        $region63: #{tpu_custom_call.1} parent=59 // pred_region
          %372 = dma.done [#allocation7], 3072
        $region64: #{tpu_custom_call.1} parent=59 // pred_fallthru
          _
        // Predicated region
        $region65: #{tpu_custom_call.1} parent=59 // pred_check
          %p373 = pneg %p207
        $region66: #{tpu_custom_call.1} parent=59 // pred_check_branch
          %375 = sbr.rel (%p373) target = $region68
        $region67: #{tpu_custom_call.1} parent=59 // pred_region
          %377 = dma.done [#allocation10], 3072
        $region68: #{tpu_custom_call.1} parent=59 // pred_fallthru
          _
        %p378 = scmp.lt.s32.totalorder %s24, 0
        %s379 = scalar_select %p378, %s24, 0
        %p380 = scmp.lt.s32.totalorder %s379, 0
        %s381 = scalar_select %p380, %s379, 0
        %s382 = smul.addr %s381, 8
        %s383 = smul.addr %s382, 4
        %s384 = scalar_lea.vmem %s0, %s383
        %p385 = pneg %p49
        %p386 = pneg %p46
        %s387 = ssub.s32 0, %s24
        %p388 = scmp.gt.s32.totalorder %s387, 0
        %s389 = scalar_select %p388, %s387, 0
        %p390 = scmp.lt.s32.totalorder %s389, 0
        %s391 = scalar_select %p390, %s389, 0
        %s392 = smul.addr %s391, 8
        %s393 = smul.addr %s392, 4
        %s394 = scalar_lea.vmem %s1, %s393
        %p395 = pneg %p81
        %p396 = pneg %p78
        %p397 = pneg %p102
        %p398 = pneg %p99
        %p399 = pneg %p123
        %p400 = pneg %p120
        %p401 = pneg %p144
        %p402 = pneg %p141
        %p403 = pneg %p165
        %p404 = pneg %p162
        %p405 = pneg %p186
        %p406 = pneg %p183
        %p407 = pneg %p207
        %p408 = pneg %p204
        %p409 = pneg %p228
        %p410 = pneg %p225
        %p411 = pneg %p249
        %p412 = pneg %p246
        %p413 = pneg %p270
        %p414 = pneg %p267
        %p415 = scmp.lt.s32.totalorder %s24, 0
        %s416 = scalar_select %p415, %s24, 0
        %p417 = scmp.lt.s32.totalorder %s416, 0
        %s418 = scalar_select %p417, %s416, 0
        %s419 = smul.addr %s418, 8
        %s420 = smul.addr %s419, 4
        %s421 = scalar_lea.vmem %s0, %s420
        %p422 = scmp.lt.s32.totalorder %s24, 0
        %s423 = scalar_select %p422, %s24, 0
        %s424 = ssub.s32 0, %s24
        %p425 = scmp.gt.s32.totalorder %s424, 0
        %s426 = scalar_select %p425, %s424, 0
        %p427 = scmp.lt.s32.totalorder %s426, 0
        %s428 = scalar_select %p427, %s426, 0
        %s429 = smul.addr %s428, 8
        %s430 = smul.addr %s429, 4
        %s431 = scalar_lea.vmem %s1, %s430
        %s432 = ssub.s32 0, %s24
        %p433 = scmp.gt.s32.totalorder %s432, 0
        %s434 = scalar_select %p433, %s432, 0
        %p436 = scmp.lt.s32.totalorder %s24, 0
        %s437 = ssub.s32 0, %s24
        %s438 = scalar_select %p436, %s437, %s24
        %s439 = sand.u32 %s438, 1
        %s440 = ssub.s32 0, %s439
        %s441 = scalar_select %p436, %s440, %s439
        %p442 = scmp.ne.s32.totalorder %s441, 0
        %p443 = scmp.lt.s32.totalorder %s441, 0
        %p444 = pnand %p443, %p442
        %p445 = pneg %p444
        %s446 = sadd.s32 %s441, 2
        %s447 = scalar_select %p445, %s446, %s441
        %s448 = ssub.s32 1, %s447
        %p449 = scmp.eq.s32.totalorder %s24, 0
        // Predicated region
        $region69: #{tpu_custom_call.1} parent=59 // pred_check
          %p450 = pneg %p449
        $region70: #{tpu_custom_call.1} parent=59 // pred_check_branch
          %452 = sbr.rel (%p450) target = $region72
        $region71: #{tpu_custom_call.1} parent=59 // pred_region
          %453 = vst [vmem:[#allocation2] sm:$0xff] 0.0
          %454 = vst [vmem:[#allocation3] sm:$0xff] 0.0
        $region72: #{tpu_custom_call.1} parent=59 // pred_fallthru
          _
        %p455 = scmp.lt.s32.totalorder %s24, 1
        // Predicated region
        $region73: #{tpu_custom_call.1} parent=59 // pred_check
          %p456 = pneg %p455
        $region74: #{tpu_custom_call.1} parent=59 // pred_check_branch
          %458 = sbr.rel (%p456) target = $region76
        $region75: #{tpu_custom_call.1} parent=59 // pred_region
          %v459 = vld [vmem:[%s421] sm:$0xf]
          %v460 = vld [vmem:[%s421 + $0x4] sm:$0xf]
          %v461 = vld [vmem:[%s421 + $0x8] sm:$0xf]
          %v462 = vld [vmem:[%s421 + $0xc] sm:$0xf]
          %v463 = vld [vmem:[%s421 + $0x10] sm:$0xf]
          %v464 = vld [vmem:[%s421 + $0x14] sm:$0xf]
          %v465 = vld [vmem:[%s421 + $0x18] sm:$0xf]
          %v466 = vld [vmem:[%s421 + $0x1c] sm:$0xf]
          %v467 = vld [vmem:[%s2] sm:$0xff]
          %v468 = vld [vmem:[%s2 + $0x8] sm:$0xf]
          %v469 = vld [vmem:[%s2 + $0xc] sm:$0xff]
          %v470 = vld [vmem:[%s2 + $0x14] sm:$0xf]
          %v471 = vld [vmem:[%s2 + $0x18] sm:$0x33]
          %v472 = vld [vmem:[%s2 + $0x20] sm:$0x3]
          %v473 = vld [vmem:[%s4] sm:$0x7]
          %v475 = vperm.slane %v473, 0
          %v476 = vperm.slane %v473, 1
          %v477 = vperm.slane %v473, 2
          %v489 = vunpack.c.l.b16 %v459
          %v490 = vunpack.c.l.b16 %v460
          %v491 = vunpack.c.l.b16 %v461
          %v492 = vunpack.c.l.b16 %v462
          %v493 = vunpack.c.l.b16 %v463
          %v494 = vunpack.c.l.b16 %v464
          %v495 = vunpack.c.l.b16 %v465
          %v496 = vunpack.c.l.b16 %v466
          %v497 = vpack.c.b16 %v490, %v489
          %v498 = vpack.c.b16 %v492, %v491
          %v499 = vpack.c.b16 %v494, %v493
          %v500 = vpack.c.b16 %v496, %v495
          %v507 = vunpack.c.l.b16 %v467
          %v508 = vunpack.c.h.b16 %v467
          %v509 = vunpack.c.l.b16 %v468
          %v510 = vunpack.c.l.b16 %v469
          %v511 = vunpack.c.h.b16 %v469
          %v512 = vunpack.c.l.b16 %v470
          %v513 = vunpack.c.l.b16 %v471
          %v514 = vunpack.c.h.b16 %v471
          %v515 = vunpack.c.l.b16 %v472
          %v516 = vpack.c.b16 %v510, %v507
          %v517 = vpack.c.b16 %v511, %v508
          %v518 = vpack.c.b16 %v512, %v509
          %v519 = vpack.c.b16 %v513, %v513
          %v520 = vpack.c.b16 %v514, %v514
          %v521 = vpack.c.b16 %v515, %v515
          %vm525 = vcmask 162816
          %v527 = vsel %vm525, %v497, 0
          %v530 = vsel %vm525, %v498, 0
          %v533 = vsel %vm525, %v499, 0
          %v536 = vsel %vm525, %v500, 0
          %vm538 = vcmask 1041408
          %v540 = vsel %vm538, %v519, 0
          %v543 = vsel %vm538, %v520, 0
          %v546 = vsel %vm538, %v521, 0
          %548 = vmatpush.bf16.msra.mxu0 0
          %549 = vmatpush.bf16.msra.mxu0 0
          %550 = vmatpush.bf16.msra.mxu0 0
          %551 = vmatpush.bf16.msra.mxu0 0
          %552 = vmatpush.bf16.msra.mxu0 0
          %553 = vmatpush.bf16.msra.mxu0 0
          %554 = vmatpush.bf16.msra.mxu0 %v540
          %555 = vmatpush.bf16.msra.mxu0 %v516
          %556 = vmatmul.bf16.gmra.mxu0 %v527
          %v557 = vpop.f32.mrf.mxu0
          %v558 = vadd.f32 %v475, %v557
          %v559 = vpop.f32.mrf.mxu0
          %v560 = vadd.f32 %v475, %v559
          %561 = vmatmul.bf16.gmra.mxu0 %v530
          %v562 = vpop.f32.mrf.mxu0
          %v563 = vadd.f32 %v475, %v562
          %v564 = vpop.f32.mrf.mxu0
          %v565 = vadd.f32 %v475, %v564
          %566 = vmatmul.bf16.gmra.mxu0 %v533
          %v567 = vpop.f32.mrf.mxu0
          %v568 = vadd.f32 %v475, %v567
          %v569 = vpop.f32.mrf.mxu0
          %v570 = vadd.f32 %v475, %v569
          %571 = vmatmul.bf16.gmra.mxu0 %v536
          %v572 = vpop.f32.mrf.mxu0
          %v573 = vadd.f32 %v475, %v572
          %v574 = vpop.f32.mrf.mxu0
          %v575 = vadd.f32 %v475, %v574
          %576 = vdwg.mxu0
          %577 = vmatpush.bf16.msra.mxu0 0
          %578 = vmatpush.bf16.msra.mxu0 0
          %579 = vmatpush.bf16.msra.mxu0 0
          %580 = vmatpush.bf16.msra.mxu0 0
          %581 = vmatpush.bf16.msra.mxu0 0
          %582 = vmatpush.bf16.msra.mxu0 0
          %583 = vmatpush.bf16.msra.mxu0 %v543
          %584 = vmatpush.bf16.msra.mxu0 %v517
          %585 = vmatmul.bf16.gmra.mxu0 %v527
          %v586 = vpop.f32.mrf.mxu0
          %v587 = vadd.f32 %v476, %v586
          %v588 = vpop.f32.mrf.mxu0
          %v589 = vadd.f32 %v476, %v588
          %590 = vmatmul.bf16.gmra.mxu0 %v530
          %v591 = vpop.f32.mrf.mxu0
          %v592 = vadd.f32 %v476, %v591
          %v593 = vpop.f32.mrf.mxu0
          %v594 = vadd.f32 %v476, %v593
          %595 = vmatmul.bf16.gmra.mxu0 %v533
          %v596 = vpop.f32.mrf.mxu0
          %v597 = vadd.f32 %v476, %v596
          %v598 = vpop.f32.mrf.mxu0
          %v599 = vadd.f32 %v476, %v598
          %600 = vmatmul.bf16.gmra.mxu0 %v536
          %v601 = vpop.f32.mrf.mxu0
          %v602 = vadd.f32 %v476, %v601
          %v603 = vpop.f32.mrf.mxu0
          %v604 = vadd.f32 %v476, %v603
          %605 = vdwg.mxu0
          %606 = vmatpush.bf16.msra.mxu0 0
          %607 = vmatpush.bf16.msra.mxu0 0
          %608 = vmatpush.bf16.msra.mxu0 0
          %609 = vmatpush.bf16.msra.mxu0 0
          %610 = vmatpush.bf16.msra.mxu0 0
          %611 = vmatpush.bf16.msra.mxu0 0
          %612 = vmatpush.bf16.msra.mxu0 %v546
          %613 = vmatpush.bf16.msra.mxu0 %v518
          %614 = vmatmul.bf16.gmra.mxu0 %v527
          %v615 = vpop.f32.mrf.mxu0
          %v616 = vadd.f32 %v477, %v615
          %v617 = vpop.f32.mrf.mxu0
          %v618 = vadd.f32 %v477, %v617
          %619 = vmatmul.bf16.gmra.mxu0 %v530
          %v620 = vpop.f32.mrf.mxu0
          %v621 = vadd.f32 %v477, %v620
          %v622 = vpop.f32.mrf.mxu0
          %v623 = vadd.f32 %v477, %v622
          %624 = vmatmul.bf16.gmra.mxu0 %v533
          %v625 = vpop.f32.mrf.mxu0
          %v626 = vadd.f32 %v477, %v625
          %v627 = vpop.f32.mrf.mxu0
          %v628 = vadd.f32 %v477, %v627
          %629 = vmatmul.bf16.gmra.mxu0 %v536
          %v630 = vpop.f32.mrf.mxu0
          %v631 = vadd.f32 %v477, %v630
          %v632 = vpop.f32.mrf.mxu0
          %v633 = vadd.f32 %v477, %v632
          %634 = vdwg.mxu0
          %s635 = smul.u32 %s447, 24
          %s636 = smul.addr %s635, 8
          %s637 = scalar_lea.vmem [#allocation4], %s636
          %638 = vst [vmem:[%s637] sm:$0xff] %v558
          %639 = vst [vmem:[%s637 + $0x8] sm:$0xff] %v587
          %640 = vst [vmem:[%s637 + $0x10] sm:$0xff] %v616
          %641 = vst [vmem:[%s637 + $0x18] sm:$0xff] %v560
          %642 = vst [vmem:[%s637 + $0x20] sm:$0xff] %v589
          %643 = vst [vmem:[%s637 + $0x28] sm:$0xff] %v618
          %644 = vst [vmem:[%s637 + $0x30] sm:$0xff] %v563
          %645 = vst [vmem:[%s637 + $0x38] sm:$0xff] %v592
          %646 = vst [vmem:[%s637 + $0x40] sm:$0xff] %v621
          %647 = vst [vmem:[%s637 + $0x48] sm:$0xff] %v565
          %648 = vst [vmem:[%s637 + $0x50] sm:$0xff] %v594
          %649 = vst [vmem:[%s637 + $0x58] sm:$0xff] %v623
          %650 = vst [vmem:[%s637 + $0x60] sm:$0xff] %v568
          %651 = vst [vmem:[%s637 + $0x68] sm:$0xff] %v597
          %652 = vst [vmem:[%s637 + $0x70] sm:$0xff] %v626
          %653 = vst [vmem:[%s637 + $0x78] sm:$0xff] %v570
          %654 = vst [vmem:[%s637 + $0x80] sm:$0xff] %v599
          %655 = vst [vmem:[%s637 + $0x88] sm:$0xff] %v628
          %656 = vst [vmem:[%s637 + $0x90] sm:$0xff] %v573
          %657 = vst [vmem:[%s637 + $0x98] sm:$0xff] %v602
          %658 = vst [vmem:[%s637 + $0xa0] sm:$0xff] %v631
          %659 = vst [vmem:[%s637 + $0xa8] sm:$0xff] %v575
          %660 = vst [vmem:[%s637 + $0xb0] sm:$0xff] %v604
          %661 = vst [vmem:[%s637 + $0xb8] sm:$0xff] %v633
          %v662 = vld [vmem:[%s431] sm:$0xf]
          %v663 = vld [vmem:[%s431 + $0x4] sm:$0xf]
          %v664 = vld [vmem:[%s431 + $0x8] sm:$0xf]
          %v665 = vld [vmem:[%s431 + $0xc] sm:$0xf]
          %v666 = vld [vmem:[%s431 + $0x10] sm:$0xf]
          %v667 = vld [vmem:[%s431 + $0x14] sm:$0xf]
          %v668 = vld [vmem:[%s431 + $0x18] sm:$0xf]
          %v669 = vld [vmem:[%s431 + $0x1c] sm:$0xf]
          %v670 = vld [vmem:[%s6] sm:$0xff]
          %v671 = vld [vmem:[%s6 + $0x8] sm:$0xf]
          %v672 = vld [vmem:[%s6 + $0xc] sm:$0xff]
          %v673 = vld [vmem:[%s6 + $0x14] sm:$0xf]
          %v674 = vld [vmem:[%s6 + $0x18] sm:$0x33]
          %v675 = vld [vmem:[%s6 + $0x20] sm:$0x3]
          %v676 = vld [vmem:[%s8] sm:$0x7]
          %v678 = vperm.slane %v676, 0
          %v679 = vperm.slane %v676, 1
          %v680 = vperm.slane %v676, 2
          %v692 = vunpack.c.l.b16 %v662
          %v693 = vunpack.c.l.b16 %v663
          %v694 = vunpack.c.l.b16 %v664
          %v695 = vunpack.c.l.b16 %v665
          %v696 = vunpack.c.l.b16 %v666
          %v697 = vunpack.c.l.b16 %v667
          %v698 = vunpack.c.l.b16 %v668
          %v699 = vunpack.c.l.b16 %v669
          %v700 = vpack.c.b16 %v693, %v692
          %v701 = vpack.c.b16 %v695, %v694
          %v702 = vpack.c.b16 %v697, %v696
          %v703 = vpack.c.b16 %v699, %v698
          %v710 = vunpack.c.l.b16 %v670
          %v711 = vunpack.c.h.b16 %v670
          %v712 = vunpack.c.l.b16 %v671
          %v713 = vunpack.c.l.b16 %v672
          %v714 = vunpack.c.h.b16 %v672
          %v715 = vunpack.c.l.b16 %v673
          %v716 = vunpack.c.l.b16 %v674
          %v717 = vunpack.c.h.b16 %v674
          %v718 = vunpack.c.l.b16 %v675
          %v719 = vpack.c.b16 %v713, %v710
          %v720 = vpack.c.b16 %v714, %v711
          %v721 = vpack.c.b16 %v715, %v712
          %v722 = vpack.c.b16 %v716, %v716
          %v723 = vpack.c.b16 %v717, %v717
          %v724 = vpack.c.b16 %v718, %v718
          %v729 = vsel %vm525, %v700, 0
          %v732 = vsel %vm525, %v701, 0
          %v735 = vsel %vm525, %v702, 0
          %v738 = vsel %vm525, %v703, 0
          %v741 = vsel %vm538, %v722, 0
          %v744 = vsel %vm538, %v723, 0
          %v747 = vsel %vm538, %v724, 0
          %749 = vmatpush.bf16.msra.mxu0 0
          %750 = vmatpush.bf16.msra.mxu0 0
          %751 = vmatpush.bf16.msra.mxu0 0
          %752 = vmatpush.bf16.msra.mxu0 0
          %753 = vmatpush.bf16.msra.mxu0 0
          %754 = vmatpush.bf16.msra.mxu0 0
          %755 = vmatpush.bf16.msra.mxu0 %v741
          %756 = vmatpush.bf16.msra.mxu0 %v719
          %757 = vmatmul.bf16.gmra.mxu0 %v729
          %v758 = vpop.f32.mrf.mxu0
          %v759 = vadd.f32 %v678, %v758
          %v760 = vpop.f32.mrf.mxu0
          %v761 = vadd.f32 %v678, %v760
          %762 = vmatmul.bf16.gmra.mxu0 %v732
          %v763 = vpop.f32.mrf.mxu0
          %v764 = vadd.f32 %v678, %v763
          %v765 = vpop.f32.mrf.mxu0
          %v766 = vadd.f32 %v678, %v765
          %767 = vmatmul.bf16.gmra.mxu0 %v735
          %v768 = vpop.f32.mrf.mxu0
          %v769 = vadd.f32 %v678, %v768
          %v770 = vpop.f32.mrf.mxu0
          %v771 = vadd.f32 %v678, %v770
          %772 = vmatmul.bf16.gmra.mxu0 %v738
          %v773 = vpop.f32.mrf.mxu0
          %v774 = vadd.f32 %v678, %v773
          %v775 = vpop.f32.mrf.mxu0
          %v776 = vadd.f32 %v678, %v775
          %777 = vdwg.mxu0
          %778 = vmatpush.bf16.msra.mxu0 0
          %779 = vmatpush.bf16.msra.mxu0 0
          %780 = vmatpush.bf16.msra.mxu0 0
          %781 = vmatpush.bf16.msra.mxu0 0
          %782 = vmatpush.bf16.msra.mxu0 0
          %783 = vmatpush.bf16.msra.mxu0 0
          %784 = vmatpush.bf16.msra.mxu0 %v744
          %785 = vmatpush.bf16.msra.mxu0 %v720
          %786 = vmatmul.bf16.gmra.mxu0 %v729
          %v787 = vpop.f32.mrf.mxu0
          %v788 = vadd.f32 %v679, %v787
          %v789 = vpop.f32.mrf.mxu0
          %v790 = vadd.f32 %v679, %v789
          %791 = vmatmul.bf16.gmra.mxu0 %v732
          %v792 = vpop.f32.mrf.mxu0
          %v793 = vadd.f32 %v679, %v792
          %v794 = vpop.f32.mrf.mxu0
          %v795 = vadd.f32 %v679, %v794
          %796 = vmatmul.bf16.gmra.mxu0 %v735
          %v797 = vpop.f32.mrf.mxu0
          %v798 = vadd.f32 %v679, %v797
          %v799 = vpop.f32.mrf.mxu0
          %v800 = vadd.f32 %v679, %v799
          %801 = vmatmul.bf16.gmra.mxu0 %v738
          %v802 = vpop.f32.mrf.mxu0
          %v803 = vadd.f32 %v679, %v802
          %v804 = vpop.f32.mrf.mxu0
          %v805 = vadd.f32 %v679, %v804
          %806 = vdwg.mxu0
          %807 = vmatpush.bf16.msra.mxu0 0
          %808 = vmatpush.bf16.msra.mxu0 0
          %809 = vmatpush.bf16.msra.mxu0 0
          %810 = vmatpush.bf16.msra.mxu0 0
          %811 = vmatpush.bf16.msra.mxu0 0
          %812 = vmatpush.bf16.msra.mxu0 0
          %813 = vmatpush.bf16.msra.mxu0 %v747
          %814 = vmatpush.bf16.msra.mxu0 %v721
          %815 = vmatmul.bf16.gmra.mxu0 %v729
          %v816 = vpop.f32.mrf.mxu0
          %v817 = vadd.f32 %v680, %v816
          %v818 = vpop.f32.mrf.mxu0
          %v819 = vadd.f32 %v680, %v818
          %820 = vmatmul.bf16.gmra.mxu0 %v732
          %v821 = vpop.f32.mrf.mxu0
          %v822 = vadd.f32 %v680, %v821
          %v823 = vpop.f32.mrf.mxu0
          %v824 = vadd.f32 %v680, %v823
          %825 = vmatmul.bf16.gmra.mxu0 %v735
          %v826 = vpop.f32.mrf.mxu0
          %v827 = vadd.f32 %v680, %v826
          %v828 = vpop.f32.mrf.mxu0
          %v829 = vadd.f32 %v680, %v828
          %830 = vmatmul.bf16.gmra.mxu0 %v738
          %v831 = vpop.f32.mrf.mxu0
          %v832 = vadd.f32 %v680, %v831
          %v833 = vpop.f32.mrf.mxu0
          %v834 = vadd.f32 %v680, %v833
          %835 = vdwg.mxu0
          %s836 = smul.addr %s635, 8
          %s837 = scalar_lea.vmem [#allocation5], %s836
          %838 = vst [vmem:[%s837] sm:$0xff] %v759
          %839 = vst [vmem:[%s837 + $0x8] sm:$0xff] %v788
          %840 = vst [vmem:[%s837 + $0x10] sm:$0xff] %v817
          %841 = vst [vmem:[%s837 + $0x18] sm:$0xff] %v761
          %842 = vst [vmem:[%s837 + $0x20] sm:$0xff] %v790
          %843 = vst [vmem:[%s837 + $0x28] sm:$0xff] %v819
          %844 = vst [vmem:[%s837 + $0x30] sm:$0xff] %v764
          %845 = vst [vmem:[%s837 + $0x38] sm:$0xff] %v793
          %846 = vst [vmem:[%s837 + $0x40] sm:$0xff] %v822
          %847 = vst [vmem:[%s837 + $0x48] sm:$0xff] %v766
          %848 = vst [vmem:[%s837 + $0x50] sm:$0xff] %v795
          %849 = vst [vmem:[%s837 + $0x58] sm:$0xff] %v824
          %850 = vst [vmem:[%s837 + $0x60] sm:$0xff] %v769
          %851 = vst [vmem:[%s837 + $0x68] sm:$0xff] %v798
          %852 = vst [vmem:[%s837 + $0x70] sm:$0xff] %v827
          %853 = vst [vmem:[%s837 + $0x78] sm:$0xff] %v771
          %854 = vst [vmem:[%s837 + $0x80] sm:$0xff] %v800
          %855 = vst [vmem:[%s837 + $0x88] sm:$0xff] %v829
          %856 = vst [vmem:[%s837 + $0x90] sm:$0xff] %v774
          %857 = vst [vmem:[%s837 + $0x98] sm:$0xff] %v803
          %858 = vst [vmem:[%s837 + $0xa0] sm:$0xff] %v832
          %859 = vst [vmem:[%s837 + $0xa8] sm:$0xff] %v776
          %860 = vst [vmem:[%s837 + $0xb0] sm:$0xff] %v805
          %861 = vst [vmem:[%s837 + $0xb8] sm:$0xff] %v834
        $region76: #{tpu_custom_call.1} parent=59 // pred_fallthru
          _
        %p862 = scmp.gt.s32.totalorder %s24, 0
        // Predicated region
        $region77: #{tpu_custom_call.1} parent=59 // pred_check
          %p863 = pneg %p862
        $region78: #{tpu_custom_call.1} parent=59 // pred_check_branch
          %865 = sbr.rel (%p863) target = $region80
        $region79: #{tpu_custom_call.1} parent=59 // pred_region
          %v866 = vld [vmem:[%s5] sm:$0x1]
          %v868 = vperm.slane %v866, 0
          %v870 = vld [vmem:[%s9] sm:$0x1]
          %v872 = vperm.slane %v870, 0
          %v874 = vld [vmem:[#allocation2] sm:$0xff]
          %v875 = vld [vmem:[#allocation3] sm:$0xff]
          %s876 = smul.u32 %s448, 24
          %s877 = smul.addr %s876, 8
          %s878 = scalar_lea.vmem [#allocation4], %s877
          %s879 = smul.u32 0, 3
          %s880 = smul.addr %s879, 8
          %s881 = scalar_lea.vmem %s878, %s880 [#allocation4]
          %v882 = vld [vmem:[%s881] sm:$0xff]
          %v883 = vld [vmem:[%s881 + $0x8] sm:$0xff]
          %v884 = vld [vmem:[%s881 + $0x10] sm:$0xff]
          %s885 = smul.addr %s876, 8
          %s886 = scalar_lea.vmem [#allocation5], %s885
          %s887 = smul.u32 7, 3
          %s888 = smul.addr %s887, 8
          %s889 = scalar_lea.vmem %s886, %s888 [#allocation5]
          %v890 = vld [vmem:[%s889] sm:$0xff]
          %v891 = vld [vmem:[%s889 + $0x8] sm:$0xff]
          %v892 = vld [vmem:[%s889 + $0x10] sm:$0xff]
          %v893 = vpack.c.bf16 %v874, %v874
          %v894 = vld [vmem:[#allocation6] sm:$0xff]
          %v895 = vld [vmem:[#allocation6 + $0x8] sm:$0xf]
          %v896 = vld [vmem:[#allocation6 + $0xc] sm:$0xff]
          %v897 = vld [vmem:[#allocation6 + $0x14] sm:$0xf]
          %v898 = vld [vmem:[#allocation6 + $0x18] sm:$0xff]
          %v899 = vld [vmem:[#allocation6 + $0x20] sm:$0xf]
          %v900 = vld [vmem:[#allocation6 + $0x24] sm:$0xff]
          %v901 = vld [vmem:[#allocation6 + $0x2c] sm:$0xf]
          %v902 = vld [vmem:[#allocation6 + $0x30] sm:$0xff]
          %v903 = vld [vmem:[#allocation6 + $0x38] sm:$0xf]
          %v904 = vld [vmem:[#allocation6 + $0x3c] sm:$0xff]
          %v905 = vld [vmem:[#allocation6 + $0x44] sm:$0xf]
          %v906 = vld [vmem:[#allocation6 + $0x48] sm:$0xff]
          %v907 = vld [vmem:[#allocation6 + $0x50] sm:$0xf]
          %v908 = vld [vmem:[#allocation6 + $0x54] sm:$0xff]
          %v909 = vld [vmem:[#allocation6 + $0x5c] sm:$0xf]
          %v910 = vld [vmem:[#allocation6 + $0x60] sm:$0xff]
          %v911 = vld [vmem:[#allocation6 + $0x68] sm:$0xf]
          %v912 = vld [vmem:[#allocation6 + $0x6c] sm:$0xff]
          %v913 = vld [vmem:[#allocation6 + $0x74] sm:$0xf]
          %v914 = vld [vmem:[#allocation6 + $0x78] sm:$0xff]
          %v915 = vld [vmem:[#allocation6 + $0x80] sm:$0xf]
          %v916 = vld [vmem:[#allocation6 + $0x84] sm:$0xff]
          %v917 = vld [vmem:[#allocation6 + $0x8c] sm:$0xf]
          %v918 = vld [vmem:[#allocation6 + $0x90] sm:$0xff]
          %v919 = vld [vmem:[#allocation6 + $0x98] sm:$0xf]
          %v920 = vld [vmem:[#allocation6 + $0x9c] sm:$0xff]
          %v921 = vld [vmem:[#allocation6 + $0xa4] sm:$0xf]
          %v922 = vld [vmem:[#allocation6 + $0xa8] sm:$0xff]
          %v923 = vld [vmem:[#allocation6 + $0xb0] sm:$0xf]
          %v924 = vld [vmem:[#allocation6 + $0xb4] sm:$0xff]
          %v925 = vld [vmem:[#allocation6 + $0xbc] sm:$0xf]
          %v958 = vunpack.c.l.b16 %v894
          %v959 = vunpack.c.h.b16 %v894
          %v960 = vunpack.c.l.b16 %v895
          %v961 = vunpack.c.l.b16 %v896
          %v962 = vunpack.c.h.b16 %v896
          %v963 = vunpack.c.l.b16 %v897
          %v964 = vunpack.c.l.b16 %v898
          %v965 = vunpack.c.h.b16 %v898
          %v966 = vunpack.c.l.b16 %v899
          %v967 = vunpack.c.l.b16 %v900
          %v968 = vunpack.c.h.b16 %v900
          %v969 = vunpack.c.l.b16 %v901
          %v970 = vunpack.c.l.b16 %v902
          %v971 = vunpack.c.h.b16 %v902
          %v972 = vunpack.c.l.b16 %v903
          %v973 = vunpack.c.l.b16 %v904
          %v974 = vunpack.c.h.b16 %v904
          %v975 = vunpack.c.l.b16 %v905
          %v976 = vunpack.c.l.b16 %v906
          %v977 = vunpack.c.h.b16 %v906
          %v978 = vunpack.c.l.b16 %v907
          %v979 = vunpack.c.l.b16 %v908
          %v980 = vunpack.c.h.b16 %v908
          %v981 = vunpack.c.l.b16 %v909
          %v982 = vunpack.c.l.b16 %v910
          %v983 = vunpack.c.h.b16 %v910
          %v984 = vunpack.c.l.b16 %v911
          %v985 = vunpack.c.l.b16 %v912
          %v986 = vunpack.c.h.b16 %v912
          %v987 = vunpack.c.l.b16 %v913
          %v988 = vunpack.c.l.b16 %v914
          %v989 = vunpack.c.h.b16 %v914
          %v990 = vunpack.c.l.b16 %v915
          %v991 = vunpack.c.l.b16 %v916
          %v992 = vunpack.c.h.b16 %v916
          %v993 = vunpack.c.l.b16 %v917
          %v994 = vunpack.c.l.b16 %v918
          %v995 = vunpack.c.h.b16 %v918
          %v996 = vunpack.c.l.b16 %v919
          %v997 = vunpack.c.l.b16 %v920
          %v998 = vunpack.c.h.b16 %v920
          %v999 = vunpack.c.l.b16 %v921
          %v1000 = vunpack.c.l.b16 %v922
          %v1001 = vunpack.c.h.b16 %v922
          %v1002 = vunpack.c.l.b16 %v923
          %v1003 = vunpack.c.l.b16 %v924
          %v1004 = vunpack.c.h.b16 %v924
          %v1005 = vunpack.c.l.b16 %v925
          %v1006 = vpack.c.b16 %v961, %v958
          %v1007 = vpack.c.b16 %v962, %v959
          %v1008 = vpack.c.b16 %v963, %v960
          %v1009 = vpack.c.b16 %v967, %v964
          %v1010 = vpack.c.b16 %v968, %v965
          %v1011 = vpack.c.b16 %v969, %v966
          %v1012 = vpack.c.b16 %v973, %v970
          %v1013 = vpack.c.b16 %v974, %v971
          %v1014 = vpack.c.b16 %v975, %v972
          %v1015 = vpack.c.b16 %v979, %v976
          %v1016 = vpack.c.b16 %v980, %v977
          %v1017 = vpack.c.b16 %v981, %v978
          %v1018 = vpack.c.b16 %v985, %v982
          %v1019 = vpack.c.b16 %v986, %v983
          %v1020 = vpack.c.b16 %v987, %v984
          %v1021 = vpack.c.b16 %v991, %v988
          %v1022 = vpack.c.b16 %v992, %v989
          %v1023 = vpack.c.b16 %v993, %v990
          %v1024 = vpack.c.b16 %v997, %v994
          %v1025 = vpack.c.b16 %v998, %v995
          %v1026 = vpack.c.b16 %v999, %v996
          %v1027 = vpack.c.b16 %v1003, %v1000
          %v1028 = vpack.c.b16 %v1004, %v1001
          %v1029 = vpack.c.b16 %v1005, %v1002
          %1054 = vmatpush.bf16.msra.mxu0 %v1027
          %1055 = vmatpush.bf16.msra.mxu0 %v1024
          %1056 = vmatpush.bf16.msra.mxu0 %v1021
          %1057 = vmatpush.bf16.msra.mxu0 %v1018
          %1058 = vmatpush.bf16.msra.mxu0 %v1015
          %1059 = vmatpush.bf16.msra.mxu0 %v1012
          %1060 = vmatpush.bf16.msra.mxu0 %v1009
          %1061 = vmatpush.bf16.msra.mxu0 %v1006
          %1062 = vmatmul.bf16.gmra.mxu0 %v893
          %v1063 = vpop.f32.mrf.mxu0
          %v1064 = vadd.f32 0.0, %v1063
          %v1065 = vpop.f32.mrf.mxu0
          %1066 = vdwg.mxu0
          %1067 = vmatpush.bf16.msra.mxu0 %v1028
          %1068 = vmatpush.bf16.msra.mxu0 %v1025
          %1069 = vmatpush.bf16.msra.mxu0 %v1022
          %1070 = vmatpush.bf16.msra.mxu0 %v1019
          %1071 = vmatpush.bf16.msra.mxu0 %v1016
          %1072 = vmatpush.bf16.msra.mxu0 %v1013
          %1073 = vmatpush.bf16.msra.mxu0 %v1010
          %1074 = vmatpush.bf16.msra.mxu0 %v1007
          %1075 = vmatmul.bf16.gmra.mxu0 %v893
          %v1076 = vpop.f32.mrf.mxu0
          %v1077 = vadd.f32 0.0, %v1076
          %v1078 = vpop.f32.mrf.mxu0
          %1079 = vdwg.mxu0
          %1080 = vmatpush.bf16.msra.mxu0 %v1029
          %1081 = vmatpush.bf16.msra.mxu0 %v1026
          %1082 = vmatpush.bf16.msra.mxu0 %v1023
          %1083 = vmatpush.bf16.msra.mxu0 %v1020
          %1084 = vmatpush.bf16.msra.mxu0 %v1017
          %1085 = vmatpush.bf16.msra.mxu0 %v1014
          %1086 = vmatpush.bf16.msra.mxu0 %v1011
          %1087 = vmatpush.bf16.msra.mxu0 %v1008
          %1088 = vmatmul.bf16.gmra.mxu0 %v893
          %v1089 = vpop.f32.mrf.mxu0
          %v1090 = vadd.f32 0.0, %v1089
          %v1091 = vpop.f32.mrf.mxu0
          %1092 = vdwg.mxu0
          %v1093 = vadd.f32 %v882, %v1064
          %v1094 = vxor.u32 %v1093, 2147483648
          %v1095 = vmul.f32 %v1094, 1.442695
          %v1096 = vpow.pop %v1095
          %v1097 = vadd.f32 %v1096, 1.0
          %v1098 = vrcp.pop %v1097
          %v1099 = vmul.f32 %v1097, %v1098
          %v1100 = vsub.f32 1.0, %v1099
          %v1101 = vmul.f32 %v1098, %v1100
          %v1102 = vadd.f32 %v1098, %v1101
          %vm1103 = vweird.f32 %v1097
          %vm1104 = vweird.f32 %v1098
          %vm1105 = vmor %vm1103, %vm1104
          %v1106 = vsel %vm1105, %v1098, %v1102
          %v1107 = vand.u32 2147483647, %v1097
          %vm1108 = vcmp.eq.f32.partialorder %v1107, 8.507059e+37
          %v1109 = vand.u32 %v1097, 2147483648
          %v1110 = vor.u32 1.1754944e-38, %v1109
          %v1111 = vsel %vm1108, %v1110, %v1106
          %v1112 = vmul.f32 1.0, %v1111
          %v1113 = vadd.f32 %v883, %v1077
          %v1114 = vxor.u32 %v1113, 2147483648
          %v1115 = vmul.f32 %v1114, 1.442695
          %v1116 = vpow.pop %v1115
          %v1117 = vadd.f32 %v1116, 1.0
          %v1118 = vrcp.pop %v1117
          %v1119 = vmul.f32 %v1117, %v1118
          %v1120 = vsub.f32 1.0, %v1119
          %v1121 = vmul.f32 %v1118, %v1120
          %v1122 = vadd.f32 %v1118, %v1121
          %vm1123 = vweird.f32 %v1117
          %vm1124 = vweird.f32 %v1118
          %vm1125 = vmor %vm1123, %vm1124
          %v1126 = vsel %vm1125, %v1118, %v1122
          %v1127 = vand.u32 2147483647, %v1117
          %vm1128 = vcmp.eq.f32.partialorder %v1127, 8.507059e+37
          %v1129 = vand.u32 %v1117, 2147483648
          %v1130 = vor.u32 1.1754944e-38, %v1129
          %v1131 = vsel %vm1128, %v1130, %v1126
          %v1132 = vmul.f32 1.0, %v1131
          %v1133 = vadd.f32 %v1090, %v868
          %v1134 = vmul.f32 %v1112, %v1133
          %v1135 = vadd.f32 %v884, %v1134
          %v1136 = vtanh.pop %v1135
          %v1137 = vsub.f32 1.0, %v1132
          %v1138 = vmul.f32 %v1137, %v1136
          %v1139 = vmul.f32 %v1132, %v874
          %v1140 = vadd.f32 %v1138, %v1139
          %v1141 = vpack.c.bf16 %v875, %v875
          %v1142 = vld [vmem:[#allocation9] sm:$0xff]
          %v1143 = vld [vmem:[#allocation9 + $0x8] sm:$0xf]
          %v1144 = vld [vmem:[#allocation9 + $0xc] sm:$0xff]
          %v1145 = vld [vmem:[#allocation9 + $0x14] sm:$0xf]
          %v1146 = vld [vmem:[#allocation9 + $0x18] sm:$0xff]
          %v1147 = vld [vmem:[#allocation9 + $0x20] sm:$0xf]
          %v1148 = vld [vmem:[#allocation9 + $0x24] sm:$0xff]
          %v1149 = vld [vmem:[#allocation9 + $0x2c] sm:$0xf]
          %v1150 = vld [vmem:[#allocation9 + $0x30] sm:$0xff]
          %v1151 = vld [vmem:[#allocation9 + $0x38] sm:$0xf]
          %v1152 = vld [vmem:[#allocation9 + $0x3c] sm:$0xff]
          %v1153 = vld [vmem:[#allocation9 + $0x44] sm:$0xf]
          %v1154 = vld [vmem:[#allocation9 + $0x48] sm:$0xff]
          %v1155 = vld [vmem:[#allocation9 + $0x50] sm:$0xf]
          %v1156 = vld [vmem:[#allocation9 + $0x54] sm:$0xff]
          %v1157 = vld [vmem:[#allocation9 + $0x5c] sm:$0xf]
          %v1158 = vld [vmem:[#allocation9 + $0x60] sm:$0xff]
          %v1159 = vld [vmem:[#allocation9 + $0x68] sm:$0xf]
          %v1160 = vld [vmem:[#allocation9 + $0x6c] sm:$0xff]
          %v1161 = vld [vmem:[#allocation9 + $0x74] sm:$0xf]
          %v1162 = vld [vmem:[#allocation9 + $0x78] sm:$0xff]
          %v1163 = vld [vmem:[#allocation9 + $0x80] sm:$0xf]
          %v1164 = vld [vmem:[#allocation9 + $0x84] sm:$0xff]
          %v1165 = vld [vmem:[#allocation9 + $0x8c] sm:$0xf]
          %v1166 = vld [vmem:[#allocation9 + $0x90] sm:$0xff]
          %v1167 = vld [vmem:[#allocation9 + $0x98] sm:$0xf]
          %v1168 = vld [vmem:[#allocation9 + $0x9c] sm:$0xff]
          %v1169 = vld [vmem:[#allocation9 + $0xa4] sm:$0xf]
          %v1170 = vld [vmem:[#allocation9 + $0xa8] sm:$0xff]
          %v1171 = vld [vmem:[#allocation9 + $0xb0] sm:$0xf]
          %v1172 = vld [vmem:[#allocation9 + $0xb4] sm:$0xff]
          %v1173 = vld [vmem:[#allocation9 + $0xbc] sm:$0xf]
          %v1206 = vunpack.c.l.b16 %v1142
          %v1207 = vunpack.c.h.b16 %v1142
          %v1208 = vunpack.c.l.b16 %v1143
          %v1209 = vunpack.c.l.b16 %v1144
          %v1210 = vunpack.c.h.b16 %v1144
          %v1211 = vunpack.c.l.b16 %v1145
          %v1212 = vunpack.c.l.b16 %v1146
          %v1213 = vunpack.c.h.b16 %v1146
          %v1214 = vunpack.c.l.b16 %v1147
          %v1215 = vunpack.c.l.b16 %v1148
          %v1216 = vunpack.c.h.b16 %v1148
          %v1217 = vunpack.c.l.b16 %v1149
          %v1218 = vunpack.c.l.b16 %v1150
          %v1219 = vunpack.c.h.b16 %v1150
          %v1220 = vunpack.c.l.b16 %v1151
          %v1221 = vunpack.c.l.b16 %v1152
          %v1222 = vunpack.c.h.b16 %v1152
          %v1223 = vunpack.c.l.b16 %v1153
          %v1224 = vunpack.c.l.b16 %v1154
          %v1225 = vunpack.c.h.b16 %v1154
          %v1226 = vunpack.c.l.b16 %v1155
          %v1227 = vunpack.c.l.b16 %v1156
          %v1228 = vunpack.c.h.b16 %v1156
          %v1229 = vunpack.c.l.b16 %v1157
          %v1230 = vunpack.c.l.b16 %v1158
          %v1231 = vunpack.c.h.b16 %v1158
          %v1232 = vunpack.c.l.b16 %v1159
          %v1233 = vunpack.c.l.b16 %v1160
          %v1234 = vunpack.c.h.b16 %v1160
          %v1235 = vunpack.c.l.b16 %v1161
          %v1236 = vunpack.c.l.b16 %v1162
          %v1237 = vunpack.c.h.b16 %v1162
          %v1238 = vunpack.c.l.b16 %v1163
          %v1239 = vunpack.c.l.b16 %v1164
          %v1240 = vunpack.c.h.b16 %v1164
          %v1241 = vunpack.c.l.b16 %v1165
          %v1242 = vunpack.c.l.b16 %v1166
          %v1243 = vunpack.c.h.b16 %v1166
          %v1244 = vunpack.c.l.b16 %v1167
          %v1245 = vunpack.c.l.b16 %v1168
          %v1246 = vunpack.c.h.b16 %v1168
          %v1247 = vunpack.c.l.b16 %v1169
          %v1248 = vunpack.c.l.b16 %v1170
          %v1249 = vunpack.c.h.b16 %v1170
          %v1250 = vunpack.c.l.b16 %v1171
          %v1251 = vunpack.c.l.b16 %v1172
          %v1252 = vunpack.c.h.b16 %v1172
          %v1253 = vunpack.c.l.b16 %v1173
          %v1254 = vpack.c.b16 %v1209, %v1206
          %v1255 = vpack.c.b16 %v1210, %v1207
          %v1256 = vpack.c.b16 %v1211, %v1208
          %v1257 = vpack.c.b16 %v1215, %v1212
          %v1258 = vpack.c.b16 %v1216, %v1213
          %v1259 = vpack.c.b16 %v1217, %v1214
          %v1260 = vpack.c.b16 %v1221, %v1218
          %v1261 = vpack.c.b16 %v1222, %v1219
          %v1262 = vpack.c.b16 %v1223, %v1220
          %v1263 = vpack.c.b16 %v1227, %v1224
          %v1264 = vpack.c.b16 %v1228, %v1225
          %v1265 = vpack.c.b16 %v1229, %v1226
          %v1266 = vpack.c.b16 %v1233, %v1230
          %v1267 = vpack.c.b16 %v1234, %v1231
          %v1268 = vpack.c.b16 %v1235, %v1232
          %v1269 = vpack.c.b16 %v1239, %v1236
          %v1270 = vpack.c.b16 %v1240, %v1237
          %v1271 = vpack.c.b16 %v1241, %v1238
          %v1272 = vpack.c.b16 %v1245, %v1242
          %v1273 = vpack.c.b16 %v1246, %v1243
          %v1274 = vpack.c.b16 %v1247, %v1244
          %v1275 = vpack.c.b16 %v1251, %v1248
          %v1276 = vpack.c.b16 %v1252, %v1249
          %v1277 = vpack.c.b16 %v1253, %v1250
          %1302 = vmatpush.bf16.msra.mxu0 %v1275
          %1303 = vmatpush.bf16.msra.mxu0 %v1272
          %1304 = vmatpush.bf16.msra.mxu0 %v1269
          %1305 = vmatpush.bf16.msra.mxu0 %v1266
          %1306 = vmatpush.bf16.msra.mxu0 %v1263
          %1307 = vmatpush.bf16.msra.mxu0 %v1260
          %1308 = vmatpush.bf16.msra.mxu0 %v1257
          %1309 = vmatpush.bf16.msra.mxu0 %v1254
          %1310 = vmatmul.bf16.gmra.mxu0 %v1141
          %v1311 = vpop.f32.mrf.mxu0
          %v1312 = vadd.f32 0.0, %v1311
          %v1313 = vpop.f32.mrf.mxu0
          %1314 = vdwg.mxu0
          %1315 = vmatpush.bf16.msra.mxu0 %v1276
          %1316 = vmatpush.bf16.msra.mxu0 %v1273
          %1317 = vmatpush.bf16.msra.mxu0 %v1270
          %1318 = vmatpush.bf16.msra.mxu0 %v1267
          %1319 = vmatpush.bf16.msra.mxu0 %v1264
          %1320 = vmatpush.bf16.msra.mxu0 %v1261
          %1321 = vmatpush.bf16.msra.mxu0 %v1258
          %1322 = vmatpush.bf16.msra.mxu0 %v1255
          %1323 = vmatmul.bf16.gmra.mxu0 %v1141
          %v1324 = vpop.f32.mrf.mxu0
          %v1325 = vadd.f32 0.0, %v1324
          %v1326 = vpop.f32.mrf.mxu0
          %1327 = vdwg.mxu0
          %1328 = vmatpush.bf16.msra.mxu0 %v1277
          %1329 = vmatpush.bf16.msra.mxu0 %v1274
          %1330 = vmatpush.bf16.msra.mxu0 %v1271
          %1331 = vmatpush.bf16.msra.mxu0 %v1268
          %1332 = vmatpush.bf16.msra.mxu0 %v1265
          %1333 = vmatpush.bf16.msra.mxu0 %v1262
          %1334 = vmatpush.bf16.msra.mxu0 %v1259
          %1335 = vmatpush.bf16.msra.mxu0 %v1256
          %1336 = vmatmul.bf16.gmra.mxu0 %v1141
          %v1337 = vpop.f32.mrf.mxu0
          %v1338 = vadd.f32 0.0, %v1337
          %v1339 = vpop.f32.mrf.mxu0
          %1340 = vdwg.mxu0
          %v1341 = vadd.f32 %v890, %v1312
          %v1342 = vxor.u32 %v1341, 2147483648
          %v1343 = vmul.f32 %v1342, 1.442695
          %v1344 = vpow.pop %v1343
          %v1345 = vadd.f32 %v1344, 1.0
          %v1346 = vrcp.pop %v1345
          %v1347 = vmul.f32 %v1345, %v1346
          %v1348 = vsub.f32 1.0, %v1347
          %v1349 = vmul.f32 %v1346, %v1348
          %v1350 = vadd.f32 %v1346, %v1349
          %vm1351 = vweird.f32 %v1345
          %vm1352 = vweird.f32 %v1346
          %vm1353 = vmor %vm1351, %vm1352
          %v1354 = vsel %vm1353, %v1346, %v1350
          %v1355 = vand.u32 2147483647, %v1345
          %vm1356 = vcmp.eq.f32.partialorder %v1355, 8.507059e+37
          %v1357 = vand.u32 %v1345, 2147483648
          %v1358 = vor.u32 1.1754944e-38, %v1357
          %v1359 = vsel %vm1356, %v1358, %v1354
          %v1360 = vmul.f32 1.0, %v1359
          %v1361 = vadd.f32 %v891, %v1325
          %v1362 = vxor.u32 %v1361, 2147483648
          %v1363 = vmul.f32 %v1362, 1.442695
          %v1364 = vpow.pop %v1363
          %v1365 = vadd.f32 %v1364, 1.0
          %v1366 = vrcp.pop %v1365
          %v1367 = vmul.f32 %v1365, %v1366
          %v1368 = vsub.f32 1.0, %v1367
          %v1369 = vmul.f32 %v1366, %v1368
          %v1370 = vadd.f32 %v1366, %v1369
          %vm1371 = vweird.f32 %v1365
          %vm1372 = vweird.f32 %v1366
          %vm1373 = vmor %vm1371, %vm1372
          %v1374 = vsel %vm1373, %v1366, %v1370
          %v1375 = vand.u32 2147483647, %v1365
          %vm1376 = vcmp.eq.f32.partialorder %v1375, 8.507059e+37
          %v1377 = vand.u32 %v1365, 2147483648
          %v1378 = vor.u32 1.1754944e-38, %v1377
          %v1379 = vsel %vm1376, %v1378, %v1374
          %v1380 = vmul.f32 1.0, %v1379
          %v1381 = vadd.f32 %v1338, %v872
          %v1382 = vmul.f32 %v1360, %v1381
          %v1383 = vadd.f32 %v892, %v1382
          %v1384 = vtanh.pop %v1383
          %v1385 = vsub.f32 1.0, %v1380
          %v1386 = vmul.f32 %v1385, %v1384
          %v1387 = vmul.f32 %v1380, %v875
          %v1388 = vadd.f32 %v1386, %v1387
          %s1389 = smul.u32 1, 3
          %s1390 = smul.addr %s1389, 8
          %s1391 = scalar_lea.vmem %s878, %s1390 [#allocation4]
          %v1392 = vld [vmem:[%s1391] sm:$0xff]
          %v1393 = vld [vmem:[%s1391 + $0x8] sm:$0xff]
          %v1394 = vld [vmem:[%s1391 + $0x10] sm:$0xff]
          %s1395 = smul.u32 6, 3
          %s1396 = smul.addr %s1395, 8
          %s1397 = scalar_lea.vmem %s886, %s1396 [#allocation5]
          %v1398 = vld [vmem:[%s1397] sm:$0xff]
          %v1399 = vld [vmem:[%s1397 + $0x8] sm:$0xff]
          %v1400 = vld [vmem:[%s1397 + $0x10] sm:$0xff]
          %v1401 = vpack.c.bf16 %v1140, %v1140
          %1402 = vmatpush.bf16.msra.mxu0 %v1027
          %1403 = vmatpush.bf16.msra.mxu0 %v1024
          %1404 = vmatpush.bf16.msra.mxu0 %v1021
          %1405 = vmatpush.bf16.msra.mxu0 %v1018
          %1406 = vmatpush.bf16.msra.mxu0 %v1015
          %1407 = vmatpush.bf16.msra.mxu0 %v1012
          %1408 = vmatpush.bf16.msra.mxu0 %v1009
          %1409 = vmatpush.bf16.msra.mxu0 %v1006
          %1410 = vmatmul.bf16.gmra.mxu0 %v1401
          %v1411 = vpop.f32.mrf.mxu0
          %v1412 = vadd.f32 0.0, %v1411
          %v1413 = vpop.f32.mrf.mxu0
          %1414 = vdwg.mxu0
          %1415 = vmatpush.bf16.msra.mxu0 %v1028
          %1416 = vmatpush.bf16.msra.mxu0 %v1025
          %1417 = vmatpush.bf16.msra.mxu0 %v1022
          %1418 = vmatpush.bf16.msra.mxu0 %v1019
          %1419 = vmatpush.bf16.msra.mxu0 %v1016
          %1420 = vmatpush.bf16.msra.mxu0 %v1013
          %1421 = vmatpush.bf16.msra.mxu0 %v1010
          %1422 = vmatpush.bf16.msra.mxu0 %v1007
          %1423 = vmatmul.bf16.gmra.mxu0 %v1401
          %v1424 = vpop.f32.mrf.mxu0
          %v1425 = vadd.f32 0.0, %v1424
          %v1426 = vpop.f32.mrf.mxu0
          %1427 = vdwg.mxu0
          %1428 = vmatpush.bf16.msra.mxu0 %v1029
          %1429 = vmatpush.bf16.msra.mxu0 %v1026
          %1430 = vmatpush.bf16.msra.mxu0 %v1023
          %1431 = vmatpush.bf16.msra.mxu0 %v1020
          %1432 = vmatpush.bf16.msra.mxu0 %v1017
          %1433 = vmatpush.bf16.msra.mxu0 %v1014
          %1434 = vmatpush.bf16.msra.mxu0 %v1011
          %1435 = vmatpush.bf16.msra.mxu0 %v1008
          %1436 = vmatmul.bf16.gmra.mxu0 %v1401
          %v1437 = vpop.f32.mrf.mxu0
          %v1438 = vadd.f32 0.0, %v1437
          %v1439 = vpop.f32.mrf.mxu0
          %1440 = vdwg.mxu0
          %v1441 = vadd.f32 %v1392, %v1412
          %v1442 = vxor.u32 %v1441, 2147483648
          %v1443 = vmul.f32 %v1442, 1.442695
          %v1444 = vpow.pop %v1443
          %v1445 = vadd.f32 %v1444, 1.0
          %v1446 = vrcp.pop %v1445
          %v1447 = vmul.f32 %v1445, %v1446
          %v1448 = vsub.f32 1.0, %v1447
          %v1449 = vmul.f32 %v1446, %v1448
          %v1450 = vadd.f32 %v1446, %v1449
          %vm1451 = vweird.f32 %v1445
          %vm1452 = vweird.f32 %v1446
          %vm1453 = vmor %vm1451, %vm1452
          %v1454 = vsel %vm1453, %v1446, %v1450
          %v1455 = vand.u32 2147483647, %v1445
          %vm1456 = vcmp.eq.f32.partialorder %v1455, 8.507059e+37
          %v1457 = vand.u32 %v1445, 2147483648
          %v1458 = vor.u32 1.1754944e-38, %v1457
          %v1459 = vsel %vm1456, %v1458, %v1454
          %v1460 = vmul.f32 1.0, %v1459
          %v1461 = vadd.f32 %v1393, %v1425
          %v1462 = vxor.u32 %v1461, 2147483648
          %v1463 = vmul.f32 %v1462, 1.442695
          %v1464 = vpow.pop %v1463
          %v1465 = vadd.f32 %v1464, 1.0
          %v1466 = vrcp.pop %v1465
          %v1467 = vmul.f32 %v1465, %v1466
          %v1468 = vsub.f32 1.0, %v1467
          %v1469 = vmul.f32 %v1466, %v1468
          %v1470 = vadd.f32 %v1466, %v1469
          %vm1471 = vweird.f32 %v1465
          %vm1472 = vweird.f32 %v1466
          %vm1473 = vmor %vm1471, %vm1472
          %v1474 = vsel %vm1473, %v1466, %v1470
          %v1475 = vand.u32 2147483647, %v1465
          %vm1476 = vcmp.eq.f32.partialorder %v1475, 8.507059e+37
          %v1477 = vand.u32 %v1465, 2147483648
          %v1478 = vor.u32 1.1754944e-38, %v1477
          %v1479 = vsel %vm1476, %v1478, %v1474
          %v1480 = vmul.f32 1.0, %v1479
          %v1481 = vadd.f32 %v1438, %v868
          %v1482 = vmul.f32 %v1460, %v1481
          %v1483 = vadd.f32 %v1394, %v1482
          %v1484 = vtanh.pop %v1483
          %v1485 = vsub.f32 1.0, %v1480
          %v1486 = vmul.f32 %v1485, %v1484
          %v1487 = vmul.f32 %v1480, %v1140
          %v1488 = vadd.f32 %v1486, %v1487
          %v1489 = vpack.c.bf16 %v1388, %v1388
          %1490 = vmatpush.bf16.msra.mxu0 %v1275
          %1491 = vmatpush.bf16.msra.mxu0 %v1272
          %1492 = vmatpush.bf16.msra.mxu0 %v1269
          %1493 = vmatpush.bf16.msra.mxu0 %v1266
          %1494 = vmatpush.bf16.msra.mxu0 %v1263
          %1495 = vmatpush.bf16.msra.mxu0 %v1260
          %1496 = vmatpush.bf16.msra.mxu0 %v1257
          %1497 = vmatpush.bf16.msra.mxu0 %v1254
          %1498 = vmatmul.bf16.gmra.mxu0 %v1489
          %v1499 = vpop.f32.mrf.mxu0
          %v1500 = vadd.f32 0.0, %v1499
          %v1501 = vpop.f32.mrf.mxu0
          %1502 = vdwg.mxu0
          %1503 = vmatpush.bf16.msra.mxu0 %v1276
          %1504 = vmatpush.bf16.msra.mxu0 %v1273
          %1505 = vmatpush.bf16.msra.mxu0 %v1270
          %1506 = vmatpush.bf16.msra.mxu0 %v1267
          %1507 = vmatpush.bf16.msra.mxu0 %v1264
          %1508 = vmatpush.bf16.msra.mxu0 %v1261
          %1509 = vmatpush.bf16.msra.mxu0 %v1258
          %1510 = vmatpush.bf16.msra.mxu0 %v1255
          %1511 = vmatmul.bf16.gmra.mxu0 %v1489
          %v1512 = vpop.f32.mrf.mxu0
          %v1513 = vadd.f32 0.0, %v1512
          %v1514 = vpop.f32.mrf.mxu0
          %1515 = vdwg.mxu0
          %1516 = vmatpush.bf16.msra.mxu0 %v1277
          %1517 = vmatpush.bf16.msra.mxu0 %v1274
          %1518 = vmatpush.bf16.msra.mxu0 %v1271
          %1519 = vmatpush.bf16.msra.mxu0 %v1268
          %1520 = vmatpush.bf16.msra.mxu0 %v1265
          %1521 = vmatpush.bf16.msra.mxu0 %v1262
          %1522 = vmatpush.bf16.msra.mxu0 %v1259
          %1523 = vmatpush.bf16.msra.mxu0 %v1256
          %1524 = vmatmul.bf16.gmra.mxu0 %v1489
          %v1525 = vpop.f32.mrf.mxu0
          %v1526 = vadd.f32 0.0, %v1525
          %v1527 = vpop.f32.mrf.mxu0
          %1528 = vdwg.mxu0
          %v1529 = vadd.f32 %v1398, %v1500
          %v1530 = vxor.u32 %v1529, 2147483648
          %v1531 = vmul.f32 %v1530, 1.442695
          %v1532 = vpow.pop %v1531
          %v1533 = vadd.f32 %v1532, 1.0
          %v1534 = vrcp.pop %v1533
          %v1535 = vmul.f32 %v1533, %v1534
          %v1536 = vsub.f32 1.0, %v1535
          %v1537 = vmul.f32 %v1534, %v1536
          %v1538 = vadd.f32 %v1534, %v1537
          %vm1539 = vweird.f32 %v1533
          %vm1540 = vweird.f32 %v1534
          %vm1541 = vmor %vm1539, %vm1540
          %v1542 = vsel %vm1541, %v1534, %v1538
          %v1543 = vand.u32 2147483647, %v1533
          %vm1544 = vcmp.eq.f32.partialorder %v1543, 8.507059e+37
          %v1545 = vand.u32 %v1533, 2147483648
          %v1546 = vor.u32 1.1754944e-38, %v1545
          %v1547 = vsel %vm1544, %v1546, %v1542
          %v1548 = vmul.f32 1.0, %v1547
          %v1549 = vadd.f32 %v1399, %v1513
          %v1550 = vxor.u32 %v1549, 2147483648
          %v1551 = vmul.f32 %v1550, 1.442695
          %v1552 = vpow.pop %v1551
          %v1553 = vadd.f32 %v1552, 1.0
          %v1554 = vrcp.pop %v1553
          %v1555 = vmul.f32 %v1553, %v1554
          %v1556 = vsub.f32 1.0, %v1555
          %v1557 = vmul.f32 %v1554, %v1556
          %v1558 = vadd.f32 %v1554, %v1557
          %vm1559 = vweird.f32 %v1553
          %vm1560 = vweird.f32 %v1554
          %vm1561 = vmor %vm1559, %vm1560
          %v1562 = vsel %vm1561, %v1554, %v1558
          %v1563 = vand.u32 2147483647, %v1553
          %vm1564 = vcmp.eq.f32.partialorder %v1563, 8.507059e+37
          %v1565 = vand.u32 %v1553, 2147483648
          %v1566 = vor.u32 1.1754944e-38, %v1565
          %v1567 = vsel %vm1564, %v1566, %v1562
          %v1568 = vmul.f32 1.0, %v1567
          %v1569 = vadd.f32 %v1526, %v872
          %v1570 = vmul.f32 %v1548, %v1569
          %v1571 = vadd.f32 %v1400, %v1570
          %v1572 = vtanh.pop %v1571
          %v1573 = vsub.f32 1.0, %v1568
          %v1574 = vmul.f32 %v1573, %v1572
          %v1575 = vmul.f32 %v1568, %v1388
          %v1576 = vadd.f32 %v1574, %v1575
          %s1577 = smul.u32 2, 3
          %s1578 = smul.addr %s1577, 8
          %s1579 = scalar_lea.vmem %s878, %s1578 [#allocation4]
          %v1580 = vld [vmem:[%s1579] sm:$0xff]
          %v1581 = vld [vmem:[%s1579 + $0x8] sm:$0xff]
          %v1582 = vld [vmem:[%s1579 + $0x10] sm:$0xff]
          %s1583 = smul.u32 5, 3
          %s1584 = smul.addr %s1583, 8
          %s1585 = scalar_lea.vmem %s886, %s1584 [#allocation5]
          %v1586 = vld [vmem:[%s1585] sm:$0xff]
          %v1587 = vld [vmem:[%s1585 + $0x8] sm:$0xff]
          %v1588 = vld [vmem:[%s1585 + $0x10] sm:$0xff]
          %v1589 = vpack.c.bf16 %v1488, %v1488
          %1590 = vmatpush.bf16.msra.mxu0 %v1027
          %1591 = vmatpush.bf16.msra.mxu0 %v1024
          %1592 = vmatpush.bf16.msra.mxu0 %v1021
          %1593 = vmatpush.bf16.msra.mxu0 %v1018
          %1594 = vmatpush.bf16.msra.mxu0 %v1015
          %1595 = vmatpush.bf16.msra.mxu0 %v1012
          %1596 = vmatpush.bf16.msra.mxu0 %v1009
          %1597 = vmatpush.bf16.msra.mxu0 %v1006
          %1598 = vmatmul.bf16.gmra.mxu0 %v1589
          %v1599 = vpop.f32.mrf.mxu0
          %v1600 = vadd.f32 0.0, %v1599
          %v1601 = vpop.f32.mrf.mxu0
          %1602 = vdwg.mxu0
          %1603 = vmatpush.bf16.msra.mxu0 %v1028
          %1604 = vmatpush.bf16.msra.mxu0 %v1025
          %1605 = vmatpush.bf16.msra.mxu0 %v1022
          %1606 = vmatpush.bf16.msra.mxu0 %v1019
          %1607 = vmatpush.bf16.msra.mxu0 %v1016
          %1608 = vmatpush.bf16.msra.mxu0 %v1013
          %1609 = vmatpush.bf16.msra.mxu0 %v1010
          %1610 = vmatpush.bf16.msra.mxu0 %v1007
          %1611 = vmatmul.bf16.gmra.mxu0 %v1589
          %v1612 = vpop.f32.mrf.mxu0
          %v1613 = vadd.f32 0.0, %v1612
          %v1614 = vpop.f32.mrf.mxu0
          %1615 = vdwg.mxu0
          %1616 = vmatpush.bf16.msra.mxu0 %v1029
          %1617 = vmatpush.bf16.msra.mxu0 %v1026
          %1618 = vmatpush.bf16.msra.mxu0 %v1023
          %1619 = vmatpush.bf16.msra.mxu0 %v1020
          %1620 = vmatpush.bf16.msra.mxu0 %v1017
          %1621 = vmatpush.bf16.msra.mxu0 %v1014
          %1622 = vmatpush.bf16.msra.mxu0 %v1011
          %1623 = vmatpush.bf16.msra.mxu0 %v1008
          %1624 = vmatmul.bf16.gmra.mxu0 %v1589
          %v1625 = vpop.f32.mrf.mxu0
          %v1626 = vadd.f32 0.0, %v1625
          %v1627 = vpop.f32.mrf.mxu0
          %1628 = vdwg.mxu0
          %v1629 = vadd.f32 %v1580, %v1600
          %v1630 = vxor.u32 %v1629, 2147483648
          %v1631 = vmul.f32 %v1630, 1.442695
          %v1632 = vpow.pop %v1631
          %v1633 = vadd.f32 %v1632, 1.0
          %v1634 = vrcp.pop %v1633
          %v1635 = vmul.f32 %v1633, %v1634
          %v1636 = vsub.f32 1.0, %v1635
          %v1637 = vmul.f32 %v1634, %v1636
          %v1638 = vadd.f32 %v1634, %v1637
          %vm1639 = vweird.f32 %v1633
          %vm1640 = vweird.f32 %v1634
          %vm1641 = vmor %vm1639, %vm1640
          %v1642 = vsel %vm1641, %v1634, %v1638
          %v1643 = vand.u32 2147483647, %v1633
          %vm1644 = vcmp.eq.f32.partialorder %v1643, 8.507059e+37
          %v1645 = vand.u32 %v1633, 2147483648
          %v1646 = vor.u32 1.1754944e-38, %v1645
          %v1647 = vsel %vm1644, %v1646, %v1642
          %v1648 = vmul.f32 1.0, %v1647
          %v1649 = vadd.f32 %v1581, %v1613
          %v1650 = vxor.u32 %v1649, 2147483648
          %v1651 = vmul.f32 %v1650, 1.442695
          %v1652 = vpow.pop %v1651
          %v1653 = vadd.f32 %v1652, 1.0
          %v1654 = vrcp.pop %v1653
          %v1655 = vmul.f32 %v1653, %v1654
          %v1656 = vsub.f32 1.0, %v1655
          %v1657 = vmul.f32 %v1654, %v1656
          %v1658 = vadd.f32 %v1654, %v1657
          %vm1659 = vweird.f32 %v1653
          %vm1660 = vweird.f32 %v1654
          %vm1661 = vmor %vm1659, %vm1660
          %v1662 = vsel %vm1661, %v1654, %v1658
          %v1663 = vand.u32 2147483647, %v1653
          %vm1664 = vcmp.eq.f32.partialorder %v1663, 8.507059e+37
          %v1665 = vand.u32 %v1653, 2147483648
          %v1666 = vor.u32 1.1754944e-38, %v1665
          %v1667 = vsel %vm1664, %v1666, %v1662
          %v1668 = vmul.f32 1.0, %v1667
          %v1669 = vadd.f32 %v1626, %v868
          %v1670 = vmul.f32 %v1648, %v1669
          %v1671 = vadd.f32 %v1582, %v1670
          %v1672 = vtanh.pop %v1671
          %v1673 = vsub.f32 1.0, %v1668
          %v1674 = vmul.f32 %v1673, %v1672
          %v1675 = vmul.f32 %v1668, %v1488
          %v1676 = vadd.f32 %v1674, %v1675
          %v1677 = vpack.c.bf16 %v1576, %v1576
          %1678 = vmatpush.bf16.msra.mxu0 %v1275
          %1679 = vmatpush.bf16.msra.mxu0 %v1272
          %1680 = vmatpush.bf16.msra.mxu0 %v1269
          %1681 = vmatpush.bf16.msra.mxu0 %v1266
          %1682 = vmatpush.bf16.msra.mxu0 %v1263
          %1683 = vmatpush.bf16.msra.mxu0 %v1260
          %1684 = vmatpush.bf16.msra.mxu0 %v1257
          %1685 = vmatpush.bf16.msra.mxu0 %v1254
          %1686 = vmatmul.bf16.gmra.mxu0 %v1677
          %v1687 = vpop.f32.mrf.mxu0
          %v1688 = vadd.f32 0.0, %v1687
          %v1689 = vpop.f32.mrf.mxu0
          %1690 = vdwg.mxu0
          %1691 = vmatpush.bf16.msra.mxu0 %v1276
          %1692 = vmatpush.bf16.msra.mxu0 %v1273
          %1693 = vmatpush.bf16.msra.mxu0 %v1270
          %1694 = vmatpush.bf16.msra.mxu0 %v1267
          %1695 = vmatpush.bf16.msra.mxu0 %v1264
          %1696 = vmatpush.bf16.msra.mxu0 %v1261
          %1697 = vmatpush.bf16.msra.mxu0 %v1258
          %1698 = vmatpush.bf16.msra.mxu0 %v1255
          %1699 = vmatmul.bf16.gmra.mxu0 %v1677
          %v1700 = vpop.f32.mrf.mxu0
          %v1701 = vadd.f32 0.0, %v1700
          %v1702 = vpop.f32.mrf.mxu0
          %1703 = vdwg.mxu0
          %1704 = vmatpush.bf16.msra.mxu0 %v1277
          %1705 = vmatpush.bf16.msra.mxu0 %v1274
          %1706 = vmatpush.bf16.msra.mxu0 %v1271
          %1707 = vmatpush.bf16.msra.mxu0 %v1268
          %1708 = vmatpush.bf16.msra.mxu0 %v1265
          %1709 = vmatpush.bf16.msra.mxu0 %v1262
          %1710 = vmatpush.bf16.msra.mxu0 %v1259
          %1711 = vmatpush.bf16.msra.mxu0 %v1256
          %1712 = vmatmul.bf16.gmra.mxu0 %v1677
          %v1713 = vpop.f32.mrf.mxu0
          %v1714 = vadd.f32 0.0, %v1713
          %v1715 = vpop.f32.mrf.mxu0
          %1716 = vdwg.mxu0
          %v1717 = vadd.f32 %v1586, %v1688
          %v1718 = vxor.u32 %v1717, 2147483648
          %v1719 = vmul.f32 %v1718, 1.442695
          %v1720 = vpow.pop %v1719
          %v1721 = vadd.f32 %v1720, 1.0
          %v1722 = vrcp.pop %v1721
          %v1723 = vmul.f32 %v1721, %v1722
          %v1724 = vsub.f32 1.0, %v1723
          %v1725 = vmul.f32 %v1722, %v1724
          %v1726 = vadd.f32 %v1722, %v1725
          %vm1727 = vweird.f32 %v1721
          %vm1728 = vweird.f32 %v1722
          %vm1729 = vmor %vm1727, %vm1728
          %v1730 = vsel %vm1729, %v1722, %v1726
          %v1731 = vand.u32 2147483647, %v1721
          %vm1732 = vcmp.eq.f32.partialorder %v1731, 8.507059e+37
          %v1733 = vand.u32 %v1721, 2147483648
          %v1734 = vor.u32 1.1754944e-38, %v1733
          %v1735 = vsel %vm1732, %v1734, %v1730
          %v1736 = vmul.f32 1.0, %v1735
          %v1737 = vadd.f32 %v1587, %v1701
          %v1738 = vxor.u32 %v1737, 2147483648
          %v1739 = vmul.f32 %v1738, 1.442695
          %v1740 = vpow.pop %v1739
          %v1741 = vadd.f32 %v1740, 1.0
          %v1742 = vrcp.pop %v1741
          %v1743 = vmul.f32 %v1741, %v1742
          %v1744 = vsub.f32 1.0, %v1743
          %v1745 = vmul.f32 %v1742, %v1744
          %v1746 = vadd.f32 %v1742, %v1745
          %vm1747 = vweird.f32 %v1741
          %vm1748 = vweird.f32 %v1742
          %vm1749 = vmor %vm1747, %vm1748
          %v1750 = vsel %vm1749, %v1742, %v1746
          %v1751 = vand.u32 2147483647, %v1741
          %vm1752 = vcmp.eq.f32.partialorder %v1751, 8.507059e+37
          %v1753 = vand.u32 %v1741, 2147483648
          %v1754 = vor.u32 1.1754944e-38, %v1753
          %v1755 = vsel %vm1752, %v1754, %v1750
          %v1756 = vmul.f32 1.0, %v1755
          %v1757 = vadd.f32 %v1714, %v872
          %v1758 = vmul.f32 %v1736, %v1757
          %v1759 = vadd.f32 %v1588, %v1758
          %v1760 = vtanh.pop %v1759
          %v1761 = vsub.f32 1.0, %v1756
          %v1762 = vmul.f32 %v1761, %v1760
          %v1763 = vmul.f32 %v1756, %v1576
          %v1764 = vadd.f32 %v1762, %v1763
          %s1765 = smul.u32 3, 3
          %s1766 = smul.addr %s1765, 8
          %s1767 = scalar_lea.vmem %s878, %s1766 [#allocation4]
          %v1768 = vld [vmem:[%s1767] sm:$0xff]
          %v1769 = vld [vmem:[%s1767 + $0x8] sm:$0xff]
          %v1770 = vld [vmem:[%s1767 + $0x10] sm:$0xff]
          %s1771 = smul.u32 4, 3
          %s1772 = smul.addr %s1771, 8
          %s1773 = scalar_lea.vmem %s886, %s1772 [#allocation5]
          %v1774 = vld [vmem:[%s1773] sm:$0xff]
          %v1775 = vld [vmem:[%s1773 + $0x8] sm:$0xff]
          %v1776 = vld [vmem:[%s1773 + $0x10] sm:$0xff]
          %v1777 = vpack.c.bf16 %v1676, %v1676
          %1778 = vmatpush.bf16.msra.mxu0 %v1027
          %1779 = vmatpush.bf16.msra.mxu0 %v1024
          %1780 = vmatpush.bf16.msra.mxu0 %v1021
          %1781 = vmatpush.bf16.msra.mxu0 %v1018
          %1782 = vmatpush.bf16.msra.mxu0 %v1015
          %1783 = vmatpush.bf16.msra.mxu0 %v1012
          %1784 = vmatpush.bf16.msra.mxu0 %v1009
          %1785 = vmatpush.bf16.msra.mxu0 %v1006
          %1786 = vmatmul.bf16.gmra.mxu0 %v1777
          %v1787 = vpop.f32.mrf.mxu0
          %v1788 = vadd.f32 0.0, %v1787
          %v1789 = vpop.f32.mrf.mxu0
          %1790 = vdwg.mxu0
          %1791 = vmatpush.bf16.msra.mxu0 %v1028
          %1792 = vmatpush.bf16.msra.mxu0 %v1025
          %1793 = vmatpush.bf16.msra.mxu0 %v1022
          %1794 = vmatpush.bf16.msra.mxu0 %v1019
          %1795 = vmatpush.bf16.msra.mxu0 %v1016
          %1796 = vmatpush.bf16.msra.mxu0 %v1013
          %1797 = vmatpush.bf16.msra.mxu0 %v1010
          %1798 = vmatpush.bf16.msra.mxu0 %v1007
          %1799 = vmatmul.bf16.gmra.mxu0 %v1777
          %v1800 = vpop.f32.mrf.mxu0
          %v1801 = vadd.f32 0.0, %v1800
          %v1802 = vpop.f32.mrf.mxu0
          %1803 = vdwg.mxu0
          %1804 = vmatpush.bf16.msra.mxu0 %v1029
          %1805 = vmatpush.bf16.msra.mxu0 %v1026
          %1806 = vmatpush.bf16.msra.mxu0 %v1023
          %1807 = vmatpush.bf16.msra.mxu0 %v1020
          %1808 = vmatpush.bf16.msra.mxu0 %v1017
          %1809 = vmatpush.bf16.msra.mxu0 %v1014
          %1810 = vmatpush.bf16.msra.mxu0 %v1011
          %1811 = vmatpush.bf16.msra.mxu0 %v1008
          %1812 = vmatmul.bf16.gmra.mxu0 %v1777
          %v1813 = vpop.f32.mrf.mxu0
          %v1814 = vadd.f32 0.0, %v1813
          %v1815 = vpop.f32.mrf.mxu0
          %1816 = vdwg.mxu0
          %v1817 = vadd.f32 %v1768, %v1788
          %v1818 = vxor.u32 %v1817, 2147483648
          %v1819 = vmul.f32 %v1818, 1.442695
          %v1820 = vpow.pop %v1819
          %v1821 = vadd.f32 %v1820, 1.0
          %v1822 = vrcp.pop %v1821
          %v1823 = vmul.f32 %v1821, %v1822
          %v1824 = vsub.f32 1.0, %v1823
          %v1825 = vmul.f32 %v1822, %v1824
          %v1826 = vadd.f32 %v1822, %v1825
          %vm1827 = vweird.f32 %v1821
          %vm1828 = vweird.f32 %v1822
          %vm1829 = vmor %vm1827, %vm1828
          %v1830 = vsel %vm1829, %v1822, %v1826
          %v1831 = vand.u32 2147483647, %v1821
          %vm1832 = vcmp.eq.f32.partialorder %v1831, 8.507059e+37
          %v1833 = vand.u32 %v1821, 2147483648
          %v1834 = vor.u32 1.1754944e-38, %v1833
          %v1835 = vsel %vm1832, %v1834, %v1830
          %v1836 = vmul.f32 1.0, %v1835
          %v1837 = vadd.f32 %v1769, %v1801
          %v1838 = vxor.u32 %v1837, 2147483648
          %v1839 = vmul.f32 %v1838, 1.442695
          %v1840 = vpow.pop %v1839
          %v1841 = vadd.f32 %v1840, 1.0
          %v1842 = vrcp.pop %v1841
          %v1843 = vmul.f32 %v1841, %v1842
          %v1844 = vsub.f32 1.0, %v1843
          %v1845 = vmul.f32 %v1842, %v1844
          %v1846 = vadd.f32 %v1842, %v1845
          %vm1847 = vweird.f32 %v1841
          %vm1848 = vweird.f32 %v1842
          %vm1849 = vmor %vm1847, %vm1848
          %v1850 = vsel %vm1849, %v1842, %v1846
          %v1851 = vand.u32 2147483647, %v1841
          %vm1852 = vcmp.eq.f32.partialorder %v1851, 8.507059e+37
          %v1853 = vand.u32 %v1841, 2147483648
          %v1854 = vor.u32 1.1754944e-38, %v1853
          %v1855 = vsel %vm1852, %v1854, %v1850
          %v1856 = vmul.f32 1.0, %v1855
          %v1857 = vadd.f32 %v1814, %v868
          %v1858 = vmul.f32 %v1836, %v1857
          %v1859 = vadd.f32 %v1770, %v1858
          %v1860 = vtanh.pop %v1859
          %v1861 = vsub.f32 1.0, %v1856
          %v1862 = vmul.f32 %v1861, %v1860
          %v1863 = vmul.f32 %v1856, %v1676
          %v1864 = vadd.f32 %v1862, %v1863
          %v1865 = vpack.c.bf16 %v1764, %v1764
          %1866 = vmatpush.bf16.msra.mxu0 %v1275
          %1867 = vmatpush.bf16.msra.mxu0 %v1272
          %1868 = vmatpush.bf16.msra.mxu0 %v1269
          %1869 = vmatpush.bf16.msra.mxu0 %v1266
          %1870 = vmatpush.bf16.msra.mxu0 %v1263
          %1871 = vmatpush.bf16.msra.mxu0 %v1260
          %1872 = vmatpush.bf16.msra.mxu0 %v1257
          %1873 = vmatpush.bf16.msra.mxu0 %v1254
          %1874 = vmatmul.bf16.gmra.mxu0 %v1865
          %v1875 = vpop.f32.mrf.mxu0
          %v1876 = vadd.f32 0.0, %v1875
          %v1877 = vpop.f32.mrf.mxu0
          %1878 = vdwg.mxu0
          %1879 = vmatpush.bf16.msra.mxu0 %v1276
          %1880 = vmatpush.bf16.msra.mxu0 %v1273
          %1881 = vmatpush.bf16.msra.mxu0 %v1270
          %1882 = vmatpush.bf16.msra.mxu0 %v1267
          %1883 = vmatpush.bf16.msra.mxu0 %v1264
          %1884 = vmatpush.bf16.msra.mxu0 %v1261
          %1885 = vmatpush.bf16.msra.mxu0 %v1258
          %1886 = vmatpush.bf16.msra.mxu0 %v1255
          %1887 = vmatmul.bf16.gmra.mxu0 %v1865
          %v1888 = vpop.f32.mrf.mxu0
          %v1889 = vadd.f32 0.0, %v1888
          %v1890 = vpop.f32.mrf.mxu0
          %1891 = vdwg.mxu0
          %1892 = vmatpush.bf16.msra.mxu0 %v1277
          %1893 = vmatpush.bf16.msra.mxu0 %v1274
          %1894 = vmatpush.bf16.msra.mxu0 %v1271
          %1895 = vmatpush.bf16.msra.mxu0 %v1268
          %1896 = vmatpush.bf16.msra.mxu0 %v1265
          %1897 = vmatpush.bf16.msra.mxu0 %v1262
          %1898 = vmatpush.bf16.msra.mxu0 %v1259
          %1899 = vmatpush.bf16.msra.mxu0 %v1256
          %1900 = vmatmul.bf16.gmra.mxu0 %v1865
          %v1901 = vpop.f32.mrf.mxu0
          %v1902 = vadd.f32 0.0, %v1901
          %v1903 = vpop.f32.mrf.mxu0
          %1904 = vdwg.mxu0
          %v1905 = vadd.f32 %v1774, %v1876
          %v1906 = vxor.u32 %v1905, 2147483648
          %v1907 = vmul.f32 %v1906, 1.442695
          %v1908 = vpow.pop %v1907
          %v1909 = vadd.f32 %v1908, 1.0
          %v1910 = vrcp.pop %v1909
          %v1911 = vmul.f32 %v1909, %v1910
          %v1912 = vsub.f32 1.0, %v1911
          %v1913 = vmul.f32 %v1910, %v1912
          %v1914 = vadd.f32 %v1910, %v1913
          %vm1915 = vweird.f32 %v1909
          %vm1916 = vweird.f32 %v1910
          %vm1917 = vmor %vm1915, %vm1916
          %v1918 = vsel %vm1917, %v1910, %v1914
          %v1919 = vand.u32 2147483647, %v1909
          %vm1920 = vcmp.eq.f32.partialorder %v1919, 8.507059e+37
          %v1921 = vand.u32 %v1909, 2147483648
          %v1922 = vor.u32 1.1754944e-38, %v1921
          %v1923 = vsel %vm1920, %v1922, %v1918
          %v1924 = vmul.f32 1.0, %v1923
          %v1925 = vadd.f32 %v1775, %v1889
          %v1926 = vxor.u32 %v1925, 2147483648
          %v1927 = vmul.f32 %v1926, 1.442695
          %v1928 = vpow.pop %v1927
          %v1929 = vadd.f32 %v1928, 1.0
          %v1930 = vrcp.pop %v1929
          %v1931 = vmul.f32 %v1929, %v1930
          %v1932 = vsub.f32 1.0, %v1931
          %v1933 = vmul.f32 %v1930, %v1932
          %v1934 = vadd.f32 %v1930, %v1933
          %vm1935 = vweird.f32 %v1929
          %vm1936 = vweird.f32 %v1930
          %vm1937 = vmor %vm1935, %vm1936
          %v1938 = vsel %vm1937, %v1930, %v1934
          %v1939 = vand.u32 2147483647, %v1929
          %vm1940 = vcmp.eq.f32.partialorder %v1939, 8.507059e+37
          %v1941 = vand.u32 %v1929, 2147483648
          %v1942 = vor.u32 1.1754944e-38, %v1941
          %v1943 = vsel %vm1940, %v1942, %v1938
          %v1944 = vmul.f32 1.0, %v1943
          %v1945 = vadd.f32 %v1902, %v872
          %v1946 = vmul.f32 %v1924, %v1945
          %v1947 = vadd.f32 %v1776, %v1946
          %v1948 = vtanh.pop %v1947
          %v1949 = vsub.f32 1.0, %v1944
          %v1950 = vmul.f32 %v1949, %v1948
          %v1951 = vmul.f32 %v1944, %v1764
          %v1952 = vadd.f32 %v1950, %v1951
          %s1953 = smul.addr %s1771, 8
          %s1954 = scalar_lea.vmem %s878, %s1953 [#allocation4]
          %v1955 = vld [vmem:[%s1954] sm:$0xff]
          %v1956 = vld [vmem:[%s1954 + $0x8] sm:$0xff]
          %v1957 = vld [vmem:[%s1954 + $0x10] sm:$0xff]
          %s1958 = smul.addr %s1765, 8
          %s1959 = scalar_lea.vmem %s886, %s1958 [#allocation5]
          %v1960 = vld [vmem:[%s1959] sm:$0xff]
          %v1961 = vld [vmem:[%s1959 + $0x8] sm:$0xff]
          %v1962 = vld [vmem:[%s1959 + $0x10] sm:$0xff]
          %v1963 = vpack.c.bf16 %v1864, %v1864
          %1964 = vmatpush.bf16.msra.mxu0 %v1027
          %1965 = vmatpush.bf16.msra.mxu0 %v1024
          %1966 = vmatpush.bf16.msra.mxu0 %v1021
          %1967 = vmatpush.bf16.msra.mxu0 %v1018
          %1968 = vmatpush.bf16.msra.mxu0 %v1015
          %1969 = vmatpush.bf16.msra.mxu0 %v1012
          %1970 = vmatpush.bf16.msra.mxu0 %v1009
          %1971 = vmatpush.bf16.msra.mxu0 %v1006
          %1972 = vmatmul.bf16.gmra.mxu0 %v1963
          %v1973 = vpop.f32.mrf.mxu0
          %v1974 = vadd.f32 0.0, %v1973
          %v1975 = vpop.f32.mrf.mxu0
          %1976 = vdwg.mxu0
          %1977 = vmatpush.bf16.msra.mxu0 %v1028
          %1978 = vmatpush.bf16.msra.mxu0 %v1025
          %1979 = vmatpush.bf16.msra.mxu0 %v1022
          %1980 = vmatpush.bf16.msra.mxu0 %v1019
          %1981 = vmatpush.bf16.msra.mxu0 %v1016
          %1982 = vmatpush.bf16.msra.mxu0 %v1013
          %1983 = vmatpush.bf16.msra.mxu0 %v1010
          %1984 = vmatpush.bf16.msra.mxu0 %v1007
          %1985 = vmatmul.bf16.gmra.mxu0 %v1963
          %v1986 = vpop.f32.mrf.mxu0
          %v1987 = vadd.f32 0.0, %v1986
          %v1988 = vpop.f32.mrf.mxu0
          %1989 = vdwg.mxu0
          %1990 = vmatpush.bf16.msra.mxu0 %v1029
          %1991 = vmatpush.bf16.msra.mxu0 %v1026
          %1992 = vmatpush.bf16.msra.mxu0 %v1023
          %1993 = vmatpush.bf16.msra.mxu0 %v1020
          %1994 = vmatpush.bf16.msra.mxu0 %v1017
          %1995 = vmatpush.bf16.msra.mxu0 %v1014
          %1996 = vmatpush.bf16.msra.mxu0 %v1011
          %1997 = vmatpush.bf16.msra.mxu0 %v1008
          %1998 = vmatmul.bf16.gmra.mxu0 %v1963
          %v1999 = vpop.f32.mrf.mxu0
          %v2000 = vadd.f32 0.0, %v1999
          %v2001 = vpop.f32.mrf.mxu0
          %2002 = vdwg.mxu0
          %v2003 = vadd.f32 %v1955, %v1974
          %v2004 = vxor.u32 %v2003, 2147483648
          %v2005 = vmul.f32 %v2004, 1.442695
          %v2006 = vpow.pop %v2005
          %v2007 = vadd.f32 %v2006, 1.0
          %v2008 = vrcp.pop %v2007
          %v2009 = vmul.f32 %v2007, %v2008
          %v2010 = vsub.f32 1.0, %v2009
          %v2011 = vmul.f32 %v2008, %v2010
          %v2012 = vadd.f32 %v2008, %v2011
          %vm2013 = vweird.f32 %v2007
          %vm2014 = vweird.f32 %v2008
          %vm2015 = vmor %vm2013, %vm2014
          %v2016 = vsel %vm2015, %v2008, %v2012
          %v2017 = vand.u32 2147483647, %v2007
          %vm2018 = vcmp.eq.f32.partialorder %v2017, 8.507059e+37
          %v2019 = vand.u32 %v2007, 2147483648
          %v2020 = vor.u32 1.1754944e-38, %v2019
          %v2021 = vsel %vm2018, %v2020, %v2016
          %v2022 = vmul.f32 1.0, %v2021
          %v2023 = vadd.f32 %v1956, %v1987
          %v2024 = vxor.u32 %v2023, 2147483648
          %v2025 = vmul.f32 %v2024, 1.442695
          %v2026 = vpow.pop %v2025
          %v2027 = vadd.f32 %v2026, 1.0
          %v2028 = vrcp.pop %v2027
          %v2029 = vmul.f32 %v2027, %v2028
          %v2030 = vsub.f32 1.0, %v2029
          %v2031 = vmul.f32 %v2028, %v2030
          %v2032 = vadd.f32 %v2028, %v2031
          %vm2033 = vweird.f32 %v2027
          %vm2034 = vweird.f32 %v2028
          %vm2035 = vmor %vm2033, %vm2034
          %v2036 = vsel %vm2035, %v2028, %v2032
          %v2037 = vand.u32 2147483647, %v2027
          %vm2038 = vcmp.eq.f32.partialorder %v2037, 8.507059e+37
          %v2039 = vand.u32 %v2027, 2147483648
          %v2040 = vor.u32 1.1754944e-38, %v2039
          %v2041 = vsel %vm2038, %v2040, %v2036
          %v2042 = vmul.f32 1.0, %v2041
          %v2043 = vadd.f32 %v2000, %v868
          %v2044 = vmul.f32 %v2022, %v2043
          %v2045 = vadd.f32 %v1957, %v2044
          %v2046 = vtanh.pop %v2045
          %v2047 = vsub.f32 1.0, %v2042
          %v2048 = vmul.f32 %v2047, %v2046
          %v2049 = vmul.f32 %v2042, %v1864
          %v2050 = vadd.f32 %v2048, %v2049
          %v2051 = vpack.c.bf16 %v1952, %v1952
          %2052 = vmatpush.bf16.msra.mxu0 %v1275
          %2053 = vmatpush.bf16.msra.mxu0 %v1272
          %2054 = vmatpush.bf16.msra.mxu0 %v1269
          %2055 = vmatpush.bf16.msra.mxu0 %v1266
          %2056 = vmatpush.bf16.msra.mxu0 %v1263
          %2057 = vmatpush.bf16.msra.mxu0 %v1260
          %2058 = vmatpush.bf16.msra.mxu0 %v1257
          %2059 = vmatpush.bf16.msra.mxu0 %v1254
          %2060 = vmatmul.bf16.gmra.mxu0 %v2051
          %v2061 = vpop.f32.mrf.mxu0
          %v2062 = vadd.f32 0.0, %v2061
          %v2063 = vpop.f32.mrf.mxu0
          %2064 = vdwg.mxu0
          %2065 = vmatpush.bf16.msra.mxu0 %v1276
          %2066 = vmatpush.bf16.msra.mxu0 %v1273
          %2067 = vmatpush.bf16.msra.mxu0 %v1270
          %2068 = vmatpush.bf16.msra.mxu0 %v1267
          %2069 = vmatpush.bf16.msra.mxu0 %v1264
          %2070 = vmatpush.bf16.msra.mxu0 %v1261
          %2071 = vmatpush.bf16.msra.mxu0 %v1258
          %2072 = vmatpush.bf16.msra.mxu0 %v1255
          %2073 = vmatmul.bf16.gmra.mxu0 %v2051
          %v2074 = vpop.f32.mrf.mxu0
          %v2075 = vadd.f32 0.0, %v2074
          %v2076 = vpop.f32.mrf.mxu0
          %2077 = vdwg.mxu0
          %2078 = vmatpush.bf16.msra.mxu0 %v1277
          %2079 = vmatpush.bf16.msra.mxu0 %v1274
          %2080 = vmatpush.bf16.msra.mxu0 %v1271
          %2081 = vmatpush.bf16.msra.mxu0 %v1268
          %2082 = vmatpush.bf16.msra.mxu0 %v1265
          %2083 = vmatpush.bf16.msra.mxu0 %v1262
          %2084 = vmatpush.bf16.msra.mxu0 %v1259
          %2085 = vmatpush.bf16.msra.mxu0 %v1256
          %2086 = vmatmul.bf16.gmra.mxu0 %v2051
          %v2087 = vpop.f32.mrf.mxu0
          %v2088 = vadd.f32 0.0, %v2087
          %v2089 = vpop.f32.mrf.mxu0
          %2090 = vdwg.mxu0
          %v2091 = vadd.f32 %v1960, %v2062
          %v2092 = vxor.u32 %v2091, 2147483648
          %v2093 = vmul.f32 %v2092, 1.442695
          %v2094 = vpow.pop %v2093
          %v2095 = vadd.f32 %v2094, 1.0
          %v2096 = vrcp.pop %v2095
          %v2097 = vmul.f32 %v2095, %v2096
          %v2098 = vsub.f32 1.0, %v2097
          %v2099 = vmul.f32 %v2096, %v2098
          %v2100 = vadd.f32 %v2096, %v2099
          %vm2101 = vweird.f32 %v2095
          %vm2102 = vweird.f32 %v2096
          %vm2103 = vmor %vm2101, %vm2102
          %v2104 = vsel %vm2103, %v2096, %v2100
          %v2105 = vand.u32 2147483647, %v2095
          %vm2106 = vcmp.eq.f32.partialorder %v2105, 8.507059e+37
          %v2107 = vand.u32 %v2095, 2147483648
          %v2108 = vor.u32 1.1754944e-38, %v2107
          %v2109 = vsel %vm2106, %v2108, %v2104
          %v2110 = vmul.f32 1.0, %v2109
          %v2111 = vadd.f32 %v1961, %v2075
          %v2112 = vxor.u32 %v2111, 2147483648
          %v2113 = vmul.f32 %v2112, 1.442695
          %v2114 = vpow.pop %v2113
          %v2115 = vadd.f32 %v2114, 1.0
          %v2116 = vrcp.pop %v2115
          %v2117 = vmul.f32 %v2115, %v2116
          %v2118 = vsub.f32 1.0, %v2117
          %v2119 = vmul.f32 %v2116, %v2118
          %v2120 = vadd.f32 %v2116, %v2119
          %vm2121 = vweird.f32 %v2115
          %vm2122 = vweird.f32 %v2116
          %vm2123 = vmor %vm2121, %vm2122
          %v2124 = vsel %vm2123, %v2116, %v2120
          %v2125 = vand.u32 2147483647, %v2115
          %vm2126 = vcmp.eq.f32.partialorder %v2125, 8.507059e+37
          %v2127 = vand.u32 %v2115, 2147483648
          %v2128 = vor.u32 1.1754944e-38, %v2127
          %v2129 = vsel %vm2126, %v2128, %v2124
          %v2130 = vmul.f32 1.0, %v2129
          %v2131 = vadd.f32 %v2088, %v872
          %v2132 = vmul.f32 %v2110, %v2131
          %v2133 = vadd.f32 %v1962, %v2132
          %v2134 = vtanh.pop %v2133
          %v2135 = vsub.f32 1.0, %v2130
          %v2136 = vmul.f32 %v2135, %v2134
          %v2137 = vmul.f32 %v2130, %v1952
          %v2138 = vadd.f32 %v2136, %v2137
          %s2139 = smul.addr %s1583, 8
          %s2140 = scalar_lea.vmem %s878, %s2139 [#allocation4]
          %v2141 = vld [vmem:[%s2140] sm:$0xff]
          %v2142 = vld [vmem:[%s2140 + $0x8] sm:$0xff]
          %v2143 = vld [vmem:[%s2140 + $0x10] sm:$0xff]
          %s2144 = smul.addr %s1577, 8
          %s2145 = scalar_lea.vmem %s886, %s2144 [#allocation5]
          %v2146 = vld [vmem:[%s2145] sm:$0xff]
          %v2147 = vld [vmem:[%s2145 + $0x8] sm:$0xff]
          %v2148 = vld [vmem:[%s2145 + $0x10] sm:$0xff]
          %v2149 = vpack.c.bf16 %v2050, %v2050
          %2150 = vmatpush.bf16.msra.mxu0 %v1027
          %2151 = vmatpush.bf16.msra.mxu0 %v1024
          %2152 = vmatpush.bf16.msra.mxu0 %v1021
          %2153 = vmatpush.bf16.msra.mxu0 %v1018
          %2154 = vmatpush.bf16.msra.mxu0 %v1015
          %2155 = vmatpush.bf16.msra.mxu0 %v1012
          %2156 = vmatpush.bf16.msra.mxu0 %v1009
          %2157 = vmatpush.bf16.msra.mxu0 %v1006
          %2158 = vmatmul.bf16.gmra.mxu0 %v2149
          %v2159 = vpop.f32.mrf.mxu0
          %v2160 = vadd.f32 0.0, %v2159
          %v2161 = vpop.f32.mrf.mxu0
          %2162 = vdwg.mxu0
          %2163 = vmatpush.bf16.msra.mxu0 %v1028
          %2164 = vmatpush.bf16.msra.mxu0 %v1025
          %2165 = vmatpush.bf16.msra.mxu0 %v1022
          %2166 = vmatpush.bf16.msra.mxu0 %v1019
          %2167 = vmatpush.bf16.msra.mxu0 %v1016
          %2168 = vmatpush.bf16.msra.mxu0 %v1013
          %2169 = vmatpush.bf16.msra.mxu0 %v1010
          %2170 = vmatpush.bf16.msra.mxu0 %v1007
          %2171 = vmatmul.bf16.gmra.mxu0 %v2149
          %v2172 = vpop.f32.mrf.mxu0
          %v2173 = vadd.f32 0.0, %v2172
          %v2174 = vpop.f32.mrf.mxu0
          %2175 = vdwg.mxu0
          %2176 = vmatpush.bf16.msra.mxu0 %v1029
          %2177 = vmatpush.bf16.msra.mxu0 %v1026
          %2178 = vmatpush.bf16.msra.mxu0 %v1023
          %2179 = vmatpush.bf16.msra.mxu0 %v1020
          %2180 = vmatpush.bf16.msra.mxu0 %v1017
          %2181 = vmatpush.bf16.msra.mxu0 %v1014
          %2182 = vmatpush.bf16.msra.mxu0 %v1011
          %2183 = vmatpush.bf16.msra.mxu0 %v1008
          %2184 = vmatmul.bf16.gmra.mxu0 %v2149
          %v2185 = vpop.f32.mrf.mxu0
          %v2186 = vadd.f32 0.0, %v2185
          %v2187 = vpop.f32.mrf.mxu0
          %2188 = vdwg.mxu0
          %v2189 = vadd.f32 %v2141, %v2160
          %v2190 = vxor.u32 %v2189, 2147483648
          %v2191 = vmul.f32 %v2190, 1.442695
          %v2192 = vpow.pop %v2191
          %v2193 = vadd.f32 %v2192, 1.0
          %v2194 = vrcp.pop %v2193
          %v2195 = vmul.f32 %v2193, %v2194
          %v2196 = vsub.f32 1.0, %v2195
          %v2197 = vmul.f32 %v2194, %v2196
          %v2198 = vadd.f32 %v2194, %v2197
          %vm2199 = vweird.f32 %v2193
          %vm2200 = vweird.f32 %v2194
          %vm2201 = vmor %vm2199, %vm2200
          %v2202 = vsel %vm2201, %v2194, %v2198
          %v2203 = vand.u32 2147483647, %v2193
          %vm2204 = vcmp.eq.f32.partialorder %v2203, 8.507059e+37
          %v2205 = vand.u32 %v2193, 2147483648
          %v2206 = vor.u32 1.1754944e-38, %v2205
          %v2207 = vsel %vm2204, %v2206, %v2202
          %v2208 = vmul.f32 1.0, %v2207
          %v2209 = vadd.f32 %v2142, %v2173
          %v2210 = vxor.u32 %v2209, 2147483648
          %v2211 = vmul.f32 %v2210, 1.442695
          %v2212 = vpow.pop %v2211
          %v2213 = vadd.f32 %v2212, 1.0
          %v2214 = vrcp.pop %v2213
          %v2215 = vmul.f32 %v2213, %v2214
          %v2216 = vsub.f32 1.0, %v2215
          %v2217 = vmul.f32 %v2214, %v2216
          %v2218 = vadd.f32 %v2214, %v2217
          %vm2219 = vweird.f32 %v2213
          %vm2220 = vweird.f32 %v2214
          %vm2221 = vmor %vm2219, %vm2220
          %v2222 = vsel %vm2221, %v2214, %v2218
          %v2223 = vand.u32 2147483647, %v2213
          %vm2224 = vcmp.eq.f32.partialorder %v2223, 8.507059e+37
          %v2225 = vand.u32 %v2213, 2147483648
          %v2226 = vor.u32 1.1754944e-38, %v2225
          %v2227 = vsel %vm2224, %v2226, %v2222
          %v2228 = vmul.f32 1.0, %v2227
          %v2229 = vadd.f32 %v2186, %v868
          %v2230 = vmul.f32 %v2208, %v2229
          %v2231 = vadd.f32 %v2143, %v2230
          %v2232 = vtanh.pop %v2231
          %v2233 = vsub.f32 1.0, %v2228
          %v2234 = vmul.f32 %v2233, %v2232
          %v2235 = vmul.f32 %v2228, %v2050
          %v2236 = vadd.f32 %v2234, %v2235
          %v2237 = vpack.c.bf16 %v2138, %v2138
          %2238 = vmatpush.bf16.msra.mxu0 %v1275
          %2239 = vmatpush.bf16.msra.mxu0 %v1272
          %2240 = vmatpush.bf16.msra.mxu0 %v1269
          %2241 = vmatpush.bf16.msra.mxu0 %v1266
          %2242 = vmatpush.bf16.msra.mxu0 %v1263
          %2243 = vmatpush.bf16.msra.mxu0 %v1260
          %2244 = vmatpush.bf16.msra.mxu0 %v1257
          %2245 = vmatpush.bf16.msra.mxu0 %v1254
          %2246 = vmatmul.bf16.gmra.mxu0 %v2237
          %v2247 = vpop.f32.mrf.mxu0
          %v2248 = vadd.f32 0.0, %v2247
          %v2249 = vpop.f32.mrf.mxu0
          %2250 = vdwg.mxu0
          %2251 = vmatpush.bf16.msra.mxu0 %v1276
          %2252 = vmatpush.bf16.msra.mxu0 %v1273
          %2253 = vmatpush.bf16.msra.mxu0 %v1270
          %2254 = vmatpush.bf16.msra.mxu0 %v1267
          %2255 = vmatpush.bf16.msra.mxu0 %v1264
          %2256 = vmatpush.bf16.msra.mxu0 %v1261
          %2257 = vmatpush.bf16.msra.mxu0 %v1258
          %2258 = vmatpush.bf16.msra.mxu0 %v1255
          %2259 = vmatmul.bf16.gmra.mxu0 %v2237
          %v2260 = vpop.f32.mrf.mxu0
          %v2261 = vadd.f32 0.0, %v2260
          %v2262 = vpop.f32.mrf.mxu0
          %2263 = vdwg.mxu0
          %2264 = vmatpush.bf16.msra.mxu0 %v1277
          %2265 = vmatpush.bf16.msra.mxu0 %v1274
          %2266 = vmatpush.bf16.msra.mxu0 %v1271
          %2267 = vmatpush.bf16.msra.mxu0 %v1268
          %2268 = vmatpush.bf16.msra.mxu0 %v1265
          %2269 = vmatpush.bf16.msra.mxu0 %v1262
          %2270 = vmatpush.bf16.msra.mxu0 %v1259
          %2271 = vmatpush.bf16.msra.mxu0 %v1256
          %2272 = vmatmul.bf16.gmra.mxu0 %v2237
          %v2273 = vpop.f32.mrf.mxu0
          %v2274 = vadd.f32 0.0, %v2273
          %v2275 = vpop.f32.mrf.mxu0
          %2276 = vdwg.mxu0
          %v2277 = vadd.f32 %v2146, %v2248
          %v2278 = vxor.u32 %v2277, 2147483648
          %v2279 = vmul.f32 %v2278, 1.442695
          %v2280 = vpow.pop %v2279
          %v2281 = vadd.f32 %v2280, 1.0
          %v2282 = vrcp.pop %v2281
          %v2283 = vmul.f32 %v2281, %v2282
          %v2284 = vsub.f32 1.0, %v2283
          %v2285 = vmul.f32 %v2282, %v2284
          %v2286 = vadd.f32 %v2282, %v2285
          %vm2287 = vweird.f32 %v2281
          %vm2288 = vweird.f32 %v2282
          %vm2289 = vmor %vm2287, %vm2288
          %v2290 = vsel %vm2289, %v2282, %v2286
          %v2291 = vand.u32 2147483647, %v2281
          %vm2292 = vcmp.eq.f32.partialorder %v2291, 8.507059e+37
          %v2293 = vand.u32 %v2281, 2147483648
          %v2294 = vor.u32 1.1754944e-38, %v2293
          %v2295 = vsel %vm2292, %v2294, %v2290
          %v2296 = vmul.f32 1.0, %v2295
          %v2297 = vadd.f32 %v2147, %v2261
          %v2298 = vxor.u32 %v2297, 2147483648
          %v2299 = vmul.f32 %v2298, 1.442695
          %v2300 = vpow.pop %v2299
          %v2301 = vadd.f32 %v2300, 1.0
          %v2302 = vrcp.pop %v2301
          %v2303 = vmul.f32 %v2301, %v2302
          %v2304 = vsub.f32 1.0, %v2303
          %v2305 = vmul.f32 %v2302, %v2304
          %v2306 = vadd.f32 %v2302, %v2305
          %vm2307 = vweird.f32 %v2301
          %vm2308 = vweird.f32 %v2302
          %vm2309 = vmor %vm2307, %vm2308
          %v2310 = vsel %vm2309, %v2302, %v2306
          %v2311 = vand.u32 2147483647, %v2301
          %vm2312 = vcmp.eq.f32.partialorder %v2311, 8.507059e+37
          %v2313 = vand.u32 %v2301, 2147483648
          %v2314 = vor.u32 1.1754944e-38, %v2313
          %v2315 = vsel %vm2312, %v2314, %v2310
          %v2316 = vmul.f32 1.0, %v2315
          %v2317 = vadd.f32 %v2274, %v872
          %v2318 = vmul.f32 %v2296, %v2317
          %v2319 = vadd.f32 %v2148, %v2318
          %v2320 = vtanh.pop %v2319
          %v2321 = vsub.f32 1.0, %v2316
          %v2322 = vmul.f32 %v2321, %v2320
          %v2323 = vmul.f32 %v2316, %v2138
          %v2324 = vadd.f32 %v2322, %v2323
          %s2325 = smul.addr %s1395, 8
          %s2326 = scalar_lea.vmem %s878, %s2325 [#allocation4]
          %v2327 = vld [vmem:[%s2326] sm:$0xff]
          %v2328 = vld [vmem:[%s2326 + $0x8] sm:$0xff]
          %v2329 = vld [vmem:[%s2326 + $0x10] sm:$0xff]
          %s2330 = smul.addr %s1389, 8
          %s2331 = scalar_lea.vmem %s886, %s2330 [#allocation5]
          %v2332 = vld [vmem:[%s2331] sm:$0xff]
          %v2333 = vld [vmem:[%s2331 + $0x8] sm:$0xff]
          %v2334 = vld [vmem:[%s2331 + $0x10] sm:$0xff]
          %v2335 = vpack.c.bf16 %v2236, %v2236
          %2336 = vmatpush.bf16.msra.mxu0 %v1027
          %2337 = vmatpush.bf16.msra.mxu0 %v1024
          %2338 = vmatpush.bf16.msra.mxu0 %v1021
          %2339 = vmatpush.bf16.msra.mxu0 %v1018
          %2340 = vmatpush.bf16.msra.mxu0 %v1015
          %2341 = vmatpush.bf16.msra.mxu0 %v1012
          %2342 = vmatpush.bf16.msra.mxu0 %v1009
          %2343 = vmatpush.bf16.msra.mxu0 %v1006
          %2344 = vmatmul.bf16.gmra.mxu0 %v2335
          %v2345 = vpop.f32.mrf.mxu0
          %v2346 = vadd.f32 0.0, %v2345
          %v2347 = vpop.f32.mrf.mxu0
          %2348 = vdwg.mxu0
          %2349 = vmatpush.bf16.msra.mxu0 %v1028
          %2350 = vmatpush.bf16.msra.mxu0 %v1025
          %2351 = vmatpush.bf16.msra.mxu0 %v1022
          %2352 = vmatpush.bf16.msra.mxu0 %v1019
          %2353 = vmatpush.bf16.msra.mxu0 %v1016
          %2354 = vmatpush.bf16.msra.mxu0 %v1013
          %2355 = vmatpush.bf16.msra.mxu0 %v1010
          %2356 = vmatpush.bf16.msra.mxu0 %v1007
          %2357 = vmatmul.bf16.gmra.mxu0 %v2335
          %v2358 = vpop.f32.mrf.mxu0
          %v2359 = vadd.f32 0.0, %v2358
          %v2360 = vpop.f32.mrf.mxu0
          %2361 = vdwg.mxu0
          %2362 = vmatpush.bf16.msra.mxu0 %v1029
          %2363 = vmatpush.bf16.msra.mxu0 %v1026
          %2364 = vmatpush.bf16.msra.mxu0 %v1023
          %2365 = vmatpush.bf16.msra.mxu0 %v1020
          %2366 = vmatpush.bf16.msra.mxu0 %v1017
          %2367 = vmatpush.bf16.msra.mxu0 %v1014
          %2368 = vmatpush.bf16.msra.mxu0 %v1011
          %2369 = vmatpush.bf16.msra.mxu0 %v1008
          %2370 = vmatmul.bf16.gmra.mxu0 %v2335
          %v2371 = vpop.f32.mrf.mxu0
          %v2372 = vadd.f32 0.0, %v2371
          %v2373 = vpop.f32.mrf.mxu0
          %2374 = vdwg.mxu0
          %v2375 = vadd.f32 %v2327, %v2346
          %v2376 = vxor.u32 %v2375, 2147483648
          %v2377 = vmul.f32 %v2376, 1.442695
          %v2378 = vpow.pop %v2377
          %v2379 = vadd.f32 %v2378, 1.0
          %v2380 = vrcp.pop %v2379
          %v2381 = vmul.f32 %v2379, %v2380
          %v2382 = vsub.f32 1.0, %v2381
          %v2383 = vmul.f32 %v2380, %v2382
          %v2384 = vadd.f32 %v2380, %v2383
          %vm2385 = vweird.f32 %v2379
          %vm2386 = vweird.f32 %v2380
          %vm2387 = vmor %vm2385, %vm2386
          %v2388 = vsel %vm2387, %v2380, %v2384
          %v2389 = vand.u32 2147483647, %v2379
          %vm2390 = vcmp.eq.f32.partialorder %v2389, 8.507059e+37
          %v2391 = vand.u32 %v2379, 2147483648
          %v2392 = vor.u32 1.1754944e-38, %v2391
          %v2393 = vsel %vm2390, %v2392, %v2388
          %v2394 = vmul.f32 1.0, %v2393
          %v2395 = vadd.f32 %v2328, %v2359
          %v2396 = vxor.u32 %v2395, 2147483648
          %v2397 = vmul.f32 %v2396, 1.442695
          %v2398 = vpow.pop %v2397
          %v2399 = vadd.f32 %v2398, 1.0
          %v2400 = vrcp.pop %v2399
          %v2401 = vmul.f32 %v2399, %v2400
          %v2402 = vsub.f32 1.0, %v2401
          %v2403 = vmul.f32 %v2400, %v2402
          %v2404 = vadd.f32 %v2400, %v2403
          %vm2405 = vweird.f32 %v2399
          %vm2406 = vweird.f32 %v2400
          %vm2407 = vmor %vm2405, %vm2406
          %v2408 = vsel %vm2407, %v2400, %v2404
          %v2409 = vand.u32 2147483647, %v2399
          %vm2410 = vcmp.eq.f32.partialorder %v2409, 8.507059e+37
          %v2411 = vand.u32 %v2399, 2147483648
          %v2412 = vor.u32 1.1754944e-38, %v2411
          %v2413 = vsel %vm2410, %v2412, %v2408
          %v2414 = vmul.f32 1.0, %v2413
          %v2415 = vadd.f32 %v2372, %v868
          %v2416 = vmul.f32 %v2394, %v2415
          %v2417 = vadd.f32 %v2329, %v2416
          %v2418 = vtanh.pop %v2417
          %v2419 = vsub.f32 1.0, %v2414
          %v2420 = vmul.f32 %v2419, %v2418
          %v2421 = vmul.f32 %v2414, %v2236
          %v2422 = vadd.f32 %v2420, %v2421
          %v2423 = vpack.c.bf16 %v2324, %v2324
          %2424 = vmatpush.bf16.msra.mxu0 %v1275
          %2425 = vmatpush.bf16.msra.mxu0 %v1272
          %2426 = vmatpush.bf16.msra.mxu0 %v1269
          %2427 = vmatpush.bf16.msra.mxu0 %v1266
          %2428 = vmatpush.bf16.msra.mxu0 %v1263
          %2429 = vmatpush.bf16.msra.mxu0 %v1260
          %2430 = vmatpush.bf16.msra.mxu0 %v1257
          %2431 = vmatpush.bf16.msra.mxu0 %v1254
          %2432 = vmatmul.bf16.gmra.mxu0 %v2423
          %v2433 = vpop.f32.mrf.mxu0
          %v2434 = vadd.f32 0.0, %v2433
          %v2435 = vpop.f32.mrf.mxu0
          %2436 = vdwg.mxu0
          %2437 = vmatpush.bf16.msra.mxu0 %v1276
          %2438 = vmatpush.bf16.msra.mxu0 %v1273
          %2439 = vmatpush.bf16.msra.mxu0 %v1270
          %2440 = vmatpush.bf16.msra.mxu0 %v1267
          %2441 = vmatpush.bf16.msra.mxu0 %v1264
          %2442 = vmatpush.bf16.msra.mxu0 %v1261
          %2443 = vmatpush.bf16.msra.mxu0 %v1258
          %2444 = vmatpush.bf16.msra.mxu0 %v1255
          %2445 = vmatmul.bf16.gmra.mxu0 %v2423
          %v2446 = vpop.f32.mrf.mxu0
          %v2447 = vadd.f32 0.0, %v2446
          %v2448 = vpop.f32.mrf.mxu0
          %2449 = vdwg.mxu0
          %2450 = vmatpush.bf16.msra.mxu0 %v1277
          %2451 = vmatpush.bf16.msra.mxu0 %v1274
          %2452 = vmatpush.bf16.msra.mxu0 %v1271
          %2453 = vmatpush.bf16.msra.mxu0 %v1268
          %2454 = vmatpush.bf16.msra.mxu0 %v1265
          %2455 = vmatpush.bf16.msra.mxu0 %v1262
          %2456 = vmatpush.bf16.msra.mxu0 %v1259
          %2457 = vmatpush.bf16.msra.mxu0 %v1256
          %2458 = vmatmul.bf16.gmra.mxu0 %v2423
          %v2459 = vpop.f32.mrf.mxu0
          %v2460 = vadd.f32 0.0, %v2459
          %v2461 = vpop.f32.mrf.mxu0
          %2462 = vdwg.mxu0
          %v2463 = vadd.f32 %v2332, %v2434
          %v2464 = vxor.u32 %v2463, 2147483648
          %v2465 = vmul.f32 %v2464, 1.442695
          %v2466 = vpow.pop %v2465
          %v2467 = vadd.f32 %v2466, 1.0
          %v2468 = vrcp.pop %v2467
          %v2469 = vmul.f32 %v2467, %v2468
          %v2470 = vsub.f32 1.0, %v2469
          %v2471 = vmul.f32 %v2468, %v2470
          %v2472 = vadd.f32 %v2468, %v2471
          %vm2473 = vweird.f32 %v2467
          %vm2474 = vweird.f32 %v2468
          %vm2475 = vmor %vm2473, %vm2474
          %v2476 = vsel %vm2475, %v2468, %v2472
          %v2477 = vand.u32 2147483647, %v2467
          %vm2478 = vcmp.eq.f32.partialorder %v2477, 8.507059e+37
          %v2479 = vand.u32 %v2467, 2147483648
          %v2480 = vor.u32 1.1754944e-38, %v2479
          %v2481 = vsel %vm2478, %v2480, %v2476
          %v2482 = vmul.f32 1.0, %v2481
          %v2483 = vadd.f32 %v2333, %v2447
          %v2484 = vxor.u32 %v2483, 2147483648
          %v2485 = vmul.f32 %v2484, 1.442695
          %v2486 = vpow.pop %v2485
          %v2487 = vadd.f32 %v2486, 1.0
          %v2488 = vrcp.pop %v2487
          %v2489 = vmul.f32 %v2487, %v2488
          %v2490 = vsub.f32 1.0, %v2489
          %v2491 = vmul.f32 %v2488, %v2490
          %v2492 = vadd.f32 %v2488, %v2491
          %vm2493 = vweird.f32 %v2487
          %vm2494 = vweird.f32 %v2488
          %vm2495 = vmor %vm2493, %vm2494
          %v2496 = vsel %vm2495, %v2488, %v2492
          %v2497 = vand.u32 2147483647, %v2487
          %vm2498 = vcmp.eq.f32.partialorder %v2497, 8.507059e+37
          %v2499 = vand.u32 %v2487, 2147483648
          %v2500 = vor.u32 1.1754944e-38, %v2499
          %v2501 = vsel %vm2498, %v2500, %v2496
          %v2502 = vmul.f32 1.0, %v2501
          %v2503 = vadd.f32 %v2460, %v872
          %v2504 = vmul.f32 %v2482, %v2503
          %v2505 = vadd.f32 %v2334, %v2504
          %v2506 = vtanh.pop %v2505
          %v2507 = vsub.f32 1.0, %v2502
          %v2508 = vmul.f32 %v2507, %v2506
          %v2509 = vmul.f32 %v2502, %v2324
          %v2510 = vadd.f32 %v2508, %v2509
          %s2511 = smul.addr %s887, 8
          %s2512 = scalar_lea.vmem %s878, %s2511 [#allocation4]
          %v2513 = vld [vmem:[%s2512] sm:$0xff]
          %v2514 = vld [vmem:[%s2512 + $0x8] sm:$0xff]
          %v2515 = vld [vmem:[%s2512 + $0x10] sm:$0xff]
          %s2516 = smul.addr %s879, 8
          %s2517 = scalar_lea.vmem %s886, %s2516 [#allocation5]
          %v2518 = vld [vmem:[%s2517] sm:$0xff]
          %v2519 = vld [vmem:[%s2517 + $0x8] sm:$0xff]
          %v2520 = vld [vmem:[%s2517 + $0x10] sm:$0xff]
          %v2521 = vpack.c.bf16 %v2422, %v2422
          %2522 = vmatpush.bf16.msra.mxu0 %v1027
          %2523 = vmatpush.bf16.msra.mxu0 %v1024
          %2524 = vmatpush.bf16.msra.mxu0 %v1021
          %2525 = vmatpush.bf16.msra.mxu0 %v1018
          %2526 = vmatpush.bf16.msra.mxu0 %v1015
          %2527 = vmatpush.bf16.msra.mxu0 %v1012
          %2528 = vmatpush.bf16.msra.mxu0 %v1009
          %2529 = vmatpush.bf16.msra.mxu0 %v1006
          %2530 = vmatmul.bf16.gmra.mxu0 %v2521
          %v2531 = vpop.f32.mrf.mxu0
          %v2532 = vadd.f32 0.0, %v2531
          %v2533 = vpop.f32.mrf.mxu0
          %2534 = vdwg.mxu0
          %2535 = vmatpush.bf16.msra.mxu0 %v1028
          %2536 = vmatpush.bf16.msra.mxu0 %v1025
          %2537 = vmatpush.bf16.msra.mxu0 %v1022
          %2538 = vmatpush.bf16.msra.mxu0 %v1019
          %2539 = vmatpush.bf16.msra.mxu0 %v1016
          %2540 = vmatpush.bf16.msra.mxu0 %v1013
          %2541 = vmatpush.bf16.msra.mxu0 %v1010
          %2542 = vmatpush.bf16.msra.mxu0 %v1007
          %2543 = vmatmul.bf16.gmra.mxu0 %v2521
          %v2544 = vpop.f32.mrf.mxu0
          %v2545 = vadd.f32 0.0, %v2544
          %v2546 = vpop.f32.mrf.mxu0
          %2547 = vdwg.mxu0
          %2548 = vmatpush.bf16.msra.mxu0 %v1029
          %2549 = vmatpush.bf16.msra.mxu0 %v1026
          %2550 = vmatpush.bf16.msra.mxu0 %v1023
          %2551 = vmatpush.bf16.msra.mxu0 %v1020
          %2552 = vmatpush.bf16.msra.mxu0 %v1017
          %2553 = vmatpush.bf16.msra.mxu0 %v1014
          %2554 = vmatpush.bf16.msra.mxu0 %v1011
          %2555 = vmatpush.bf16.msra.mxu0 %v1008
          %2556 = vmatmul.bf16.gmra.mxu0 %v2521
          %v2557 = vpop.f32.mrf.mxu0
          %v2558 = vadd.f32 0.0, %v2557
          %v2559 = vpop.f32.mrf.mxu0
          %2560 = vdwg.mxu0
          %v2561 = vadd.f32 %v2513, %v2532
          %v2562 = vxor.u32 %v2561, 2147483648
          %v2563 = vmul.f32 %v2562, 1.442695
          %v2564 = vpow.pop %v2563
          %v2565 = vadd.f32 %v2564, 1.0
          %v2566 = vrcp.pop %v2565
          %v2567 = vmul.f32 %v2565, %v2566
          %v2568 = vsub.f32 1.0, %v2567
          %v2569 = vmul.f32 %v2566, %v2568
          %v2570 = vadd.f32 %v2566, %v2569
          %vm2571 = vweird.f32 %v2565
          %vm2572 = vweird.f32 %v2566
          %vm2573 = vmor %vm2571, %vm2572
          %v2574 = vsel %vm2573, %v2566, %v2570
          %v2575 = vand.u32 2147483647, %v2565
          %vm2576 = vcmp.eq.f32.partialorder %v2575, 8.507059e+37
          %v2577 = vand.u32 %v2565, 2147483648
          %v2578 = vor.u32 1.1754944e-38, %v2577
          %v2579 = vsel %vm2576, %v2578, %v2574
          %v2580 = vmul.f32 1.0, %v2579
          %v2581 = vadd.f32 %v2514, %v2545
          %v2582 = vxor.u32 %v2581, 2147483648
          %v2583 = vmul.f32 %v2582, 1.442695
          %v2584 = vpow.pop %v2583
          %v2585 = vadd.f32 %v2584, 1.0
          %v2586 = vrcp.pop %v2585
          %v2587 = vmul.f32 %v2585, %v2586
          %v2588 = vsub.f32 1.0, %v2587
          %v2589 = vmul.f32 %v2586, %v2588
          %v2590 = vadd.f32 %v2586, %v2589
          %vm2591 = vweird.f32 %v2585
          %vm2592 = vweird.f32 %v2586
          %vm2593 = vmor %vm2591, %vm2592
          %v2594 = vsel %vm2593, %v2586, %v2590
          %v2595 = vand.u32 2147483647, %v2585
          %vm2596 = vcmp.eq.f32.partialorder %v2595, 8.507059e+37
          %v2597 = vand.u32 %v2585, 2147483648
          %v2598 = vor.u32 1.1754944e-38, %v2597
          %v2599 = vsel %vm2596, %v2598, %v2594
          %v2600 = vmul.f32 1.0, %v2599
          %v2601 = vadd.f32 %v2558, %v868
          %v2602 = vmul.f32 %v2580, %v2601
          %v2603 = vadd.f32 %v2515, %v2602
          %v2604 = vtanh.pop %v2603
          %v2605 = vsub.f32 1.0, %v2600
          %v2606 = vmul.f32 %v2605, %v2604
          %v2607 = vmul.f32 %v2600, %v2422
          %v2608 = vadd.f32 %v2606, %v2607
          %v2609 = vpack.c.bf16 %v2510, %v2510
          %2610 = vmatpush.bf16.msra.mxu0 %v1275
          %2611 = vmatpush.bf16.msra.mxu0 %v1272
          %2612 = vmatpush.bf16.msra.mxu0 %v1269
          %2613 = vmatpush.bf16.msra.mxu0 %v1266
          %2614 = vmatpush.bf16.msra.mxu0 %v1263
          %2615 = vmatpush.bf16.msra.mxu0 %v1260
          %2616 = vmatpush.bf16.msra.mxu0 %v1257
          %2617 = vmatpush.bf16.msra.mxu0 %v1254
          %2618 = vmatmul.bf16.gmra.mxu0 %v2609
          %v2619 = vpop.f32.mrf.mxu0
          %v2620 = vadd.f32 0.0, %v2619
          %v2621 = vpop.f32.mrf.mxu0
          %2622 = vdwg.mxu0
          %2623 = vmatpush.bf16.msra.mxu0 %v1276
          %2624 = vmatpush.bf16.msra.mxu0 %v1273
          %2625 = vmatpush.bf16.msra.mxu0 %v1270
          %2626 = vmatpush.bf16.msra.mxu0 %v1267
          %2627 = vmatpush.bf16.msra.mxu0 %v1264
          %2628 = vmatpush.bf16.msra.mxu0 %v1261
          %2629 = vmatpush.bf16.msra.mxu0 %v1258
          %2630 = vmatpush.bf16.msra.mxu0 %v1255
          %2631 = vmatmul.bf16.gmra.mxu0 %v2609
          %v2632 = vpop.f32.mrf.mxu0
          %v2633 = vadd.f32 0.0, %v2632
          %v2634 = vpop.f32.mrf.mxu0
          %2635 = vdwg.mxu0
          %2636 = vmatpush.bf16.msra.mxu0 %v1277
          %2637 = vmatpush.bf16.msra.mxu0 %v1274
          %2638 = vmatpush.bf16.msra.mxu0 %v1271
          %2639 = vmatpush.bf16.msra.mxu0 %v1268
          %2640 = vmatpush.bf16.msra.mxu0 %v1265
          %2641 = vmatpush.bf16.msra.mxu0 %v1262
          %2642 = vmatpush.bf16.msra.mxu0 %v1259
          %2643 = vmatpush.bf16.msra.mxu0 %v1256
          %2644 = vmatmul.bf16.gmra.mxu0 %v2609
          %v2645 = vpop.f32.mrf.mxu0
          %v2646 = vadd.f32 0.0, %v2645
          %v2647 = vpop.f32.mrf.mxu0
          %2648 = vdwg.mxu0
          %v2649 = vadd.f32 %v2518, %v2620
          %v2650 = vxor.u32 %v2649, 2147483648
          %v2651 = vmul.f32 %v2650, 1.442695
          %v2652 = vpow.pop %v2651
          %v2653 = vadd.f32 %v2652, 1.0
          %v2654 = vrcp.pop %v2653
          %v2655 = vmul.f32 %v2653, %v2654
          %v2656 = vsub.f32 1.0, %v2655
          %v2657 = vmul.f32 %v2654, %v2656
          %v2658 = vadd.f32 %v2654, %v2657
          %vm2659 = vweird.f32 %v2653
          %vm2660 = vweird.f32 %v2654
          %vm2661 = vmor %vm2659, %vm2660
          %v2662 = vsel %vm2661, %v2654, %v2658
          %v2663 = vand.u32 2147483647, %v2653
          %vm2664 = vcmp.eq.f32.partialorder %v2663, 8.507059e+37
          %v2665 = vand.u32 %v2653, 2147483648
          %v2666 = vor.u32 1.1754944e-38, %v2665
          %v2667 = vsel %vm2664, %v2666, %v2662
          %v2668 = vmul.f32 1.0, %v2667
          %v2669 = vadd.f32 %v2519, %v2633
          %v2670 = vxor.u32 %v2669, 2147483648
          %v2671 = vmul.f32 %v2670, 1.442695
          %v2672 = vpow.pop %v2671
          %v2673 = vadd.f32 %v2672, 1.0
          %v2674 = vrcp.pop %v2673
          %v2675 = vmul.f32 %v2673, %v2674
          %v2676 = vsub.f32 1.0, %v2675
          %v2677 = vmul.f32 %v2674, %v2676
          %v2678 = vadd.f32 %v2674, %v2677
          %vm2679 = vweird.f32 %v2673
          %vm2680 = vweird.f32 %v2674
          %vm2681 = vmor %vm2679, %vm2680
          %v2682 = vsel %vm2681, %v2674, %v2678
          %v2683 = vand.u32 2147483647, %v2673
          %vm2684 = vcmp.eq.f32.partialorder %v2683, 8.507059e+37
          %v2685 = vand.u32 %v2673, 2147483648
          %v2686 = vor.u32 1.1754944e-38, %v2685
          %v2687 = vsel %vm2684, %v2686, %v2682
          %v2688 = vmul.f32 1.0, %v2687
          %v2689 = vadd.f32 %v2646, %v872
          %v2690 = vmul.f32 %v2668, %v2689
          %v2691 = vadd.f32 %v2520, %v2690
          %v2692 = vtanh.pop %v2691
          %v2693 = vsub.f32 1.0, %v2688
          %v2694 = vmul.f32 %v2693, %v2692
          %v2695 = vmul.f32 %v2688, %v2510
          %v2696 = vadd.f32 %v2694, %v2695
          %2697 = vst [vmem:[#allocation2] sm:$0xff] %v2608
          %2698 = vst [vmem:[#allocation3] sm:$0xff] %v2696
        $region80: #{tpu_custom_call.1} parent=59 // pred_fallthru
          _
        %p2699 = scmp.eq.s32.totalorder %s24, 1
        // Predicated region
        $region81: #{tpu_custom_call.1} parent=59 // pred_check
          %p2700 = pneg %p2699
        $region82: #{tpu_custom_call.1} parent=59 // pred_check_branch
          %2702 = sbr.rel (%p2700) target = $region84
        $region83: #{tpu_custom_call.1} parent=59 // pred_region
          %v2703 = vld [vmem:[#allocation2] sm:$0xff]
          %2704 = vst [vmem:[#allocation11] sm:$0xff] %v2703
          %v2705 = vld [vmem:[#allocation3] sm:$0xff]
          %s2706 = scalar_lea.vmem [#allocation11], 8
          %2707 = vst [vmem:[%s2706] sm:$0xff] %v2705
        $region84: #{tpu_custom_call.1} parent=59 // pred_fallthru
          _
        // Predicated region
        $region85: #{tpu_custom_call.1} parent=59 // pred_check
          %p2708 = pneg %p267
        $region86: #{tpu_custom_call.1} parent=59 // pred_check_branch
          %2710 = sbr.rel (%p2708) target = $region88
        $region87: #{tpu_custom_call.1} parent=59 // pred_region
          %2712 = vsyncadd [#allocation8], 0
          %s2713 = sshll.u32 [#allocation11], 4
          %s2714 = int_to_ptr.vmem [resolvable:$true] %s2713
          %s2715 = sshll.u32 %s10, 4
          %s2716 = int_to_ptr.hbm [resolvable:$true] %s2715
          %2721 = dma.vmem_to_hbm [thread:$0]  %s2714, 256, %s2716, [#allocation8], 128, 128, 8
        $region88: #{tpu_custom_call.1} parent=59 // pred_fallthru
          _
        // Predicated region
        $region89: #{tpu_custom_call.1} parent=59 // pred_check
          %p2722 = pneg %p267
        $region90: #{tpu_custom_call.1} parent=59 // pred_check_branch
          %2724 = sbr.rel (%p2722) target = $region92
        $region91: #{tpu_custom_call.1} parent=59 // pred_region
          %2726 = dma.done [#allocation8], 256
        $region92: #{tpu_custom_call.1} parent=59 // pred_fallthru
          _
      $region60: #{tpu_custom_call.1} parent=5 // pred_fallthru
        _
      %p2727 = scmp.le.s32.totalorder 2, %s19
      // Predicated region
      $region93: #{tpu_custom_call.1} parent=5 // pred_check
        %p2728 = pneg %p2727
      $region94: #{tpu_custom_call.1} parent=5 // pred_check_branch
        %2730 = sbr.rel (%p2728) target = $region96
      $region95: #{tpu_custom_call.1} parent=5 // pred_region
        %s2731 = ssub.s32 %s19, 2
      $region96: #{tpu_custom_call.1} parent=5 // pred_fallthru
        _
    $region6: #{tpu_custom_call.1} parent=1 // loop_footer
      %s23 = sadd.s32 1, %s19
    $region7: #{tpu_custom_call.1} parent=1 // loop_footer_branch
      %18 = sbr.rel target = $region3
    $region8: #{tpu_custom_call.1} parent=1 // loop_exit
      _
    %2732 = vsyncpa [#allocation7], 1
    %s2733 = scalar_lea.sflag [#allocation7], 1
    %2734 = vsyncpa %s2733, 1
    %2735 = vsyncpa [#allocation10], 1
    %2736 = vsyncpa [#allocation8], 1
    %s2737 = scalar_lea.sflag [#allocation8], 1
    %2738 = vsyncpa %s2737, 1

</llo_original>
